<compile_context>
chip_gen: v5e
topology: v5e:2x2
jax: 0.10.0
libtpu: 0.0.40
codegen_flags: <defaults>
</compile_context>

<pallas_src>
import functools

import jax
import jax.numpy as jnp
from jax.experimental import pallas as pl
from jax.experimental.pallas import tpu as pltpu

_VMEM_LIMIT = 32 * 1024 * 1024


def _round_up(x, m):
    return ((x + m - 1) // m) * m


# ---------------------------------------------------------------------------
# Kernel 1: per-image 3x3 conv as 9 shifted-window MXU dots + fused BN stats.
#   stride 1: x_ref block = (1, OH+2, OW+2, C)   (spatially zero-padded image)
#   stride 2: x_ref block = (1, 4, OH+1, OW+1, C) (2x2 phase-decomposed image)
# ---------------------------------------------------------------------------
def _conv3x3_kernel(x_ref, w_ref, o_ref, sum_ref, sq_ref, *, oh, ow, stride):
    x = x_ref[0]
    c_out = w_ref.shape[-1]
    acc = jnp.zeros((oh * ow, c_out), jnp.float32)
    for i in range(3):
        for j in range(3):
            if stride == 1:
                win = x[i:i + oh, j:j + ow, :]
            else:
                p = (i % 2) * 2 + (j % 2)
                win = x[p, i // 2:i // 2 + oh, j // 2:j // 2 + ow, :]
            a = win.reshape(oh * ow, win.shape[-1])
            acc = acc + jnp.dot(a, w_ref[3 * i + j],
                                preferred_element_type=jnp.float32)
    o_ref[0] = acc.astype(o_ref.dtype)
    # BN partial statistics from the exact f32 accumulator (one HBM write,
    # no extra read pass over the conv output).
    s = jnp.sum(acc, axis=0, keepdims=True)
    q = jnp.sum(acc * acc, axis=0, keepdims=True)
    sum_ref[0] = jnp.broadcast_to(s, sum_ref.shape[1:])
    sq_ref[0] = jnp.broadcast_to(q, sq_ref.shape[1:])


def conv3x3_bnstats(x_img, w_taps, *, oh, ow, stride, out_dtype=jnp.bfloat16):
    n = x_img.shape[0]
    c_out = w_taps.shape[-1]
    x_block = (1,) + x_img.shape[1:]
    nd = len(x_block)
    kernel = functools.partial(_conv3x3_kernel, oh=oh, ow=ow, stride=stride)
    return pl.pallas_call(
        kernel,
        out_shape=(jax.ShapeDtypeStruct((n, oh * ow, c_out), out_dtype),
                   jax.ShapeDtypeStruct((n, 8, c_out), jnp.float32),
                   jax.ShapeDtypeStruct((n, 8, c_out), jnp.float32)),
        grid=(n,),
        in_specs=[pl.BlockSpec(x_block, lambda g: (g,) + (0,) * (nd - 1)),
                  pl.BlockSpec(w_taps.shape, lambda g: (0, 0, 0))],
        out_specs=(pl.BlockSpec((1, oh * ow, c_out), lambda g: (g, 0, 0)),
                   pl.BlockSpec((1, 8, c_out), lambda g: (g, 0, 0)),
                   pl.BlockSpec((1, 8, c_out), lambda g: (g, 0, 0))),
        compiler_params=pltpu.CompilerParams(
            dimension_semantics=("parallel",),
            vmem_limit_bytes=_VMEM_LIMIT),
    )(x_img, w_taps)


# ---------------------------------------------------------------------------
# Kernel 2: BN1 affine + ReLU, written directly as a spatially padded slab
# (so conv2 needs no separate padding pass).
# ---------------------------------------------------------------------------
def _bn_relu_pad_kernel(x_ref, s_ref, b_ref, o_ref, *, oh, ow):
    y = x_ref[0].astype(jnp.float32) * s_ref[...] + b_ref[...]
    y = jnp.maximum(y, 0.0).astype(o_ref.dtype)
    o_ref[...] = jnp.zeros(o_ref.shape, o_ref.dtype)          # zero borders
    o_ref[0, 1:1 + oh, 1:1 + ow, :] = y.reshape(oh, ow, y.shape[-1])


def bn_relu_pad(conv_out, scale, bias, *, oh, ow, cpad, out_dtype=jnp.bfloat16):
    n = conv_out.shape[0]
    kernel = functools.partial(_bn_relu_pad_kernel, oh=oh, ow=ow)
    return pl.pallas_call(
        kernel,
        out_shape=jax.ShapeDtypeStruct((n, oh + 2, ow + 2, cpad), out_dtype),
        grid=(n,),
        in_specs=[pl.BlockSpec((1, oh * ow, cpad), lambda g: (g, 0, 0)),
                  pl.BlockSpec((1, cpad), lambda g: (0, 0)),
                  pl.BlockSpec((1, cpad), lambda g: (0, 0))],
        out_specs=pl.BlockSpec((1, oh + 2, ow + 2, cpad), lambda g: (g, 0, 0, 0)),
        compiler_params=pltpu.CompilerParams(
            dimension_semantics=("parallel",),
            vmem_limit_bytes=_VMEM_LIMIT),
    )(conv_out, scale, bias)


# ---------------------------------------------------------------------------
# Kernel 3: fused BN2 affine + downsample-BN affine + residual add + ReLU.
# The identity operand is read straight out of the conv1 output slab (column
# block 1 = the fused downsample columns), so no intermediate copy is made.
# ---------------------------------------------------------------------------
def _residual_out_kernel(a_ref, r_ref, s2_ref, b2_ref, sd_ref, bd_ref, o_ref):
    y = a_ref[0].astype(jnp.float32) * s2_ref[...] + b2_ref[...]
    y = y + r_ref[0].astype(jnp.float32) * sd_ref[...] + bd_ref[...]
    o_ref[0] = jnp.maximum(y, 0.0)


def residual_epilogue(out2, conv1_out, s2, b2, sd, bd, *, cpad):
    n, m_img = out2.shape[0], out2.shape[1]
    vec = pl.BlockSpec((1, cpad), lambda g: (0, 0))
    return pl.pallas_call(
        _residual_out_kernel,
        out_shape=jax.ShapeDtypeStruct((n, m_img, cpad), jnp.float32),
        grid=(n,),
        in_specs=[pl.BlockSpec((1, m_img, cpad), lambda g: (g, 0, 0)),
                  pl.BlockSpec((1, m_img, cpad), lambda g: (g, 0, 1)),
                  vec, vec, vec, vec],
        out_specs=pl.BlockSpec((1, m_img, cpad), lambda g: (g, 0, 0)),
        compiler_params=pltpu.CompilerParams(
            dimension_semantics=("parallel",),
            vmem_limit_bytes=_VMEM_LIMIT),
    )(out2, conv1_out, s2, b2, sd, bd)


# ---------------------------------------------------------------------------
# Glue (layout plumbing only): channel pad, 2x2 phase split, weight reshape,
# tiny per-channel BN scale/bias math.
# ---------------------------------------------------------------------------
def _pad_last(a, size):
    c = a.shape[-1]
    if c == size:
        return a
    pad = [(0, 0)] * (a.ndim - 1) + [(0, size - c)]
    return jnp.pad(a, pad)


def stride2_phases(x_nhwc, cin_p, oh, ow):
    """NHWC -> (N, 4, OH+1, OW+1, cin_p) bf16, phase p = 2*(row%2) + (col%2).

    Pure re-partition (no duplication) of the conv-padded input so the
    stride-2 conv kernel only needs static unit-stride window slices.
    """
    n, h, w, _ = x_nhwc.shape
    x = _pad_last(x_nhwc, cin_p)
    x = jnp.pad(x, ((0, 0), (1, 2 * (oh + 1) - h - 1),
                    (1, 2 * (ow + 1) - w - 1), (0, 0)))
    x = x.reshape(n, oh + 1, 2, ow + 1, 2, cin_p)
    x = jnp.transpose(x, (0, 2, 4, 1, 3, 5)).reshape(n, 4, oh + 1, ow + 1, cin_p)
    return x.astype(jnp.bfloat16)


def conv1_down_weights(w1, wd, cin_p, cpad):
    """Fused [9, cin_p, 2*cpad] taps: cols [:cpad]=conv1, [cpad:]=1x1 downsample
    (centre tap only; other taps' downsample half is zero)."""
    c_out, c_in = w1.shape[:2]
    zeros_d = jnp.zeros((cin_p, cpad), w1.dtype)
    taps = []
    for i in range(3):
        for j in range(3):
            m = jnp.pad(w1[:, :, i, j].T, ((0, cin_p - c_in), (0, cpad - c_out)))
            d = (jnp.pad(wd[:, :, 0, 0].T, ((0, cin_p - c_in), (0, cpad - c_out)))
                 if (i == 1 and j == 1) else zeros_d)
            taps.append(jnp.concatenate([m, d], axis=1))
    return jnp.stack(taps).astype(jnp.bfloat16)


def conv2_weights(w2, cpad):
    c_out, c_in = w2.shape[:2]
    taps = [jnp.pad(w2[:, :, i, j].T, ((0, cpad - c_in), (0, cpad - c_out)))
            for i in range(3) for j in range(3)]
    return jnp.stack(taps).astype(jnp.bfloat16)


def pad_gamma_beta(g, b, cpad):
    c = g.shape[0]
    # zero-padded gamma => padded channels are exactly zero after BN affine.
    return jnp.pad(g, (0, cpad - c)), jnp.pad(b, (0, cpad - c))


def bn_scale_bias(psum, psq, m_true, gamma, beta, eps=1e-5):
    """Training-mode BN (batch mean / biased variance) from the kernel-side
    partial sums; only tiny [C] math remains here."""
    s = jnp.sum(psum[:, 0, :], axis=0)
    q = jnp.sum(psq[:, 0, :], axis=0)
    mean = s / m_true
    var = jnp.maximum(q / m_true - mean * mean, 0.0)   # guard round-off
    scale = gamma / jnp.sqrt(var + eps)
    bias = beta - mean * scale
    return (scale[None, :].astype(jnp.float32),
            bias[None, :].astype(jnp.float32))


# ---------------------------------------------------------------------------
# BasicBlock forward (Pallas path)
# ---------------------------------------------------------------------------
def basic_block_forward(x_nchw, params, eps=1e-5):
    n, c_in, h, w = x_nchw.shape
    c_out = params["conv1_w"].shape[0]
    cpad = _round_up(max(c_out, 128), 128)     # lane-dense output channels
    cin_p = _round_up(max(c_in, 128), 128)     # lane-dense conv1 K dim
    oh = (h - 1) // 2 + 1
    ow = (w - 1) // 2 + 1
    m_true = n * oh * ow

    x = jnp.transpose(x_nchw, (0, 2, 3, 1)).astype(jnp.float32)   # NHWC

    # conv1 (3x3 / s2 / p1) fused with the 1x1 / s2 downsample (+ BN stats)
    xph = stride2_phases(x, cin_p, oh, ow)
    w1d = conv1_down_weights(params["conv1_w"], params["down_w"], cin_p, cpad)
    out1, s1, q1 = conv3x3_bnstats(xph, w1d, oh=oh, ow=ow, stride=2)
    # out1[:, :, :cpad] = conv1 output, out1[:, :, cpad:] = downsample output.

    g1, b1 = pad_gamma_beta(params["bn1_g"], params["bn1_b"], cpad)
    gd, bd = pad_gamma_beta(params["bnd_g"], params["bnd_b"], cpad)
    sc1, bi1 = bn_scale_bias(s1[..., :cpad], q1[..., :cpad], m_true, g1, b1, eps)
    scd, bid = bn_scale_bias(s1[..., cpad:], q1[..., cpad:], m_true, gd, bd, eps)

    # BN1 affine + ReLU, emitted directly as a spatially padded bf16 slab
    h1p = bn_relu_pad(out1, sc1, bi1, oh=oh, ow=ow, cpad=cpad)

    # conv2 (3x3 / s1 / p1) with fused BN2 stats
    w2 = conv2_weights(params["conv2_w"], cpad)
    out2, s2, q2 = conv3x3_bnstats(h1p, w2, oh=oh, ow=ow, stride=1)
    g2, b2 = pad_gamma_beta(params["bn2_g"], params["bn2_b"], cpad)
    sc2, bi2 = bn_scale_bias(s2, q2, m_true, g2, b2, eps)

    # fused epilogue: BN2 affine + downsample-BN affine + residual add + ReLU
    y = residual_epilogue(out2, out1, sc2, bi2, scd, bid, cpad=cpad)
    y = y[:, :, :c_out].reshape(n, oh, ow, c_out)
    return jnp.transpose(y, (0, 3, 1, 2))                 # back to NCHW


# ---------------------------------------------------------------------------
# Pure-JAX reference (matches PyTorch forward in training mode)
# ---------------------------------------------------------------------------
def ref_forward(x_nchw, params, eps=1e-5):
    dn = ("NCHW", "OIHW", "NCHW")

    def conv(x, w, stride, pad):
        return jax.lax.conv_general_dilated(
            x, w, (stride, stride), ((pad, pad), (pad, pad)),
            dimension_numbers=dn)

    def bn(x, g, b):
        mean = jnp.mean(x, axis=(0, 2, 3), keepdims=True)
        var = jnp.var(x, axis=(0, 2, 3), keepdims=True)
        xn = (x - mean) / jnp.sqrt(var + eps)
        return xn * g[None, :, None, None] + b[None, :, None, None]

    out = conv(x_nchw, params["conv1_w"], 2, 1)
    out = jax.nn.relu(bn(out, params["bn1_g"], params["bn1_b"]))
    out = bn(conv(out, params["conv2_w"], 1, 1), params["bn2_g"], params["bn2_b"])
    ident = bn(conv(x_nchw, params["down_w"], 2, 0),
               params["bnd_g"], params["bnd_b"])
    return jax.nn.relu(out + ident)


# ---------------------------------------------------------------------------
if __name__ == "__main__":
    N, Cin, Cout, H, W = 2, 4, 8, 16, 16

    key = jax.random.PRNGKey(0)
    k1, k2, k3, kx = jax.random.split(key, 4)
    params = {
        "conv1_w": jax.random.normal(k1, (Cout, Cin, 3, 3), jnp.float32)
                   * (2.0 / (Cin * 9)) ** 0.5,
        "conv2_w": jax.random.normal(k2, (Cout, Cout, 3, 3), jnp.float32)
                   * (2.0 / (Cout * 9)) ** 0.5,
        "down_w":  jax.random.normal(k3, (Cout, Cin, 1, 1), jnp.float32)
                   * (2.0 / Cin) ** 0.5,
        "bn1_g": jnp.ones((Cout,), jnp.float32), "bn1_b": jnp.zeros((Cout,), jnp.float32),
        "bn2_g": jnp.ones((Cout,), jnp.float32), "bn2_b": jnp.zeros((Cout,), jnp.float32),
        "bnd_g": jnp.ones((Cout,), jnp.float32), "bnd_b": jnp.zeros((Cout,), jnp.float32),
    }
    x = jax.random.normal(kx, (N, Cin, H, W), jnp.float32)

    fwd = jax.jit(basic_block_forward)
    out = jax.block_until_ready(fwd(x, params))
    assert out.shape == (N, Cout, H // 2, W // 2), out.shape

    ref = jax.block_until_ready(ref_forward(x, params))
    err = float(jnp.max(jnp.abs(out - ref)))
    mean_err = float(jnp.mean(jnp.abs(out - ref)))
    # bf16 MXU operands (with f32 accumulation) through a two-conv + BN chain
    # bound the accuracy vs the pure-f32 reference.
    assert err < 8e-2, f"max abs err {err}"
    assert mean_err < 1e-2, f"mean abs err {mean_err}"

    print("KERNEL_OK")
</pallas_src>

<mosaic_0001>
module attributes {stable_mosaic.version = 11 : i64} {
  func.func @_conv3x3_kernel(%arg0: i32, %arg1: memref<1x4x9x9x128xbf16, #tpu.memory_space<vmem>>, %arg2: memref<9x128x256xbf16, #tpu.memory_space<vmem>>, %arg3: memref<1x64x256xbf16, #tpu.memory_space<vmem>>, %arg4: memref<1x8x256xf32, #tpu.memory_space<vmem>>, %arg5: memref<1x8x256xf32, #tpu.memory_space<vmem>>) attributes {dimension_semantics = [#tpu.dimension_semantics<parallel>], iteration_bounds = array<i64: 2>, scalar_prefetch = 0 : i64, scratch_operands = 0 : i64, tpu.core_type = #tpu.core_type<tc>, window_params = [{transform_indices = @transform_0, window_bounds = array<i64: 1, 4, 9, 9, 128>}, {pipeline_mode = #tpu.pipeline_mode<synchronous>, transform_indices = @transform_1, window_bounds = array<i64: 9, 128, 256>}, {transform_indices = @transform_2, window_bounds = array<i64: 1, 64, 256>}, {transform_indices = @transform_3, window_bounds = array<i64: 1, 8, 256>}, {transform_indices = @transform_4, window_bounds = array<i64: 1, 8, 256>}]} {
    %c0 = arith.constant 0 : index
    %c0_0 = arith.constant 0 : index
    %c0_1 = arith.constant 0 : index
    %c0_2 = arith.constant 0 : index
    %c0_3 = arith.constant 0 : index
    %0 = vector.load %arg1[%c0, %c0_0, %c0_1, %c0_2, %c0_3] : memref<1x4x9x9x128xbf16, #tpu.memory_space<vmem>>, vector<1x4x9x9x128xbf16>
    %1 = vector.shape_cast %0 : vector<1x4x9x9x128xbf16> to vector<4x9x9x128xbf16>
    %cst = arith.constant 0.000000e+00 : f32
    %2 = vector.broadcast %cst : f32 to vector<64x256xf32>
    %3 = vector.extract_strided_slice %1 {offsets = [0, 0, 0, 0], sizes = [1, 8, 8, 128], strides = [1, 1, 1, 1]} : vector<4x9x9x128xbf16> to vector<1x8x8x128xbf16>
    %4 = vector.shape_cast %3 : vector<1x8x8x128xbf16> to vector<8x8x128xbf16>
    %5 = vector.shape_cast %4 : vector<8x8x128xbf16> to vector<64x128xbf16>
    %c0_4 = arith.constant 0 : index
    %c0_5 = arith.constant 0 : index
    %c0_6 = arith.constant 0 : index
    %6 = vector.load %arg2[%c0_4, %c0_5, %c0_6] : memref<9x128x256xbf16, #tpu.memory_space<vmem>>, vector<1x128x256xbf16>
    %7 = vector.shape_cast %6 : vector<1x128x256xbf16> to vector<128x256xbf16>
    %cst_7 = arith.constant dense<0.000000e+00> : vector<64x256xf32>
    %8 = tpu.matmul %5, %7, %cst_7 {dimension_numbers = #tpu.dot_dimension_numbers<[1], [0], [0], [1], [0, 0, 1, 1], [], []>} : vector<64x128xbf16>, vector<128x256xbf16>, vector<64x256xf32> -> vector<64x256xf32>
    %9 = arith.addf %2, %8 : vector<64x256xf32>
    %10 = vector.extract_strided_slice %1 {offsets = [1, 0, 0, 0], sizes = [1, 8, 8, 128], strides = [1, 1, 1, 1]} : vector<4x9x9x128xbf16> to vector<1x8x8x128xbf16>
    %11 = vector.shape_cast %10 : vector<1x8x8x128xbf16> to vector<8x8x128xbf16>
    %12 = vector.shape_cast %11 : vector<8x8x128xbf16> to vector<64x128xbf16>
    %c1 = arith.constant 1 : index
    %c0_8 = arith.constant 0 : index
    %c0_9 = arith.constant 0 : index
    %13 = vector.load %arg2[%c1, %c0_8, %c0_9] : memref<9x128x256xbf16, #tpu.memory_space<vmem>>, vector<1x128x256xbf16>
    %14 = vector.shape_cast %13 : vector<1x128x256xbf16> to vector<128x256xbf16>
    %cst_10 = arith.constant dense<0.000000e+00> : vector<64x256xf32>
    %15 = tpu.matmul %12, %14, %cst_10 {dimension_numbers = #tpu.dot_dimension_numbers<[1], [0], [0], [1], [0, 0, 1, 1], [], []>} : vector<64x128xbf16>, vector<128x256xbf16>, vector<64x256xf32> -> vector<64x256xf32>
    %16 = arith.addf %9, %15 : vector<64x256xf32>
    %17 = vector.extract_strided_slice %1 {offsets = [0, 0, 1, 0], sizes = [1, 8, 8, 128], strides = [1, 1, 1, 1]} : vector<4x9x9x128xbf16> to vector<1x8x8x128xbf16>
    %18 = vector.shape_cast %17 : vector<1x8x8x128xbf16> to vector<8x8x128xbf16>
    %19 = vector.shape_cast %18 : vector<8x8x128xbf16> to vector<64x128xbf16>
    %c2 = arith.constant 2 : index
    %c0_11 = arith.constant 0 : index
    %c0_12 = arith.constant 0 : index
    %20 = vector.load %arg2[%c2, %c0_11, %c0_12] : memref<9x128x256xbf16, #tpu.memory_space<vmem>>, vector<1x128x256xbf16>
    %21 = vector.shape_cast %20 : vector<1x128x256xbf16> to vector<128x256xbf16>
    %cst_13 = arith.constant dense<0.000000e+00> : vector<64x256xf32>
    %22 = tpu.matmul %19, %21, %cst_13 {dimension_numbers = #tpu.dot_dimension_numbers<[1], [0], [0], [1], [0, 0, 1, 1], [], []>} : vector<64x128xbf16>, vector<128x256xbf16>, vector<64x256xf32> -> vector<64x256xf32>
    %23 = arith.addf %16, %22 : vector<64x256xf32>
    %24 = vector.extract_strided_slice %1 {offsets = [2, 0, 0, 0], sizes = [1, 8, 8, 128], strides = [1, 1, 1, 1]} : vector<4x9x9x128xbf16> to vector<1x8x8x128xbf16>
    %25 = vector.shape_cast %24 : vector<1x8x8x128xbf16> to vector<8x8x128xbf16>
    %26 = vector.shape_cast %25 : vector<8x8x128xbf16> to vector<64x128xbf16>
    %c3 = arith.constant 3 : index
    %c0_14 = arith.constant 0 : index
    %c0_15 = arith.constant 0 : index
    %27 = vector.load %arg2[%c3, %c0_14, %c0_15] : memref<9x128x256xbf16, #tpu.memory_space<vmem>>, vector<1x128x256xbf16>
    %28 = vector.shape_cast %27 : vector<1x128x256xbf16> to vector<128x256xbf16>
    %cst_16 = arith.constant dense<0.000000e+00> : vector<64x256xf32>
    %29 = tpu.matmul %26, %28, %cst_16 {dimension_numbers = #tpu.dot_dimension_numbers<[1], [0], [0], [1], [0, 0, 1, 1], [], []>} : vector<64x128xbf16>, vector<128x256xbf16>, vector<64x256xf32> -> vector<64x256xf32>
    %30 = arith.addf %23, %29 : vector<64x256xf32>
    %31 = vector.extract_strided_slice %1 {offsets = [3, 0, 0, 0], sizes = [1, 8, 8, 128], strides = [1, 1, 1, 1]} : vector<4x9x9x128xbf16> to vector<1x8x8x128xbf16>
    %32 = vector.shape_cast %31 : vector<1x8x8x128xbf16> to vector<8x8x128xbf16>
    %33 = vector.shape_cast %32 : vector<8x8x128xbf16> to vector<64x128xbf16>
    %c4 = arith.constant 4 : index
    %c0_17 = arith.constant 0 : index
    %c0_18 = arith.constant 0 : index
    %34 = vector.load %arg2[%c4, %c0_17, %c0_18] : memref<9x128x256xbf16, #tpu.memory_space<vmem>>, vector<1x128x256xbf16>
    %35 = vector.shape_cast %34 : vector<1x128x256xbf16> to vector<128x256xbf16>
    %cst_19 = arith.constant dense<0.000000e+00> : vector<64x256xf32>
    %36 = tpu.matmul %33, %35, %cst_19 {dimension_numbers = #tpu.dot_dimension_numbers<[1], [0], [0], [1], [0, 0, 1, 1], [], []>} : vector<64x128xbf16>, vector<128x256xbf16>, vector<64x256xf32> -> vector<64x256xf32>
    %37 = arith.addf %30, %36 : vector<64x256xf32>
    %38 = vector.extract_strided_slice %1 {offsets = [2, 0, 1, 0], sizes = [1, 8, 8, 128], strides = [1, 1, 1, 1]} : vector<4x9x9x128xbf16> to vector<1x8x8x128xbf16>
    %39 = vector.shape_cast %38 : vector<1x8x8x128xbf16> to vector<8x8x128xbf16>
    %40 = vector.shape_cast %39 : vector<8x8x128xbf16> to vector<64x128xbf16>
    %c5 = arith.constant 5 : index
    %c0_20 = arith.constant 0 : index
    %c0_21 = arith.constant 0 : index
    %41 = vector.load %arg2[%c5, %c0_20, %c0_21] : memref<9x128x256xbf16, #tpu.memory_space<vmem>>, vector<1x128x256xbf16>
    %42 = vector.shape_cast %41 : vector<1x128x256xbf16> to vector<128x256xbf16>
    %cst_22 = arith.constant dense<0.000000e+00> : vector<64x256xf32>
    %43 = tpu.matmul %40, %42, %cst_22 {dimension_numbers = #tpu.dot_dimension_numbers<[1], [0], [0], [1], [0, 0, 1, 1], [], []>} : vector<64x128xbf16>, vector<128x256xbf16>, vector<64x256xf32> -> vector<64x256xf32>
    %44 = arith.addf %37, %43 : vector<64x256xf32>
    %45 = vector.extract_strided_slice %1 {offsets = [0, 1, 0, 0], sizes = [1, 8, 8, 128], strides = [1, 1, 1, 1]} : vector<4x9x9x128xbf16> to vector<1x8x8x128xbf16>
    %46 = vector.shape_cast %45 : vector<1x8x8x128xbf16> to vector<8x8x128xbf16>
    %47 = vector.shape_cast %46 : vector<8x8x128xbf16> to vector<64x128xbf16>
    %c6 = arith.constant 6 : index
    %c0_23 = arith.constant 0 : index
    %c0_24 = arith.constant 0 : index
    %48 = vector.load %arg2[%c6, %c0_23, %c0_24] : memref<9x128x256xbf16, #tpu.memory_space<vmem>>, vector<1x128x256xbf16>
    %49 = vector.shape_cast %48 : vector<1x128x256xbf16> to vector<128x256xbf16>
    %cst_25 = arith.constant dense<0.000000e+00> : vector<64x256xf32>
    %50 = tpu.matmul %47, %49, %cst_25 {dimension_numbers = #tpu.dot_dimension_numbers<[1], [0], [0], [1], [0, 0, 1, 1], [], []>} : vector<64x128xbf16>, vector<128x256xbf16>, vector<64x256xf32> -> vector<64x256xf32>
    %51 = arith.addf %44, %50 : vector<64x256xf32>
    %52 = vector.extract_strided_slice %1 {offsets = [1, 1, 0, 0], sizes = [1, 8, 8, 128], strides = [1, 1, 1, 1]} : vector<4x9x9x128xbf16> to vector<1x8x8x128xbf16>
    %53 = vector.shape_cast %52 : vector<1x8x8x128xbf16> to vector<8x8x128xbf16>
    %54 = vector.shape_cast %53 : vector<8x8x128xbf16> to vector<64x128xbf16>
    %c7 = arith.constant 7 : index
    %c0_26 = arith.constant 0 : index
    %c0_27 = arith.constant 0 : index
    %55 = vector.load %arg2[%c7, %c0_26, %c0_27] : memref<9x128x256xbf16, #tpu.memory_space<vmem>>, vector<1x128x256xbf16>
    %56 = vector.shape_cast %55 : vector<1x128x256xbf16> to vector<128x256xbf16>
    %cst_28 = arith.constant dense<0.000000e+00> : vector<64x256xf32>
    %57 = tpu.matmul %54, %56, %cst_28 {dimension_numbers = #tpu.dot_dimension_numbers<[1], [0], [0], [1], [0, 0, 1, 1], [], []>} : vector<64x128xbf16>, vector<128x256xbf16>, vector<64x256xf32> -> vector<64x256xf32>
    %58 = arith.addf %51, %57 : vector<64x256xf32>
    %59 = vector.extract_strided_slice %1 {offsets = [0, 1, 1, 0], sizes = [1, 8, 8, 128], strides = [1, 1, 1, 1]} : vector<4x9x9x128xbf16> to vector<1x8x8x128xbf16>
    %60 = vector.shape_cast %59 : vector<1x8x8x128xbf16> to vector<8x8x128xbf16>
    %61 = vector.shape_cast %60 : vector<8x8x128xbf16> to vector<64x128xbf16>
    %c8 = arith.constant 8 : index
    %c0_29 = arith.constant 0 : index
    %c0_30 = arith.constant 0 : index
    %62 = vector.load %arg2[%c8, %c0_29, %c0_30] : memref<9x128x256xbf16, #tpu.memory_space<vmem>>, vector<1x128x256xbf16>
    %63 = vector.shape_cast %62 : vector<1x128x256xbf16> to vector<128x256xbf16>
    %cst_31 = arith.constant dense<0.000000e+00> : vector<64x256xf32>
    %64 = tpu.matmul %61, %63, %cst_31 {dimension_numbers = #tpu.dot_dimension_numbers<[1], [0], [0], [1], [0, 0, 1, 1], [], []>} : vector<64x128xbf16>, vector<128x256xbf16>, vector<64x256xf32> -> vector<64x256xf32>
    %65 = arith.addf %58, %64 : vector<64x256xf32>
    %66 = arith.truncf %65 : vector<64x256xf32> to vector<64x256xbf16>
    %c0_32 = arith.constant 0 : index
    %c0_33 = arith.constant 0 : index
    %c0_34 = arith.constant 0 : index
    %67 = vector.load %arg3[%c0_32, %c0_33, %c0_34] : memref<1x64x256xbf16, #tpu.memory_space<vmem>>, vector<1x64x256xbf16>
    %68 = vector.shape_cast %67 : vector<1x64x256xbf16> to vector<64x256xbf16>
    %69 = vector.shape_cast %66 : vector<64x256xbf16> to vector<1x64x256xbf16>
    tpu.vector_store %arg3[%c0_32, %c0_33, %c0_34], %69 {strides = array<i32>} : memref<1x64x256xbf16, #tpu.memory_space<vmem>>, vector<1x64x256xbf16>,
    %cst_35 = arith.constant dense<0.000000e+00> : vector<256xf32>
    %70 = vector.multi_reduction <add>, %65, %cst_35 [0] : vector<64x256xf32> to vector<256xf32>
    %71 = vector.shape_cast %70 : vector<256xf32> to vector<1x256xf32>
    %72 = arith.mulf %65, %65 : vector<64x256xf32>
    %cst_36 = arith.constant dense<0.000000e+00> : vector<256xf32>
    %73 = vector.multi_reduction <add>, %72, %cst_36 [0] : vector<64x256xf32> to vector<256xf32>
    %74 = vector.shape_cast %73 : vector<256xf32> to vector<1x256xf32>
    %75 = vector.shape_cast %71 : vector<1x256xf32> to vector<1x256xf32>
    %76 = vector.broadcast %75 : vector<1x256xf32> to vector<8x256xf32>
    %c0_37 = arith.constant 0 : index
    %c0_38 = arith.constant 0 : index
    %c0_39 = arith.constant 0 : index
    %77 = vector.load %arg4[%c0_37, %c0_38, %c0_39] : memref<1x8x256xf32, #tpu.memory_space<vmem>>, vector<1x8x256xf32>
    %78 = vector.shape_cast %77 : vector<1x8x256xf32> to vector<8x256xf32>
    %79 = vector.shape_cast %76 : vector<8x256xf32> to vector<1x8x256xf32>
    tpu.vector_store %arg4[%c0_37, %c0_38, %c0_39], %79 {strides = array<i32>} : memref<1x8x256xf32, #tpu.memory_space<vmem>>, vector<1x8x256xf32>,
    %80 = vector.shape_cast %74 : vector<1x256xf32> to vector<1x256xf32>
    %81 = vector.broadcast %80 : vector<1x256xf32> to vector<8x256xf32>
    %c0_40 = arith.constant 0 : index
    %c0_41 = arith.constant 0 : index
    %c0_42 = arith.constant 0 : index
    %82 = vector.load %arg5[%c0_40, %c0_41, %c0_42] : memref<1x8x256xf32, #tpu.memory_space<vmem>>, vector<1x8x256xf32>
    %83 = vector.shape_cast %82 : vector<1x8x256xf32> to vector<8x256xf32>
    %84 = vector.shape_cast %81 : vector<8x256xf32> to vector<1x8x256xf32>
    tpu.vector_store %arg5[%c0_40, %c0_41, %c0_42], %84 {strides = array<i32>} : memref<1x8x256xf32, #tpu.memory_space<vmem>>, vector<1x8x256xf32>,
    return
  }
  func.func @transform_0(%arg0: i32) -> (i32, i32, i32, i32, i32) {
    %c0_i32 = arith.constant 0 : i32
    %c0_i32_0 = arith.constant 0 : i32
    %c0_i32_1 = arith.constant 0 : i32
    %c0_i32_2 = arith.constant 0 : i32
    %c0_i32_3 = arith.constant 0 : i32
    return %arg0, %c0_i32, %c0_i32_0, %c0_i32_1, %c0_i32_2 : i32, i32, i32, i32, i32
  }
  func.func @transform_1(%arg0: i32) -> (i32, i32, i32) {
    %c0_i32 = arith.constant 0 : i32
    %c0_i32_0 = arith.constant 0 : i32
    %c0_i32_1 = arith.constant 0 : i32
    %c0_i32_2 = arith.constant 0 : i32
    return %c0_i32, %c0_i32_0, %c0_i32_1 : i32, i32, i32
  }
  func.func @transform_2(%arg0: i32) -> (i32, i32, i32) {
    %c0_i32 = arith.constant 0 : i32
    %c0_i32_0 = arith.constant 0 : i32
    %c0_i32_1 = arith.constant 0 : i32
    return %arg0, %c0_i32, %c0_i32_0 : i32, i32, i32
  }
  func.func @transform_3(%arg0: i32) -> (i32, i32, i32) {
    %c0_i32 = arith.constant 0 : i32
    %c0_i32_0 = arith.constant 0 : i32
    %c0_i32_1 = arith.constant 0 : i32
    return %arg0, %c0_i32, %c0_i32_0 : i32, i32, i32
  }
  func.func @transform_4(%arg0: i32) -> (i32, i32, i32) {
    %c0_i32 = arith.constant 0 : i32
    %c0_i32_0 = arith.constant 0 : i32
    %c0_i32_1 = arith.constant 0 : i32
    return %arg0, %c0_i32, %c0_i32_0 : i32, i32, i32
  }
}

module attributes {stable_mosaic.version = 11 : i64} {
  func.func @_bn_relu_pad_kernel(%arg0: i32, %arg1: memref<1x64x128xbf16, #tpu.memory_space<vmem>>, %arg2: memref<1x128xf32, #tpu.memory_space<vmem>>, %arg3: memref<1x128xf32, #tpu.memory_space<vmem>>, %arg4: memref<1x10x10x128xbf16, #tpu.memory_space<vmem>>) attributes {dimension_semantics = [#tpu.dimension_semantics<parallel>], iteration_bounds = array<i64: 2>, scalar_prefetch = 0 : i64, scratch_operands = 0 : i64, tpu.core_type = #tpu.core_type<tc>, window_params = [{transform_indices = @transform_0, window_bounds = array<i64: 1, 64, 128>}, {pipeline_mode = #tpu.pipeline_mode<synchronous>, transform_indices = @transform_1, window_bounds = array<i64: 1, 128>}, {pipeline_mode = #tpu.pipeline_mode<synchronous>, transform_indices = @transform_2, window_bounds = array<i64: 1, 128>}, {transform_indices = @transform_3, window_bounds = array<i64: 1, 10, 10, 128>}]} {
    %c0 = arith.constant 0 : index
    %c0_0 = arith.constant 0 : index
    %c0_1 = arith.constant 0 : index
    %0 = vector.load %arg1[%c0, %c0_0, %c0_1] : memref<1x64x128xbf16, #tpu.memory_space<vmem>>, vector<1x64x128xbf16>
    %1 = vector.shape_cast %0 : vector<1x64x128xbf16> to vector<64x128xbf16>
    %2 = arith.extf %1 : vector<64x128xbf16> to vector<64x128xf32>
    %c0_2 = arith.constant 0 : index
    %c0_3 = arith.constant 0 : index
    %3 = vector.load %arg2[%c0_2, %c0_3] : memref<1x128xf32, #tpu.memory_space<vmem>>, vector<1x128xf32>
    %4 = vector.broadcast %3 : vector<1x128xf32> to vector<64x128xf32>
    %5 = arith.mulf %2, %4 : vector<64x128xf32>
    %c0_4 = arith.constant 0 : index
    %c0_5 = arith.constant 0 : index
    %6 = vector.load %arg3[%c0_4, %c0_5] : memref<1x128xf32, #tpu.memory_space<vmem>>, vector<1x128xf32>
    %7 = vector.broadcast %6 : vector<1x128xf32> to vector<64x128xf32>
    %8 = arith.addf %5, %7 : vector<64x128xf32>
    %cst = arith.constant 0.000000e+00 : f32
    %9 = vector.broadcast %cst : f32 to vector<64x128xf32>
    %10 = arith.maximumf %8, %9 : vector<64x128xf32>
    %11 = arith.truncf %10 : vector<64x128xf32> to vector<64x128xbf16>
    %cst_6 = arith.constant 0.000000e+00 : bf16
    %12 = vector.broadcast %cst_6 : bf16 to vector<1x10x10x128xbf16>
    %c0_7 = arith.constant 0 : index
    %c0_8 = arith.constant 0 : index
    %c0_9 = arith.constant 0 : index
    %c0_10 = arith.constant 0 : index
    %13 = vector.load %arg4[%c0_7, %c0_8, %c0_9, %c0_10] : memref<1x10x10x128xbf16, #tpu.memory_space<vmem>>, vector<1x10x10x128xbf16>
    tpu.vector_store %arg4[%c0_7, %c0_8, %c0_9, %c0_10], %12 {strides = array<i32>} : memref<1x10x10x128xbf16, #tpu.memory_space<vmem>>, vector<1x10x10x128xbf16>,
    %14 = vector.shape_cast %11 : vector<64x128xbf16> to vector<8x8x128xbf16>
    %c0_11 = arith.constant 0 : index
    %c1 = arith.constant 1 : index
    %c1_12 = arith.constant 1 : index
    %c0_13 = arith.constant 0 : index
    %15 = vector.load %arg4[%c0_11, %c1, %c1_12, %c0_13] : memref<1x10x10x128xbf16, #tpu.memory_space<vmem>>, vector<1x8x8x128xbf16>
    %16 = vector.shape_cast %15 : vector<1x8x8x128xbf16> to vector<8x8x128xbf16>
    %17 = vector.shape_cast %14 : vector<8x8x128xbf16> to vector<1x8x8x128xbf16>
    tpu.vector_store %arg4[%c0_11, %c1, %c1_12, %c0_13], %17 {strides = array<i32>} : memref<1x10x10x128xbf16, #tpu.memory_space<vmem>>, vector<1x8x8x128xbf16>,
    return
  }
  func.func @transform_0(%arg0: i32) -> (i32, i32, i32) {
    %c0_i32 = arith.constant 0 : i32
    %c0_i32_0 = arith.constant 0 : i32
    %c0_i32_1 = arith.constant 0 : i32
    return %arg0, %c0_i32, %c0_i32_0 : i32, i32, i32
  }
  func.func @transform_1(%arg0: i32) -> (i32, i32) {
    %c0_i32 = arith.constant 0 : i32
    %c0_i32_0 = arith.constant 0 : i32
    %c0_i32_1 = arith.constant 0 : i32
    return %c0_i32, %c0_i32_0 : i32, i32
  }
  func.func @transform_2(%arg0: i32) -> (i32, i32) {
    %c0_i32 = arith.constant 0 : i32
    %c0_i32_0 = arith.constant 0 : i32
    %c0_i32_1 = arith.constant 0 : i32
    return %c0_i32, %c0_i32_0 : i32, i32
  }
  func.func @transform_3(%arg0: i32) -> (i32, i32, i32, i32) {
    %c0_i32 = arith.constant 0 : i32
    %c0_i32_0 = arith.constant 0 : i32
    %c0_i32_1 = arith.constant 0 : i32
    %c0_i32_2 = arith.constant 0 : i32
    return %arg0, %c0_i32, %c0_i32_0, %c0_i32_1 : i32, i32, i32, i32
  }
}

module attributes {stable_mosaic.version = 11 : i64} {
  func.func @_conv3x3_kernel(%arg0: i32, %arg1: memref<1x10x10x128xbf16, #tpu.memory_space<vmem>>, %arg2: memref<9x128x128xbf16, #tpu.memory_space<vmem>>, %arg3: memref<1x64x128xbf16, #tpu.memory_space<vmem>>, %arg4: memref<1x8x128xf32, #tpu.memory_space<vmem>>, %arg5: memref<1x8x128xf32, #tpu.memory_space<vmem>>) attributes {dimension_semantics = [#tpu.dimension_semantics<parallel>], iteration_bounds = array<i64: 2>, scalar_prefetch = 0 : i64, scratch_operands = 0 : i64, tpu.core_type = #tpu.core_type<tc>, window_params = [{transform_indices = @transform_0, window_bounds = array<i64: 1, 10, 10, 128>}, {pipeline_mode = #tpu.pipeline_mode<synchronous>, transform_indices = @transform_1, window_bounds = array<i64: 9, 128, 128>}, {transform_indices = @transform_2, window_bounds = array<i64: 1, 64, 128>}, {transform_indices = @transform_3, window_bounds = array<i64: 1, 8, 128>}, {transform_indices = @transform_4, window_bounds = array<i64: 1, 8, 128>}]} {
    %c0 = arith.constant 0 : index
    %c0_0 = arith.constant 0 : index
    %c0_1 = arith.constant 0 : index
    %c0_2 = arith.constant 0 : index
    %0 = vector.load %arg1[%c0, %c0_0, %c0_1, %c0_2] : memref<1x10x10x128xbf16, #tpu.memory_space<vmem>>, vector<1x10x10x128xbf16>
    %1 = vector.shape_cast %0 : vector<1x10x10x128xbf16> to vector<10x10x128xbf16>
    %cst = arith.constant 0.000000e+00 : f32
    %2 = vector.broadcast %cst : f32 to vector<64x128xf32>
    %3 = vector.extract_strided_slice %1 {offsets = [0, 0, 0], sizes = [8, 8, 128], strides = [1, 1, 1]} : vector<10x10x128xbf16> to vector<8x8x128xbf16>
    %4 = vector.shape_cast %3 : vector<8x8x128xbf16> to vector<64x128xbf16>
    %c0_3 = arith.constant 0 : index
    %c0_4 = arith.constant 0 : index
    %c0_5 = arith.constant 0 : index
    %5 = vector.load %arg2[%c0_3, %c0_4, %c0_5] : memref<9x128x128xbf16, #tpu.memory_space<vmem>>, vector<1x128x128xbf16>
    %6 = vector.shape_cast %5 : vector<1x128x128xbf16> to vector<128x128xbf16>
    %cst_6 = arith.constant dense<0.000000e+00> : vector<64x128xf32>
    %7 = tpu.matmul %4, %6, %cst_6 {dimension_numbers = #tpu.dot_dimension_numbers<[1], [0], [0], [1], [0, 0, 1, 1], [], []>} : vector<64x128xbf16>, vector<128x128xbf16>, vector<64x128xf32> -> vector<64x128xf32>
    %8 = arith.addf %2, %7 : vector<64x128xf32>
    %9 = vector.extract_strided_slice %1 {offsets = [0, 1, 0], sizes = [8, 8, 128], strides = [1, 1, 1]} : vector<10x10x128xbf16> to vector<8x8x128xbf16>
    %10 = vector.shape_cast %9 : vector<8x8x128xbf16> to vector<64x128xbf16>
    %c1 = arith.constant 1 : index
    %c0_7 = arith.constant 0 : index
    %c0_8 = arith.constant 0 : index
    %11 = vector.load %arg2[%c1, %c0_7, %c0_8] : memref<9x128x128xbf16, #tpu.memory_space<vmem>>, vector<1x128x128xbf16>
    %12 = vector.shape_cast %11 : vector<1x128x128xbf16> to vector<128x128xbf16>
    %cst_9 = arith.constant dense<0.000000e+00> : vector<64x128xf32>
    %13 = tpu.matmul %10, %12, %cst_9 {dimension_numbers = #tpu.dot_dimension_numbers<[1], [0], [0], [1], [0, 0, 1, 1], [], []>} : vector<64x128xbf16>, vector<128x128xbf16>, vector<64x128xf32> -> vector<64x128xf32>
    %14 = arith.addf %8, %13 : vector<64x128xf32>
    %15 = vector.extract_strided_slice %1 {offsets = [0, 2, 0], sizes = [8, 8, 128], strides = [1, 1, 1]} : vector<10x10x128xbf16> to vector<8x8x128xbf16>
    %16 = vector.shape_cast %15 : vector<8x8x128xbf16> to vector<64x128xbf16>
    %c2 = arith.constant 2 : index
    %c0_10 = arith.constant 0 : index
    %c0_11 = arith.constant 0 : index
    %17 = vector.load %arg2[%c2, %c0_10, %c0_11] : memref<9x128x128xbf16, #tpu.memory_space<vmem>>, vector<1x128x128xbf16>
    %18 = vector.shape_cast %17 : vector<1x128x128xbf16> to vector<128x128xbf16>
    %cst_12 = arith.constant dense<0.000000e+00> : vector<64x128xf32>
    %19 = tpu.matmul %16, %18, %cst_12 {dimension_numbers = #tpu.dot_dimension_numbers<[1], [0], [0], [1], [0, 0, 1, 1], [], []>} : vector<64x128xbf16>, vector<128x128xbf16>, vector<64x128xf32> -> vector<64x128xf32>
    %20 = arith.addf %14, %19 : vector<64x128xf32>
    %21 = vector.extract_strided_slice %1 {offsets = [1, 0, 0], sizes = [8, 8, 128], strides = [1, 1, 1]} : vector<10x10x128xbf16> to vector<8x8x128xbf16>
    %22 = vector.shape_cast %21 : vector<8x8x128xbf16> to vector<64x128xbf16>
    %c3 = arith.constant 3 : index
    %c0_13 = arith.constant 0 : index
    %c0_14 = arith.constant 0 : index
    %23 = vector.load %arg2[%c3, %c0_13, %c0_14] : memref<9x128x128xbf16, #tpu.memory_space<vmem>>, vector<1x128x128xbf16>
    %24 = vector.shape_cast %23 : vector<1x128x128xbf16> to vector<128x128xbf16>
    %cst_15 = arith.constant dense<0.000000e+00> : vector<64x128xf32>
    %25 = tpu.matmul %22, %24, %cst_15 {dimension_numbers = #tpu.dot_dimension_numbers<[1], [0], [0], [1], [0, 0, 1, 1], [], []>} : vector<64x128xbf16>, vector<128x128xbf16>, vector<64x128xf32> -> vector<64x128xf32>
    %26 = arith.addf %20, %25 : vector<64x128xf32>
    %27 = vector.extract_strided_slice %1 {offsets = [1, 1, 0], sizes = [8, 8, 128], strides = [1, 1, 1]} : vector<10x10x128xbf16> to vector<8x8x128xbf16>
    %28 = vector.shape_cast %27 : vector<8x8x128xbf16> to vector<64x128xbf16>
    %c4 = arith.constant 4 : index
    %c0_16 = arith.constant 0 : index
    %c0_17 = arith.constant 0 : index
    %29 = vector.load %arg2[%c4, %c0_16, %c0_17] : memref<9x128x128xbf16, #tpu.memory_space<vmem>>, vector<1x128x128xbf16>
    %30 = vector.shape_cast %29 : vector<1x128x128xbf16> to vector<128x128xbf16>
    %cst_18 = arith.constant dense<0.000000e+00> : vector<64x128xf32>
    %31 = tpu.matmul %28, %30, %cst_18 {dimension_numbers = #tpu.dot_dimension_numbers<[1], [0], [0], [1], [0, 0, 1, 1], [], []>} : vector<64x128xbf16>, vector<128x128xbf16>, vector<64x128xf32> -> vector<64x128xf32>
    %32 = arith.addf %26, %31 : vector<64x128xf32>
    %33 = vector.extract_strided_slice %1 {offsets = [1, 2, 0], sizes = [8, 8, 128], strides = [1, 1, 1]} : vector<10x10x128xbf16> to vector<8x8x128xbf16>
    %34 = vector.shape_cast %33 : vector<8x8x128xbf16> to vector<64x128xbf16>
    %c5 = arith.constant 5 : index
    %c0_19 = arith.constant 0 : index
    %c0_20 = arith.constant 0 : index
    %35 = vector.load %arg2[%c5, %c0_19, %c0_20] : memref<9x128x128xbf16, #tpu.memory_space<vmem>>, vector<1x128x128xbf16>
    %36 = vector.shape_cast %35 : vector<1x128x128xbf16> to vector<128x128xbf16>
    %cst_21 = arith.constant dense<0.000000e+00> : vector<64x128xf32>
    %37 = tpu.matmul %34, %36, %cst_21 {dimension_numbers = #tpu.dot_dimension_numbers<[1], [0], [0], [1], [0, 0, 1, 1], [], []>} : vector<64x128xbf16>, vector<128x128xbf16>, vector<64x128xf32> -> vector<64x128xf32>
    %38 = arith.addf %32, %37 : vector<64x128xf32>
    %39 = vector.extract_strided_slice %1 {offsets = [2, 0, 0], sizes = [8, 8, 128], strides = [1, 1, 1]} : vector<10x10x128xbf16> to vector<8x8x128xbf16>
    %40 = vector.shape_cast %39 : vector<8x8x128xbf16> to vector<64x128xbf16>
    %c6 = arith.constant 6 : index
    %c0_22 = arith.constant 0 : index
    %c0_23 = arith.constant 0 : index
    %41 = vector.load %arg2[%c6, %c0_22, %c0_23] : memref<9x128x128xbf16, #tpu.memory_space<vmem>>, vector<1x128x128xbf16>
    %42 = vector.shape_cast %41 : vector<1x128x128xbf16> to vector<128x128xbf16>
    %cst_24 = arith.constant dense<0.000000e+00> : vector<64x128xf32>
    %43 = tpu.matmul %40, %42, %cst_24 {dimension_numbers = #tpu.dot_dimension_numbers<[1], [0], [0], [1], [0, 0, 1, 1], [], []>} : vector<64x128xbf16>, vector<128x128xbf16>, vector<64x128xf32> -> vector<64x128xf32>
    %44 = arith.addf %38, %43 : vector<64x128xf32>
    %45 = vector.extract_strided_slice %1 {offsets = [2, 1, 0], sizes = [8, 8, 128], strides = [1, 1, 1]} : vector<10x10x128xbf16> to vector<8x8x128xbf16>
    %46 = vector.shape_cast %45 : vector<8x8x128xbf16> to vector<64x128xbf16>
    %c7 = arith.constant 7 : index
    %c0_25 = arith.constant 0 : index
    %c0_26 = arith.constant 0 : index
    %47 = vector.load %arg2[%c7, %c0_25, %c0_26] : memref<9x128x128xbf16, #tpu.memory_space<vmem>>, vector<1x128x128xbf16>
    %48 = vector.shape_cast %47 : vector<1x128x128xbf16> to vector<128x128xbf16>
    %cst_27 = arith.constant dense<0.000000e+00> : vector<64x128xf32>
    %49 = tpu.matmul %46, %48, %cst_27 {dimension_numbers = #tpu.dot_dimension_numbers<[1], [0], [0], [1], [0, 0, 1, 1], [], []>} : vector<64x128xbf16>, vector<128x128xbf16>, vector<64x128xf32> -> vector<64x128xf32>
    %50 = arith.addf %44, %49 : vector<64x128xf32>
    %51 = vector.extract_strided_slice %1 {offsets = [2, 2, 0], sizes = [8, 8, 128], strides = [1, 1, 1]} : vector<10x10x128xbf16> to vector<8x8x128xbf16>
    %52 = vector.shape_cast %51 : vector<8x8x128xbf16> to vector<64x128xbf16>
    %c8 = arith.constant 8 : index
    %c0_28 = arith.constant 0 : index
    %c0_29 = arith.constant 0 : index
    %53 = vector.load %arg2[%c8, %c0_28, %c0_29] : memref<9x128x128xbf16, #tpu.memory_space<vmem>>, vector<1x128x128xbf16>
    %54 = vector.shape_cast %53 : vector<1x128x128xbf16> to vector<128x128xbf16>
    %cst_30 = arith.constant dense<0.000000e+00> : vector<64x128xf32>
    %55 = tpu.matmul %52, %54, %cst_30 {dimension_numbers = #tpu.dot_dimension_numbers<[1], [0], [0], [1], [0, 0, 1, 1], [], []>} : vector<64x128xbf16>, vector<128x128xbf16>, vector<64x128xf32> -> vector<64x128xf32>
    %56 = arith.addf %50, %55 : vector<64x128xf32>
    %57 = arith.truncf %56 : vector<64x128xf32> to vector<64x128xbf16>
    %c0_31 = arith.constant 0 : index
    %c0_32 = arith.constant 0 : index
    %c0_33 = arith.constant 0 : index
    %58 = vector.load %arg3[%c0_31, %c0_32, %c0_33] : memref<1x64x128xbf16, #tpu.memory_space<vmem>>, vector<1x64x128xbf16>
    %59 = vector.shape_cast %58 : vector<1x64x128xbf16> to vector<64x128xbf16>
    %60 = vector.shape_cast %57 : vector<64x128xbf16> to vector<1x64x128xbf16>
    tpu.vector_store %arg3[%c0_31, %c0_32, %c0_33], %60 {strides = array<i32>} : memref<1x64x128xbf16, #tpu.memory_space<vmem>>, vector<1x64x128xbf16>,
    %cst_34 = arith.constant dense<0.000000e+00> : vector<128xf32>
    %61 = vector.multi_reduction <add>, %56, %cst_34 [0] : vector<64x128xf32> to vector<128xf32>
    %62 = vector.shape_cast %61 : vector<128xf32> to vector<1x128xf32>
    %63 = arith.mulf %56, %56 : vector<64x128xf32>
    %cst_35 = arith.constant dense<0.000000e+00> : vector<128xf32>
    %64 = vector.multi_reduction <add>, %63, %cst_35 [0] : vector<64x128xf32> to vector<128xf32>
    %65 = vector.shape_cast %64 : vector<128xf32> to vector<1x128xf32>
    %66 = vector.shape_cast %62 : vector<1x128xf32> to vector<1x128xf32>
    %67 = vector.broadcast %66 : vector<1x128xf32> to vector<8x128xf32>
    %c0_36 = arith.constant 0 : index
    %c0_37 = arith.constant 0 : index
    %c0_38 = arith.constant 0 : index
    %68 = vector.load %arg4[%c0_36, %c0_37, %c0_38] : memref<1x8x128xf32, #tpu.memory_space<vmem>>, vector<1x8x128xf32>
    %69 = vector.shape_cast %68 : vector<1x8x128xf32> to vector<8x128xf32>
    %70 = vector.shape_cast %67 : vector<8x128xf32> to vector<1x8x128xf32>
    tpu.vector_store %arg4[%c0_36, %c0_37, %c0_38], %70 {strides = array<i32>} : memref<1x8x128xf32, #tpu.memory_space<vmem>>, vector<1x8x128xf32>,
    %71 = vector.shape_cast %65 : vector<1x128xf32> to vector<1x128xf32>
    %72 = vector.broadcast %71 : vector<1x128xf32> to vector<8x128xf32>
    %c0_39 = arith.constant 0 : index
    %c0_40 = arith.constant 0 : index
    %c0_41 = arith.constant 0 : index
    %73 = vector.load %arg5[%c0_39, %c0_40, %c0_41] : memref<1x8x128xf32, #tpu.memory_space<vmem>>, vector<1x8x128xf32>
    %74 = vector.shape_cast %73 : vector<1x8x128xf32> to vector<8x128xf32>
    %75 = vector.shape_cast %72 : vector<8x128xf32> to vector<1x8x128xf32>
    tpu.vector_store %arg5[%c0_39, %c0_40, %c0_41], %75 {strides = array<i32>} : memref<1x8x128xf32, #tpu.memory_space<vmem>>, vector<1x8x128xf32>,
    return
  }
  func.func @transform_0(%arg0: i32) -> (i32, i32, i32, i32) {
    %c0_i32 = arith.constant 0 : i32
    %c0_i32_0 = arith.constant 0 : i32
    %c0_i32_1 = arith.constant 0 : i32
    %c0_i32_2 = arith.constant 0 : i32
    return %arg0, %c0_i32, %c0_i32_0, %c0_i32_1 : i32, i32, i32, i32
  }
  func.func @transform_1(%arg0: i32) -> (i32, i32, i32) {
    %c0_i32 = arith.constant 0 : i32
    %c0_i32_0 = arith.constant 0 : i32
    %c0_i32_1 = arith.constant 0 : i32
    %c0_i32_2 = arith.constant 0 : i32
    return %c0_i32, %c0_i32_0, %c0_i32_1 : i32, i32, i32
  }
  func.func @transform_2(%arg0: i32) -> (i32, i32, i32) {
    %c0_i32 = arith.constant 0 : i32
    %c0_i32_0 = arith.constant 0 : i32
    %c0_i32_1 = arith.constant 0 : i32
    return %arg0, %c0_i32, %c0_i32_0 : i32, i32, i32
  }
  func.func @transform_3(%arg0: i32) -> (i32, i32, i32) {
    %c0_i32 = arith.constant 0 : i32
    %c0_i32_0 = arith.constant 0 : i32
    %c0_i32_1 = arith.constant 0 : i32
    return %arg0, %c0_i32, %c0_i32_0 : i32, i32, i32
  }
  func.func @transform_4(%arg0: i32) -> (i32, i32, i32) {
    %c0_i32 = arith.constant 0 : i32
    %c0_i32_0 = arith.constant 0 : i32
    %c0_i32_1 = arith.constant 0 : i32
    return %arg0, %c0_i32, %c0_i32_0 : i32, i32, i32
  }
}

module attributes {stable_mosaic.version = 11 : i64} {
  func.func @_residual_out_kernel(%arg0: i32, %arg1: memref<1x64x128xbf16, #tpu.memory_space<vmem>>, %arg2: memref<1x64x128xbf16, #tpu.memory_space<vmem>>, %arg3: memref<1x128xf32, #tpu.memory_space<vmem>>, %arg4: memref<1x128xf32, #tpu.memory_space<vmem>>, %arg5: memref<1x128xf32, #tpu.memory_space<vmem>>, %arg6: memref<1x128xf32, #tpu.memory_space<vmem>>, %arg7: memref<1x64x128xf32, #tpu.memory_space<vmem>>) attributes {dimension_semantics = [#tpu.dimension_semantics<parallel>], iteration_bounds = array<i64: 2>, scalar_prefetch = 0 : i64, scratch_operands = 0 : i64, tpu.core_type = #tpu.core_type<tc>, window_params = [{transform_indices = @transform_0, window_bounds = array<i64: 1, 64, 128>}, {transform_indices = @transform_1, window_bounds = array<i64: 1, 64, 128>}, {pipeline_mode = #tpu.pipeline_mode<synchronous>, transform_indices = @transform_2, window_bounds = array<i64: 1, 128>}, {pipeline_mode = #tpu.pipeline_mode<synchronous>, transform_indices = @transform_3, window_bounds = array<i64: 1, 128>}, {pipeline_mode = #tpu.pipeline_mode<synchronous>, transform_indices = @transform_4, window_bounds = array<i64: 1, 128>}, {pipeline_mode = #tpu.pipeline_mode<synchronous>, transform_indices = @transform_5, window_bounds = array<i64: 1, 128>}, {transform_indices = @transform_6, window_bounds = array<i64: 1, 64, 128>}]} {
    %c0 = arith.constant 0 : index
    %c0_0 = arith.constant 0 : index
    %c0_1 = arith.constant 0 : index
    %0 = vector.load %arg1[%c0, %c0_0, %c0_1] : memref<1x64x128xbf16, #tpu.memory_space<vmem>>, vector<1x64x128xbf16>
    %1 = vector.shape_cast %0 : vector<1x64x128xbf16> to vector<64x128xbf16>
    %2 = arith.extf %1 : vector<64x128xbf16> to vector<64x128xf32>
    %c0_2 = arith.constant 0 : index
    %c0_3 = arith.constant 0 : index
    %3 = vector.load %arg3[%c0_2, %c0_3] : memref<1x128xf32, #tpu.memory_space<vmem>>, vector<1x128xf32>
    %4 = vector.broadcast %3 : vector<1x128xf32> to vector<64x128xf32>
    %5 = arith.mulf %2, %4 : vector<64x128xf32>
    %c0_4 = arith.constant 0 : index
    %c0_5 = arith.constant 0 : index
    %6 = vector.load %arg4[%c0_4, %c0_5] : memref<1x128xf32, #tpu.memory_space<vmem>>, vector<1x128xf32>
    %7 = vector.broadcast %6 : vector<1x128xf32> to vector<64x128xf32>
    %8 = arith.addf %5, %7 : vector<64x128xf32>
    %c0_6 = arith.constant 0 : index
    %c0_7 = arith.constant 0 : index
    %c0_8 = arith.constant 0 : index
    %9 = vector.load %arg2[%c0_6, %c0_7, %c0_8] : memref<1x64x128xbf16, #tpu.memory_space<vmem>>, vector<1x64x128xbf16>
    %10 = vector.shape_cast %9 : vector<1x64x128xbf16> to vector<64x128xbf16>
    %11 = arith.extf %10 : vector<64x128xbf16> to vector<64x128xf32>
    %c0_9 = arith.constant 0 : index
    %c0_10 = arith.constant 0 : index
    %12 = vector.load %arg5[%c0_9, %c0_10] : memref<1x128xf32, #tpu.memory_space<vmem>>, vector<1x128xf32>
    %13 = vector.broadcast %12 : vector<1x128xf32> to vector<64x128xf32>
    %14 = arith.mulf %11, %13 : vector<64x128xf32>
    %15 = arith.addf %8, %14 : vector<64x128xf32>
    %c0_11 = arith.constant 0 : index
    %c0_12 = arith.constant 0 : index
    %16 = vector.load %arg6[%c0_11, %c0_12] : memref<1x128xf32, #tpu.memory_space<vmem>>, vector<1x128xf32>
    %17 = vector.broadcast %16 : vector<1x128xf32> to vector<64x128xf32>
    %18 = arith.addf %15, %17 : vector<64x128xf32>
    %cst = arith.constant 0.000000e+00 : f32
    %19 = vector.broadcast %cst : f32 to vector<64x128xf32>
    %20 = arith.maximumf %18, %19 : vector<64x128xf32>
    %c0_13 = arith.constant 0 : index
    %c0_14 = arith.constant 0 : index
    %c0_15 = arith.constant 0 : index
    %21 = vector.load %arg7[%c0_13, %c0_14, %c0_15] : memref<1x64x128xf32, #tpu.memory_space<vmem>>, vector<1x64x128xf32>
    %22 = vector.shape_cast %21 : vector<1x64x128xf32> to vector<64x128xf32>
    %23 = vector.shape_cast %20 : vector<64x128xf32> to vector<1x64x128xf32>
    tpu.vector_store %arg7[%c0_13, %c0_14, %c0_15], %23 {strides = array<i32>} : memref<1x64x128xf32, #tpu.memory_space<vmem>>, vector<1x64x128xf32>,
    return
  }
  func.func @transform_0(%arg0: i32) -> (i32, i32, i32) {
    %c0_i32 = arith.constant 0 : i32
    %c0_i32_0 = arith.constant 0 : i32
    %c0_i32_1 = arith.constant 0 : i32
    return %arg0, %c0_i32, %c0_i32_0 : i32, i32, i32
  }
  func.func @transform_1(%arg0: i32) -> (i32, i32, i32) {
    %c0_i32 = arith.constant 0 : i32
    %c1_i32 = arith.constant 1 : i32
    %c0_i32_0 = arith.constant 0 : i32
    return %arg0, %c0_i32, %c1_i32 : i32, i32, i32
  }
  func.func @transform_2(%arg0: i32) -> (i32, i32) {
    %c0_i32 = arith.constant 0 : i32
    %c0_i32_0 = arith.constant 0 : i32
    %c0_i32_1 = arith.constant 0 : i32
    return %c0_i32, %c0_i32_0 : i32, i32
  }
  func.func @transform_3(%arg0: i32) -> (i32, i32) {
    %c0_i32 = arith.constant 0 : i32
    %c0_i32_0 = arith.constant 0 : i32
    %c0_i32_1 = arith.constant 0 : i32
    return %c0_i32, %c0_i32_0 : i32, i32
  }
  func.func @transform_4(%arg0: i32) -> (i32, i32) {
    %c0_i32 = arith.constant 0 : i32
    %c0_i32_0 = arith.constant 0 : i32
    %c0_i32_1 = arith.constant 0 : i32
    return %c0_i32, %c0_i32_0 : i32, i32
  }
  func.func @transform_5(%arg0: i32) -> (i32, i32) {
    %c0_i32 = arith.constant 0 : i32
    %c0_i32_0 = arith.constant 0 : i32
    %c0_i32_1 = arith.constant 0 : i32
    return %c0_i32, %c0_i32_0 : i32, i32
  }
  func.func @transform_6(%arg0: i32) -> (i32, i32, i32) {
    %c0_i32 = arith.constant 0 : i32
    %c0_i32_0 = arith.constant 0 : i32
    %c0_i32_1 = arith.constant 0 : i32
    return %arg0, %c0_i32, %c0_i32_0 : i32, i32, i32
  }
}

</mosaic_0001>

<llo_original>
// kernel: basic_block_forward.5
$region0: #{basic_block_forward.5}
  #allocation0 [shape = 'u32[]', space=smem, size = 0x4, offset = 0x4, fixed_abs, tag = 'smem constant byte address 0x4 - core index']
  #allocation1 [shape = 'u32[72,128]{1,0:T(1,128)}', space=vmem, size = 0x9000, scoped, tag = 'internal scratch']
  %s0 = inlined_call_operand.vmem [shape: bf16[2,64,256], index: 0, kind: input, shape index: {}]
  %s1 = inlined_call_operand.vmem [shape: f32[1,128], index: 1, kind: input, shape index: {}]
  %s2 = inlined_call_operand.vmem [shape: f32[1,128], index: 2, kind: input, shape index: {}]
  %s3 = inlined_call_operand.vmem [shape: bf16[2,10,10,128], index: 3, kind: output, shape index: {}]
  %s4 = sld [smem:[#allocation0]]
  $region86: #{basic_block_forward.5} parent=0
    _
  %s6 = ssub.s32 1, %s4
  %s7 = scalar_select 0, %s6, %s4
  $region1: #{basic_block_forward.5} parent=0
    #allocation2 [shape = 'u8[32768]{0}', space=vmem, size = 0x8000, scoped, tag = 'input window, operand 0']
    loop: start=0, step=1, limit=4
    $region2: #{basic_block_forward.5} parent=1 // loop_pre_header
      _
    $region3: #{basic_block_forward.5} parent=1 // loop_header
      %s9 = sphi 0, %s13
      %p10 = scmp.ge.s32.totalorder %s9, 4
      %s19 = sphi 0, %s21
      %s22 = sphi 0, %s19
      %s23 = sphi 0, %s22
      %s39 = sphi 0, %s23
      %s43 = sphi 0, %s43
      %s45 = sphi 0, %s43
      %s46 = sphi 0, %s45
      %s60 = sphi 0, %s46
      %s64 = sphi 0, %s64
      %s66 = sphi 0, %s64
      %s67 = sphi 0, %s66
      %s81 = sphi 0, %s67
      %s87 = sphi 0, %s89
      %s90 = sphi 0, %s87
      %s91 = sphi 0, %s90
      %s107 = sphi 0, %s91
    $region4: #{basic_block_forward.5} parent=1 // loop_header_branch
      %12 = sbr.rel (%p10) target = $region8
    $region5: #{basic_block_forward.5} parent=1 // loop_body
      %s14 = ssub.s32 %s9, 1
      %s15 = ssub.s32 %s9, 2
      %s16 = sadd.s32 %s9, 1
      %s17 = ssub.s32 %s9, %s16
      %p18 = scmp.eq.s32.totalorder %s17, 0
      %s20 = sadd.s32 %s19, 1
      %s21 = scalar_select %p18, %s19, %s20
      %p24 = pneg %p18
      %p25 = scmp.eq.s32.totalorder %s9, 1
      %p26 = por %p24, %p25
      %p27 = scmp.ne.s32.totalorder %s19, %s22
      %p28 = scmp.eq.s32.totalorder %s9, 0
      %p29 = por %p27, %p28
      %p30 = scmp.ne.s32.totalorder %s19, %s22
      %p31 = scmp.eq.s32.totalorder %s14, 1
      %p32 = por %p30, %p31
      %p33 = scmp.ne.s32.totalorder %s22, %s23
      %p34 = scmp.eq.s32.totalorder %s14, 0
      %p35 = por %p33, %p34
      %p36 = scmp.ne.s32.totalorder %s22, %s23
      %p37 = scmp.eq.s32.totalorder %s15, 1
      %p38 = por %p36, %p37
      %p40 = scmp.ne.s32.totalorder %s23, %s39
      %p41 = scmp.eq.s32.totalorder %s15, 0
      %p42 = por %p40, %p41
      %s44 = sadd.s32 %s43, 1
      %p47 = scmp.eq.s32.totalorder %s9, 1
      %p48 = scmp.ne.s32.totalorder %s43, %s45
      %p49 = scmp.eq.s32.totalorder %s9, 0
      %p50 = por %p48, %p49
      %p51 = scmp.ne.s32.totalorder %s43, %s45
      %p52 = scmp.eq.s32.totalorder %s14, 1
      %p53 = por %p51, %p52
      %p54 = scmp.ne.s32.totalorder %s45, %s46
      %p55 = scmp.eq.s32.totalorder %s14, 0
      %p56 = por %p54, %p55
      %p57 = scmp.ne.s32.totalorder %s45, %s46
      %p58 = scmp.eq.s32.totalorder %s15, 1
      %p59 = por %p57, %p58
      %p61 = scmp.ne.s32.totalorder %s46, %s60
      %p62 = scmp.eq.s32.totalorder %s15, 0
      %p63 = por %p61, %p62
      %s65 = sadd.s32 %s64, 1
      %p68 = scmp.eq.s32.totalorder %s9, 1
      %p69 = scmp.ne.s32.totalorder %s64, %s66
      %p70 = scmp.eq.s32.totalorder %s9, 0
      %p71 = por %p69, %p70
      %p72 = scmp.ne.s32.totalorder %s64, %s66
      %p73 = scmp.eq.s32.totalorder %s14, 1
      %p74 = por %p72, %p73
      %p75 = scmp.ne.s32.totalorder %s66, %s67
      %p76 = scmp.eq.s32.totalorder %s14, 0
      %p77 = por %p75, %p76
      %p78 = scmp.ne.s32.totalorder %s66, %s67
      %p79 = scmp.eq.s32.totalorder %s15, 1
      %p80 = por %p78, %p79
      %p82 = scmp.ne.s32.totalorder %s67, %s81
      %p83 = scmp.eq.s32.totalorder %s15, 0
      %p84 = por %p82, %p83
      %s85 = ssub.s32 %s9, %s16
      %p86 = scmp.eq.s32.totalorder %s85, 0
      %s88 = sadd.s32 %s87, 1
      %s89 = scalar_select %p86, %s87, %s88
      %p92 = pneg %p86
      %p93 = scmp.eq.s32.totalorder %s9, 1
      %p94 = por %p92, %p93
      %p95 = scmp.ne.s32.totalorder %s87, %s90
      %p96 = scmp.eq.s32.totalorder %s9, 0
      %p97 = por %p95, %p96
      %p98 = scmp.ne.s32.totalorder %s87, %s90
      %p99 = scmp.eq.s32.totalorder %s14, 1
      %p100 = por %p98, %p99
      %p101 = scmp.ne.s32.totalorder %s90, %s91
      %p102 = scmp.eq.s32.totalorder %s14, 0
      %p103 = por %p101, %p102
      %p104 = scmp.ne.s32.totalorder %s90, %s91
      %p105 = scmp.eq.s32.totalorder %s15, 1
      %p106 = por %p104, %p105
      %p108 = scmp.ne.s32.totalorder %s91, %s107
      %p109 = scmp.eq.s32.totalorder %s15, 0
      %p110 = por %p108, %p109
      %p111 = scmp.le.s32.totalorder 1, %s9
      %p112 = scmp.lt.s32.totalorder %s9, 3
      %p113 = pnand %p111, %p112
      %p114 = pneg %p113
      // Predicated region
      $region9: #{basic_block_forward.5} parent=5 // pred_check
        _
      $region10: #{basic_block_forward.5} parent=5 // pred_check_branch
        %116 = sbr.rel (%p113) target = $region12
      $region11: #{basic_block_forward.5} parent=5 // pred_region
        %s117 = ssub.s32 %s9, 1
        // Predicated region
        $region13: #{basic_block_forward.5} parent=11 // pred_check
          %p118 = pneg %p56
        $region14: #{basic_block_forward.5} parent=11 // pred_check_branch
          %120 = sbr.rel (%p118) target = $region16
        $region15: #{basic_block_forward.5} parent=11 // pred_region
          _
        $region16: #{basic_block_forward.5} parent=11 // pred_fallthru
          _
        // Predicated region
        $region17: #{basic_block_forward.5} parent=11 // pred_check
          %p121 = pneg %p77
        $region18: #{basic_block_forward.5} parent=11 // pred_check_branch
          %123 = sbr.rel (%p121) target = $region20
        $region19: #{basic_block_forward.5} parent=11 // pred_region
          _
        $region20: #{basic_block_forward.5} parent=11 // pred_fallthru
          _
      $region12: #{basic_block_forward.5} parent=5 // pred_fallthru
        _
      %p124 = scmp.lt.s32.totalorder %s9, 2
      // Predicated region
      $region21: #{basic_block_forward.5} parent=5 // pred_check
        %p125 = pneg %p124
      $region22: #{basic_block_forward.5} parent=5 // pred_check_branch
        %127 = sbr.rel (%p125) target = $region24
      $region23: #{basic_block_forward.5} parent=5 // pred_region
        // Predicated region
        $region25: #{basic_block_forward.5} parent=23 // pred_check
          %p128 = pneg %p29
        $region26: #{basic_block_forward.5} parent=23 // pred_check_branch
          %130 = sbr.rel (%p128) target = $region28
        $region27: #{basic_block_forward.5} parent=23 // pred_region
          %s131 = sand.u32 %s19, 1
          %s132 = sand.u32 %s19, 1
          %s133 = smul.addr %s132, 32
          %s134 = scalar_lea.vmem [#allocation2], %s133
          %s135 = smul.addr %s9, 16
          %s136 = smul.addr %s135, 4
          %s137 = scalar_lea.vmem %s0, %s136
          // Predicated region
          $region29: #{basic_block_forward.5} parent=27 // pred_check
            _
          $region30: #{basic_block_forward.5} parent=27 // pred_check_branch
            %139 = sbr.rel (0) target = $region32
          $region31: #{basic_block_forward.5} parent=27 // pred_region
            // Predicated region
            $region33: #{basic_block_forward.5} parent=31 // pred_check
              _
            $region34: #{basic_block_forward.5} parent=31 // pred_check_branch
              %141 = sbr.rel target = $region36
            $region35: #{basic_block_forward.5} parent=31 // pred_region
              // Predicated region
              $region48: #{basic_block_forward.5} parent=35 // pred_check
                _
              $region49: #{basic_block_forward.5} parent=35 // pred_check_branch
                %171 = sbr.rel (0) target = $region51
              $region50: #{basic_block_forward.5} parent=35 // pred_region
                loop: start=0, step=1, limit=1
                $region52: #{basic_block_forward.5} parent=50 // loop_pre_header
                  _
                $region53: #{basic_block_forward.5} parent=50 // loop_header
                  %s173 = sphi 0, %s177
                  %p174 = scmp.ge.s32.totalorder %s173, 1
                  %s178 = sphi %s137, %s137
                  %s179 = sphi %s134, %s134
                $region54: #{basic_block_forward.5} parent=50 // loop_header_branch
                  %176 = sbr.rel (%p174) target = $region58
                $region55: #{basic_block_forward.5} parent=50 // loop_body
                  _
                $region56: #{basic_block_forward.5} parent=50 // loop_footer
                  %s177 = sadd.s32 1, %s173
                $region57: #{basic_block_forward.5} parent=50 // loop_footer_branch
                  %172 = sbr.rel target = $region53
                $region58: #{basic_block_forward.5} parent=50 // loop_exit
                  _
                %s181 = ssub.s32 16, 1
                loop: start=0, step=1, limit=1
                $region59: #{basic_block_forward.5} parent=50 // loop_pre_header
                  _
                $region60: #{basic_block_forward.5} parent=50 // loop_header
                  %s183 = sphi 0, %s187
                  %p184 = scmp.ge.s32.totalorder %s183, 1
                  %s188 = sphi %s137, %s137
                  %s189 = sphi %s134, %s134
                $region61: #{basic_block_forward.5} parent=50 // loop_header_branch
                  %186 = sbr.rel (%p184) target = $region65
                $region62: #{basic_block_forward.5} parent=50 // loop_body
                  %v190 = vld [vmem:[%s188] sm:%s181]
                  %191 = vst [vmem:[%s189] sm:%s181] %v190
                  %v192 = vld [vmem:[%s188 + $0x8] sm:%s181]
                  %193 = vst [vmem:[%s189 + $0x4] sm:%s181] %v192
                  %v194 = vld [vmem:[%s188 + $0x10] sm:%s181]
                  %195 = vst [vmem:[%s189 + $0x8] sm:%s181] %v194
                  %v196 = vld [vmem:[%s188 + $0x18] sm:%s181]
                  %197 = vst [vmem:[%s189 + $0xc] sm:%s181] %v196
                  %v198 = vld [vmem:[%s188 + $0x20] sm:%s181]
                  %199 = vst [vmem:[%s189 + $0x10] sm:%s181] %v198
                  %v200 = vld [vmem:[%s188 + $0x28] sm:%s181]
                  %201 = vst [vmem:[%s189 + $0x14] sm:%s181] %v200
                  %v202 = vld [vmem:[%s188 + $0x30] sm:%s181]
                  %203 = vst [vmem:[%s189 + $0x18] sm:%s181] %v202
                  %v204 = vld [vmem:[%s188 + $0x38] sm:%s181]
                  %205 = vst [vmem:[%s189 + $0x1c] sm:%s181] %v204
                $region63: #{basic_block_forward.5} parent=50 // loop_footer
                  %s187 = sadd.s32 1, %s183
                $region64: #{basic_block_forward.5} parent=50 // loop_footer_branch
                  %182 = sbr.rel target = $region60
                $region65: #{basic_block_forward.5} parent=50 // loop_exit
                  _
              $region51: #{basic_block_forward.5} parent=35 // pred_fallthru
                _
            $region36: #{basic_block_forward.5} parent=31 // pred_fallthru
              _
            // Predicated region
            $region37: #{basic_block_forward.5} parent=31 // pred_check
              _
            $region38: #{basic_block_forward.5} parent=31 // pred_check_branch
              %143 = sbr.rel (0) target = $region40
            $region39: #{basic_block_forward.5} parent=31 // pred_region
              %s145 = ssub.s32 16, 1
              loop: start=0, step=1, limit=1
              $region41: #{basic_block_forward.5} parent=39 // loop_pre_header
                _
              $region42: #{basic_block_forward.5} parent=39 // loop_header
                %s147 = sphi 0, %s151
                %p148 = scmp.ge.s32.totalorder %s147, 1
                %s152 = sphi %s137, %s137
                %s153 = sphi %s134, %s134
              $region43: #{basic_block_forward.5} parent=39 // loop_header_branch
                %150 = sbr.rel (%p148) target = $region47
              $region44: #{basic_block_forward.5} parent=39 // loop_body
                %v154 = vld [vmem:[%s152] sm:%s145]
                %155 = vst [vmem:[%s153] sm:%s145] %v154
                %v156 = vld [vmem:[%s152 + $0x8] sm:%s145]
                %157 = vst [vmem:[%s153 + $0x4] sm:%s145] %v156
                %v158 = vld [vmem:[%s152 + $0x10] sm:%s145]
                %159 = vst [vmem:[%s153 + $0x8] sm:%s145] %v158
                %v160 = vld [vmem:[%s152 + $0x18] sm:%s145]
                %161 = vst [vmem:[%s153 + $0xc] sm:%s145] %v160
                %v162 = vld [vmem:[%s152 + $0x20] sm:%s145]
                %163 = vst [vmem:[%s153 + $0x10] sm:%s145] %v162
                %v164 = vld [vmem:[%s152 + $0x28] sm:%s145]
                %165 = vst [vmem:[%s153 + $0x14] sm:%s145] %v164
                %v166 = vld [vmem:[%s152 + $0x30] sm:%s145]
                %167 = vst [vmem:[%s153 + $0x18] sm:%s145] %v166
                %v168 = vld [vmem:[%s152 + $0x38] sm:%s145]
                %169 = vst [vmem:[%s153 + $0x1c] sm:%s145] %v168
              $region45: #{basic_block_forward.5} parent=39 // loop_footer
                %s151 = sadd.s32 1, %s147
              $region46: #{basic_block_forward.5} parent=39 // loop_footer_branch
                %146 = sbr.rel target = $region42
              $region47: #{basic_block_forward.5} parent=39 // loop_exit
                _
            $region40: #{basic_block_forward.5} parent=31 // pred_fallthru
              _
          $region32: #{basic_block_forward.5} parent=27 // pred_fallthru
            _
          %206 = vnop
        $region28: #{basic_block_forward.5} parent=23 // pred_fallthru
          _
      $region24: #{basic_block_forward.5} parent=5 // pred_fallthru
        _
      %p207 = scmp.le.s32.totalorder 1, %s9
      %p208 = scmp.lt.s32.totalorder %s9, 3
      %p209 = pnand %p207, %p208
      %p210 = pneg %p209
      // Predicated region
      $region66: #{basic_block_forward.5} parent=5 // pred_check
        _
      $region67: #{basic_block_forward.5} parent=5 // pred_check_branch
        %212 = sbr.rel (%p209) target = $region69
      $region68: #{basic_block_forward.5} parent=5 // pred_region
        %s213 = ssub.s32 %s9, 1
        %s214 = sand.u32 %s22, 1
        %s215 = sand.u32 %s22, 1
        %s216 = smul.addr %s215, 32
        %s217 = scalar_lea.vmem [#allocation2], %s216
        // Predicated region
        $region70: #{basic_block_forward.5} parent=68 // pred_check
          %p218 = pneg %p35
        $region71: #{basic_block_forward.5} parent=68 // pred_check_branch
          %220 = sbr.rel (%p218) target = $region73
        $region72: #{basic_block_forward.5} parent=68 // pred_region
          _
        $region73: #{basic_block_forward.5} parent=68 // pred_fallthru
          _
        %s221 = sand.u32 %s22, 1
        %s222 = sand.u32 %s22, 1
        %s223 = smul.addr %s222, 32
        %s224 = scalar_lea.vmem [#allocation2], %s223
        %p225 = pneg %p35
        %p226 = pneg %p32
        %p227 = pneg %p56
        %p228 = pneg %p53
        %p229 = pneg %p77
        %p230 = pneg %p74
        %p231 = pneg %p103
        %p232 = pneg %p100
        %p233 = scmp.lt.s32.totalorder %s14, 1
        %s234 = scalar_select %p233, %s14, 1
        %s235 = smul.addr %s234, 20
        %s236 = smul.addr %s235, 4
        %s237 = scalar_lea.vmem %s3, %s236
        %p238 = scmp.lt.s32.totalorder %s14, 1
        %s239 = scalar_select %p238, %s14, 1
        %s240 = smul.addr %s239, 20
        %s241 = smul.addr %s240, 4
        %s242 = scalar_lea.vmem %s3, %s241
        %v244 = vld [vmem:[%s217] sm:$0xf]
        %v245 = vld [vmem:[%s217 + $0x4] sm:$0xf]
        %v246 = vld [vmem:[%s217 + $0x8] sm:$0xf]
        %v247 = vld [vmem:[%s217 + $0xc] sm:$0xf]
        %v248 = vld [vmem:[%s217 + $0x10] sm:$0xf]
        %v249 = vld [vmem:[%s217 + $0x14] sm:$0xf]
        %v250 = vld [vmem:[%s217 + $0x18] sm:$0xf]
        %v251 = vld [vmem:[%s217 + $0x1c] sm:$0xf]
        %v252 = vunpack.c.l.bf16 %v244
        %v253 = vunpack.c.l.bf16 %v245
        %v254 = vunpack.c.l.bf16 %v246
        %v255 = vunpack.c.l.bf16 %v247
        %v256 = vunpack.c.l.bf16 %v248
        %v257 = vunpack.c.l.bf16 %v249
        %v258 = vunpack.c.l.bf16 %v250
        %v259 = vunpack.c.l.bf16 %v251
        %v260 = vld [vmem:[%s1] sm:$0x1]
        %v262 = vperm.slane %v260, 0
        %v264 = vmul.f32 %v252, %v262
        %v265 = vmul.f32 %v253, %v262
        %v266 = vmul.f32 %v254, %v262
        %v267 = vmul.f32 %v255, %v262
        %v268 = vmul.f32 %v256, %v262
        %v269 = vmul.f32 %v257, %v262
        %v270 = vmul.f32 %v258, %v262
        %v271 = vmul.f32 %v259, %v262
        %v272 = vld [vmem:[%s2] sm:$0x1]
        %v274 = vperm.slane %v272, 0
        %v276 = vadd.f32 %v264, %v274
        %v277 = vadd.f32 %v265, %v274
        %v278 = vadd.f32 %v266, %v274
        %v279 = vadd.f32 %v267, %v274
        %v280 = vadd.f32 %v268, %v274
        %v281 = vadd.f32 %v269, %v274
        %v282 = vadd.f32 %v270, %v274
        %v283 = vadd.f32 %v271, %v274
        %v284 = vmax.f32 %v276, 0.0
        %v285 = vmax.f32 %v277, 0.0
        %v286 = vmax.f32 %v278, 0.0
        %v287 = vmax.f32 %v279, 0.0
        %v288 = vmax.f32 %v280, 0.0
        %v289 = vmax.f32 %v281, 0.0
        %v290 = vmax.f32 %v282, 0.0
        %v291 = vmax.f32 %v283, 0.0
        %v292 = vpack.c.bf16 %v284, %v284
        %v293 = vpack.c.bf16 %v285, %v285
        %v294 = vpack.c.bf16 %v286, %v286
        %v295 = vpack.c.bf16 %v287, %v287
        %v296 = vpack.c.bf16 %v288, %v288
        %v297 = vpack.c.bf16 %v289, %v289
        %v298 = vpack.c.bf16 %v290, %v290
        %v299 = vpack.c.bf16 %v291, %v291
        %300 = vst [vmem:[%s242] sm:$0xf] 0
        %301 = vst [vmem:[%s242 + $0x4] sm:$0x1] 0
        %302 = vst [vmem:[%s242 + $0x8] sm:$0xf] 0
        %303 = vst [vmem:[%s242 + $0xc] sm:$0x1] 0
        %304 = vst [vmem:[%s242 + $0x10] sm:$0xf] 0
        %305 = vst [vmem:[%s242 + $0x14] sm:$0x1] 0
        %306 = vst [vmem:[%s242 + $0x18] sm:$0xf] 0
        %307 = vst [vmem:[%s242 + $0x1c] sm:$0x1] 0
        %308 = vst [vmem:[%s242 + $0x20] sm:$0xf] 0
        %309 = vst [vmem:[%s242 + $0x24] sm:$0x1] 0
        %310 = vst [vmem:[%s242 + $0x28] sm:$0xf] 0
        %311 = vst [vmem:[%s242 + $0x2c] sm:$0x1] 0
        %312 = vst [vmem:[%s242 + $0x30] sm:$0xf] 0
        %313 = vst [vmem:[%s242 + $0x34] sm:$0x1] 0
        %314 = vst [vmem:[%s242 + $0x38] sm:$0xf] 0
        %315 = vst [vmem:[%s242 + $0x3c] sm:$0x1] 0
        %316 = vst [vmem:[%s242 + $0x40] sm:$0xf] 0
        %317 = vst [vmem:[%s242 + $0x44] sm:$0x1] 0
        %318 = vst [vmem:[%s242 + $0x48] sm:$0xf] 0
        %319 = vst [vmem:[%s242 + $0x4c] sm:$0x1] 0
        %v321 = vshrl.u32 %v292, 16
        %v323 = vrot.slane %v321, 7
        %v324 = vshll.u32 %v292, 16
        %v326 = vor.u32 %v323, %v324
        %v327 = vrot.slane %v323, 4
        %v329 = vshrl.u32 %v293, 16
        %v331 = vrot.slane %v329, 7
        %v332 = vshll.u32 %v293, 16
        %v334 = vor.u32 %v331, %v332
        %v335 = vrot.slane %v331, 4
        %v337 = vshrl.u32 %v294, 16
        %v339 = vrot.slane %v337, 7
        %v340 = vshll.u32 %v294, 16
        %v342 = vor.u32 %v339, %v340
        %v343 = vrot.slane %v339, 4
        %v345 = vshrl.u32 %v295, 16
        %v347 = vrot.slane %v345, 7
        %v348 = vshll.u32 %v295, 16
        %v350 = vor.u32 %v347, %v348
        %v351 = vrot.slane %v347, 4
        %v353 = vshrl.u32 %v296, 16
        %v355 = vrot.slane %v353, 7
        %v356 = vshll.u32 %v296, 16
        %v358 = vor.u32 %v355, %v356
        %v359 = vrot.slane %v355, 4
        %v361 = vshrl.u32 %v297, 16
        %v363 = vrot.slane %v361, 7
        %v364 = vshll.u32 %v297, 16
        %v366 = vor.u32 %v363, %v364
        %v367 = vrot.slane %v363, 4
        %v369 = vshrl.u32 %v298, 16
        %v371 = vrot.slane %v369, 7
        %v372 = vshll.u32 %v298, 16
        %v374 = vor.u32 %v371, %v372
        %v375 = vrot.slane %v371, 4
        %v377 = vshrl.u32 %v299, 16
        %v379 = vrot.slane %v377, 7
        %v380 = vshll.u32 %v299, 16
        %v382 = vor.u32 %v379, %v380
        %v383 = vrot.slane %v379, 4
        %s400 = scalar_lea.vmem %s242, 8
        %vm401 = vcmask 1043456
        %vm402 = vsmask.f32 7938
        %vm403 = vmand %vm401, %vm402
        %v404 = vld [vmem:[%s400] sm:$0xf]
        %v405 = vsel %vm403, %v326, %v404
        %406 = vst [vmem:[%s400] sm:$0xf] %v405
        %vm407 = vcmask 1040384
        %vm408 = vsmask.f32 256
        %vm409 = vmand %vm407, %vm408
        %v410 = vld [vmem:[%s400 + $0x4] sm:$0x1]
        %v411 = vsel %vm409, %v327, %v410
        %412 = vst [vmem:[%s400 + $0x4] sm:$0x1] %v411
        %v413 = vld [vmem:[%s400 + $0x8] sm:$0xf]
        %v414 = vsel %vm403, %v334, %v413
        %415 = vst [vmem:[%s400 + $0x8] sm:$0xf] %v414
        %v416 = vld [vmem:[%s400 + $0xc] sm:$0x1]
        %v417 = vsel %vm409, %v335, %v416
        %418 = vst [vmem:[%s400 + $0xc] sm:$0x1] %v417
        %v419 = vld [vmem:[%s400 + $0x10] sm:$0xf]
        %v420 = vsel %vm403, %v342, %v419
        %421 = vst [vmem:[%s400 + $0x10] sm:$0xf] %v420
        %v422 = vld [vmem:[%s400 + $0x14] sm:$0x1]
        %v423 = vsel %vm409, %v343, %v422
        %424 = vst [vmem:[%s400 + $0x14] sm:$0x1] %v423
        %v425 = vld [vmem:[%s400 + $0x18] sm:$0xf]
        %v426 = vsel %vm403, %v350, %v425
        %427 = vst [vmem:[%s400 + $0x18] sm:$0xf] %v426
        %v428 = vld [vmem:[%s400 + $0x1c] sm:$0x1]
        %v429 = vsel %vm409, %v351, %v428
        %430 = vst [vmem:[%s400 + $0x1c] sm:$0x1] %v429
        %v431 = vld [vmem:[%s400 + $0x20] sm:$0xf]
        %v432 = vsel %vm403, %v358, %v431
        %433 = vst [vmem:[%s400 + $0x20] sm:$0xf] %v432
        %v434 = vld [vmem:[%s400 + $0x24] sm:$0x1]
        %v435 = vsel %vm409, %v359, %v434
        %436 = vst [vmem:[%s400 + $0x24] sm:$0x1] %v435
        %v437 = vld [vmem:[%s400 + $0x28] sm:$0xf]
        %v438 = vsel %vm403, %v366, %v437
        %439 = vst [vmem:[%s400 + $0x28] sm:$0xf] %v438
        %v440 = vld [vmem:[%s400 + $0x2c] sm:$0x1]
        %v441 = vsel %vm409, %v367, %v440
        %442 = vst [vmem:[%s400 + $0x2c] sm:$0x1] %v441
        %v443 = vld [vmem:[%s400 + $0x30] sm:$0xf]
        %v444 = vsel %vm403, %v374, %v443
        %445 = vst [vmem:[%s400 + $0x30] sm:$0xf] %v444
        %v446 = vld [vmem:[%s400 + $0x34] sm:$0x1]
        %v447 = vsel %vm409, %v375, %v446
        %448 = vst [vmem:[%s400 + $0x34] sm:$0x1] %v447
        %v449 = vld [vmem:[%s400 + $0x38] sm:$0xf]
        %v450 = vsel %vm403, %v382, %v449
        %451 = vst [vmem:[%s400 + $0x38] sm:$0xf] %v450
        %v452 = vld [vmem:[%s400 + $0x3c] sm:$0x1]
        %v453 = vsel %vm409, %v383, %v452
        %454 = vst [vmem:[%s400 + $0x3c] sm:$0x1] %v453
        %p455 = scmp.lt.s32.totalorder %s14, 1
        %s456 = scalar_select %p455, %s14, 1
        %s457 = smul.addr %s456, 20
        %s458 = smul.addr %s457, 4
        %s459 = scalar_lea.vmem %s3, %s458
        // Predicated region
        $region74: #{basic_block_forward.5} parent=68 // pred_check
          %p460 = pneg %p100
        $region75: #{basic_block_forward.5} parent=68 // pred_check_branch
          %462 = sbr.rel (%p460) target = $region77
        $region76: #{basic_block_forward.5} parent=68 // pred_region
          _
        $region77: #{basic_block_forward.5} parent=68 // pred_fallthru
          _
      $region69: #{basic_block_forward.5} parent=5 // pred_fallthru
        _
      %p463 = scmp.le.s32.totalorder 2, %s9
      // Predicated region
      $region78: #{basic_block_forward.5} parent=5 // pred_check
        %p464 = pneg %p463
      $region79: #{basic_block_forward.5} parent=5 // pred_check_branch
        %466 = sbr.rel (%p464) target = $region81
      $region80: #{basic_block_forward.5} parent=5 // pred_region
        %s467 = ssub.s32 %s9, 2
        // Predicated region
        $region82: #{basic_block_forward.5} parent=80 // pred_check
          %p468 = pneg %p106
        $region83: #{basic_block_forward.5} parent=80 // pred_check_branch
          %470 = sbr.rel (%p468) target = $region85
        $region84: #{basic_block_forward.5} parent=80 // pred_region
          %p471 = scmp.lt.s32.totalorder %s15, 1
          %s472 = scalar_select %p471, %s15, 1
          %s473 = smul.addr %s472, 20
          %s474 = smul.addr %s473, 4
          %s475 = scalar_lea.vmem %s3, %s474
        $region85: #{basic_block_forward.5} parent=80 // pred_fallthru
          _
      $region81: #{basic_block_forward.5} parent=5 // pred_fallthru
        _
    $region6: #{basic_block_forward.5} parent=1 // loop_footer
      %s13 = sadd.s32 1, %s9
    $region7: #{basic_block_forward.5} parent=1 // loop_footer_branch
      %8 = sbr.rel target = $region3
    $region8: #{basic_block_forward.5} parent=1 // loop_exit
      _

// kernel: basic_block_forward.7
$region0: #{basic_block_forward.7}
  #allocation0 [shape = 'u32[]', space=smem, size = 0x4, offset = 0x4, fixed_abs, tag = 'smem constant byte address 0x4 - core index']
  #allocation1 [shape = 'u32[72,128]{1,0:T(1,128)}', space=vmem, size = 0x9000, scoped, tag = 'internal scratch']
  %s0 = inlined_call_operand.vmem [shape: bf16[2,64,128], index: 0, kind: input, shape index: {}]
  %s1 = inlined_call_operand.vmem [shape: bf16[2,64,256], index: 1, kind: input, shape index: {}]
  %s2 = inlined_call_operand.vmem [shape: f32[1,128], index: 2, kind: input, shape index: {}]
  %s3 = inlined_call_operand.vmem [shape: f32[1,128], index: 3, kind: input, shape index: {}]
  %s4 = inlined_call_operand.vmem [shape: f32[1,128], index: 4, kind: input, shape index: {}]
  %s5 = inlined_call_operand.vmem [shape: f32[1,128], index: 5, kind: input, shape index: {}]
  %s6 = inlined_call_operand.vmem [shape: f32[2,64,128], index: 6, kind: output, shape index: {}]
  %s7 = sld [smem:[#allocation0]]
  $region98: #{basic_block_forward.7} parent=0
    _
  %s9 = ssub.s32 1, %s7
  %s10 = scalar_select 0, %s9, %s7
  $region1: #{basic_block_forward.7} parent=0
    #allocation2 [shape = 'u8[32768]{0}', space=vmem, size = 0x8000, scoped, tag = 'input window, operand 1']
    loop: start=0, step=1, limit=4
    $region2: #{basic_block_forward.7} parent=1 // loop_pre_header
      _
    $region3: #{basic_block_forward.7} parent=1 // loop_header
      %s12 = sphi 0, %s16
      %p13 = scmp.ge.s32.totalorder %s12, 4
      %s22 = sphi 0, %s24
      %s25 = sphi 0, %s22
      %s26 = sphi 0, %s25
      %s42 = sphi 0, %s26
      %s48 = sphi 0, %s50
      %s51 = sphi 0, %s48
      %s52 = sphi 0, %s51
      %s68 = sphi 0, %s52
      %s72 = sphi 0, %s72
      %s74 = sphi 0, %s72
      %s75 = sphi 0, %s74
      %s89 = sphi 0, %s75
      %s93 = sphi 0, %s93
      %s95 = sphi 0, %s93
      %s96 = sphi 0, %s95
      %s110 = sphi 0, %s96
      %s114 = sphi 0, %s114
      %s116 = sphi 0, %s114
      %s117 = sphi 0, %s116
      %s131 = sphi 0, %s117
      %s135 = sphi 0, %s135
      %s137 = sphi 0, %s135
      %s138 = sphi 0, %s137
      %s152 = sphi 0, %s138
      %s158 = sphi 0, %s160
      %s161 = sphi 0, %s158
      %s162 = sphi 0, %s161
      %s178 = sphi 0, %s162
    $region4: #{basic_block_forward.7} parent=1 // loop_header_branch
      %15 = sbr.rel (%p13) target = $region8
    $region5: #{basic_block_forward.7} parent=1 // loop_body
      %s17 = ssub.s32 %s12, 1
      %s18 = ssub.s32 %s12, 2
      %s19 = sadd.s32 %s12, 1
      %s20 = ssub.s32 %s12, %s19
      %p21 = scmp.eq.s32.totalorder %s20, 0
      %s23 = sadd.s32 %s22, 1
      %s24 = scalar_select %p21, %s22, %s23
      %p27 = pneg %p21
      %p28 = scmp.eq.s32.totalorder %s12, 1
      %p29 = por %p27, %p28
      %p30 = scmp.ne.s32.totalorder %s22, %s25
      %p31 = scmp.eq.s32.totalorder %s12, 0
      %p32 = por %p30, %p31
      %p33 = scmp.ne.s32.totalorder %s22, %s25
      %p34 = scmp.eq.s32.totalorder %s17, 1
      %p35 = por %p33, %p34
      %p36 = scmp.ne.s32.totalorder %s25, %s26
      %p37 = scmp.eq.s32.totalorder %s17, 0
      %p38 = por %p36, %p37
      %p39 = scmp.ne.s32.totalorder %s25, %s26
      %p40 = scmp.eq.s32.totalorder %s18, 1
      %p41 = por %p39, %p40
      %p43 = scmp.ne.s32.totalorder %s26, %s42
      %p44 = scmp.eq.s32.totalorder %s18, 0
      %p45 = por %p43, %p44
      %s46 = ssub.s32 %s12, %s19
      %p47 = scmp.eq.s32.totalorder %s46, 0
      %s49 = sadd.s32 %s48, 1
      %s50 = scalar_select %p47, %s48, %s49
      %p53 = pneg %p47
      %p54 = scmp.eq.s32.totalorder %s12, 1
      %p55 = por %p53, %p54
      %p56 = scmp.ne.s32.totalorder %s48, %s51
      %p57 = scmp.eq.s32.totalorder %s12, 0
      %p58 = por %p56, %p57
      %p59 = scmp.ne.s32.totalorder %s48, %s51
      %p60 = scmp.eq.s32.totalorder %s17, 1
      %p61 = por %p59, %p60
      %p62 = scmp.ne.s32.totalorder %s51, %s52
      %p63 = scmp.eq.s32.totalorder %s17, 0
      %p64 = por %p62, %p63
      %p65 = scmp.ne.s32.totalorder %s51, %s52
      %p66 = scmp.eq.s32.totalorder %s18, 1
      %p67 = por %p65, %p66
      %p69 = scmp.ne.s32.totalorder %s52, %s68
      %p70 = scmp.eq.s32.totalorder %s18, 0
      %p71 = por %p69, %p70
      %s73 = sadd.s32 %s72, 1
      %p76 = scmp.eq.s32.totalorder %s12, 1
      %p77 = scmp.ne.s32.totalorder %s72, %s74
      %p78 = scmp.eq.s32.totalorder %s12, 0
      %p79 = por %p77, %p78
      %p80 = scmp.ne.s32.totalorder %s72, %s74
      %p81 = scmp.eq.s32.totalorder %s17, 1
      %p82 = por %p80, %p81
      %p83 = scmp.ne.s32.totalorder %s74, %s75
      %p84 = scmp.eq.s32.totalorder %s17, 0
      %p85 = por %p83, %p84
      %p86 = scmp.ne.s32.totalorder %s74, %s75
      %p87 = scmp.eq.s32.totalorder %s18, 1
      %p88 = por %p86, %p87
      %p90 = scmp.ne.s32.totalorder %s75, %s89
      %p91 = scmp.eq.s32.totalorder %s18, 0
      %p92 = por %p90, %p91
      %s94 = sadd.s32 %s93, 1
      %p97 = scmp.eq.s32.totalorder %s12, 1
      %p98 = scmp.ne.s32.totalorder %s93, %s95
      %p99 = scmp.eq.s32.totalorder %s12, 0
      %p100 = por %p98, %p99
      %p101 = scmp.ne.s32.totalorder %s93, %s95
      %p102 = scmp.eq.s32.totalorder %s17, 1
      %p103 = por %p101, %p102
      %p104 = scmp.ne.s32.totalorder %s95, %s96
      %p105 = scmp.eq.s32.totalorder %s17, 0
      %p106 = por %p104, %p105
      %p107 = scmp.ne.s32.totalorder %s95, %s96
      %p108 = scmp.eq.s32.totalorder %s18, 1
      %p109 = por %p107, %p108
      %p111 = scmp.ne.s32.totalorder %s96, %s110
      %p112 = scmp.eq.s32.totalorder %s18, 0
      %p113 = por %p111, %p112
      %s115 = sadd.s32 %s114, 1
      %p118 = scmp.eq.s32.totalorder %s12, 1
      %p119 = scmp.ne.s32.totalorder %s114, %s116
      %p120 = scmp.eq.s32.totalorder %s12, 0
      %p121 = por %p119, %p120
      %p122 = scmp.ne.s32.totalorder %s114, %s116
      %p123 = scmp.eq.s32.totalorder %s17, 1
      %p124 = por %p122, %p123
      %p125 = scmp.ne.s32.totalorder %s116, %s117
      %p126 = scmp.eq.s32.totalorder %s17, 0
      %p127 = por %p125, %p126
      %p128 = scmp.ne.s32.totalorder %s116, %s117
      %p129 = scmp.eq.s32.totalorder %s18, 1
      %p130 = por %p128, %p129
      %p132 = scmp.ne.s32.totalorder %s117, %s131
      %p133 = scmp.eq.s32.totalorder %s18, 0
      %p134 = por %p132, %p133
      %s136 = sadd.s32 %s135, 1
      %p139 = scmp.eq.s32.totalorder %s12, 1
      %p140 = scmp.ne.s32.totalorder %s135, %s137
      %p141 = scmp.eq.s32.totalorder %s12, 0
      %p142 = por %p140, %p141
      %p143 = scmp.ne.s32.totalorder %s135, %s137
      %p144 = scmp.eq.s32.totalorder %s17, 1
      %p145 = por %p143, %p144
      %p146 = scmp.ne.s32.totalorder %s137, %s138
      %p147 = scmp.eq.s32.totalorder %s17, 0
      %p148 = por %p146, %p147
      %p149 = scmp.ne.s32.totalorder %s137, %s138
      %p150 = scmp.eq.s32.totalorder %s18, 1
      %p151 = por %p149, %p150
      %p153 = scmp.ne.s32.totalorder %s138, %s152
      %p154 = scmp.eq.s32.totalorder %s18, 0
      %p155 = por %p153, %p154
      %s156 = ssub.s32 %s12, %s19
      %p157 = scmp.eq.s32.totalorder %s156, 0
      %s159 = sadd.s32 %s158, 1
      %s160 = scalar_select %p157, %s158, %s159
      %p163 = pneg %p157
      %p164 = scmp.eq.s32.totalorder %s12, 1
      %p165 = por %p163, %p164
      %p166 = scmp.ne.s32.totalorder %s158, %s161
      %p167 = scmp.eq.s32.totalorder %s12, 0
      %p168 = por %p166, %p167
      %p169 = scmp.ne.s32.totalorder %s158, %s161
      %p170 = scmp.eq.s32.totalorder %s17, 1
      %p171 = por %p169, %p170
      %p172 = scmp.ne.s32.totalorder %s161, %s162
      %p173 = scmp.eq.s32.totalorder %s17, 0
      %p174 = por %p172, %p173
      %p175 = scmp.ne.s32.totalorder %s161, %s162
      %p176 = scmp.eq.s32.totalorder %s18, 1
      %p177 = por %p175, %p176
      %p179 = scmp.ne.s32.totalorder %s162, %s178
      %p180 = scmp.eq.s32.totalorder %s18, 0
      %p181 = por %p179, %p180
      %p182 = scmp.le.s32.totalorder 1, %s12
      %p183 = scmp.lt.s32.totalorder %s12, 3
      %p184 = pnand %p182, %p183
      %p185 = pneg %p184
      // Predicated region
      $region9: #{basic_block_forward.7} parent=5 // pred_check
        _
      $region10: #{basic_block_forward.7} parent=5 // pred_check_branch
        %187 = sbr.rel (%p184) target = $region12
      $region11: #{basic_block_forward.7} parent=5 // pred_region
        %s188 = ssub.s32 %s12, 1
        // Predicated region
        $region13: #{basic_block_forward.7} parent=11 // pred_check
          %p189 = pneg %p85
        $region14: #{basic_block_forward.7} parent=11 // pred_check_branch
          %191 = sbr.rel (%p189) target = $region16
        $region15: #{basic_block_forward.7} parent=11 // pred_region
          _
        $region16: #{basic_block_forward.7} parent=11 // pred_fallthru
          _
        // Predicated region
        $region17: #{basic_block_forward.7} parent=11 // pred_check
          %p192 = pneg %p106
        $region18: #{basic_block_forward.7} parent=11 // pred_check_branch
          %194 = sbr.rel (%p192) target = $region20
        $region19: #{basic_block_forward.7} parent=11 // pred_region
          _
        $region20: #{basic_block_forward.7} parent=11 // pred_fallthru
          _
        // Predicated region
        $region21: #{basic_block_forward.7} parent=11 // pred_check
          %p195 = pneg %p127
        $region22: #{basic_block_forward.7} parent=11 // pred_check_branch
          %197 = sbr.rel (%p195) target = $region24
        $region23: #{basic_block_forward.7} parent=11 // pred_region
          _
        $region24: #{basic_block_forward.7} parent=11 // pred_fallthru
          _
        // Predicated region
        $region25: #{basic_block_forward.7} parent=11 // pred_check
          %p198 = pneg %p148
        $region26: #{basic_block_forward.7} parent=11 // pred_check_branch
          %200 = sbr.rel (%p198) target = $region28
        $region27: #{basic_block_forward.7} parent=11 // pred_region
          _
        $region28: #{basic_block_forward.7} parent=11 // pred_fallthru
          _
      $region12: #{basic_block_forward.7} parent=5 // pred_fallthru
        _
      %p201 = scmp.lt.s32.totalorder %s12, 2
      // Predicated region
      $region29: #{basic_block_forward.7} parent=5 // pred_check
        %p202 = pneg %p201
      $region30: #{basic_block_forward.7} parent=5 // pred_check_branch
        %204 = sbr.rel (%p202) target = $region32
      $region31: #{basic_block_forward.7} parent=5 // pred_region
        // Predicated region
        $region33: #{basic_block_forward.7} parent=31 // pred_check
          %p205 = pneg %p32
        $region34: #{basic_block_forward.7} parent=31 // pred_check_branch
          %207 = sbr.rel (%p205) target = $region36
        $region35: #{basic_block_forward.7} parent=31 // pred_region
          %p208 = scmp.lt.s32.totalorder %s12, 1
          %s209 = scalar_select %p208, %s12, 1
          %s210 = smul.addr %s209, 8
          %s211 = smul.addr %s210, 4
          %s212 = scalar_lea.vmem %s0, %s211
        $region36: #{basic_block_forward.7} parent=31 // pred_fallthru
          _
        // Predicated region
        $region37: #{basic_block_forward.7} parent=31 // pred_check
          %p213 = pneg %p58
        $region38: #{basic_block_forward.7} parent=31 // pred_check_branch
          %215 = sbr.rel (%p213) target = $region40
        $region39: #{basic_block_forward.7} parent=31 // pred_region
          %s216 = sand.u32 %s48, 1
          %s217 = sand.u32 %s48, 1
          %s218 = smul.addr %s217, 32
          %s219 = scalar_lea.vmem [#allocation2], %s218
          %s220 = smul.addr %s12, 16
          %s221 = sadd.s32 1, %s220
          %s222 = smul.addr %s221, 4
          %s223 = scalar_lea.vmem %s1, %s222
          // Predicated region
          $region41: #{basic_block_forward.7} parent=39 // pred_check
            _
          $region42: #{basic_block_forward.7} parent=39 // pred_check_branch
            %225 = sbr.rel (0) target = $region44
          $region43: #{basic_block_forward.7} parent=39 // pred_region
            // Predicated region
            $region45: #{basic_block_forward.7} parent=43 // pred_check
              _
            $region46: #{basic_block_forward.7} parent=43 // pred_check_branch
              %227 = sbr.rel target = $region48
            $region47: #{basic_block_forward.7} parent=43 // pred_region
              // Predicated region
              $region60: #{basic_block_forward.7} parent=47 // pred_check
                _
              $region61: #{basic_block_forward.7} parent=47 // pred_check_branch
                %257 = sbr.rel (0) target = $region63
              $region62: #{basic_block_forward.7} parent=47 // pred_region
                loop: start=0, step=1, limit=1
                $region64: #{basic_block_forward.7} parent=62 // loop_pre_header
                  _
                $region65: #{basic_block_forward.7} parent=62 // loop_header
                  %s259 = sphi 0, %s263
                  %p260 = scmp.ge.s32.totalorder %s259, 1
                  %s264 = sphi %s223, %s223
                  %s265 = sphi %s219, %s219
                $region66: #{basic_block_forward.7} parent=62 // loop_header_branch
                  %262 = sbr.rel (%p260) target = $region70
                $region67: #{basic_block_forward.7} parent=62 // loop_body
                  _
                $region68: #{basic_block_forward.7} parent=62 // loop_footer
                  %s263 = sadd.s32 1, %s259
                $region69: #{basic_block_forward.7} parent=62 // loop_footer_branch
                  %258 = sbr.rel target = $region65
                $region70: #{basic_block_forward.7} parent=62 // loop_exit
                  _
                %s267 = ssub.s32 16, 1
                loop: start=0, step=1, limit=1
                $region71: #{basic_block_forward.7} parent=62 // loop_pre_header
                  _
                $region72: #{basic_block_forward.7} parent=62 // loop_header
                  %s269 = sphi 0, %s273
                  %p270 = scmp.ge.s32.totalorder %s269, 1
                  %s274 = sphi %s223, %s223
                  %s275 = sphi %s219, %s219
                $region73: #{basic_block_forward.7} parent=62 // loop_header_branch
                  %272 = sbr.rel (%p270) target = $region77
                $region74: #{basic_block_forward.7} parent=62 // loop_body
                  %v276 = vld [vmem:[%s274] sm:%s267]
                  %277 = vst [vmem:[%s275] sm:%s267] %v276
                  %v278 = vld [vmem:[%s274 + $0x8] sm:%s267]
                  %279 = vst [vmem:[%s275 + $0x4] sm:%s267] %v278
                  %v280 = vld [vmem:[%s274 + $0x10] sm:%s267]
                  %281 = vst [vmem:[%s275 + $0x8] sm:%s267] %v280
                  %v282 = vld [vmem:[%s274 + $0x18] sm:%s267]
                  %283 = vst [vmem:[%s275 + $0xc] sm:%s267] %v282
                  %v284 = vld [vmem:[%s274 + $0x20] sm:%s267]
                  %285 = vst [vmem:[%s275 + $0x10] sm:%s267] %v284
                  %v286 = vld [vmem:[%s274 + $0x28] sm:%s267]
                  %287 = vst [vmem:[%s275 + $0x14] sm:%s267] %v286
                  %v288 = vld [vmem:[%s274 + $0x30] sm:%s267]
                  %289 = vst [vmem:[%s275 + $0x18] sm:%s267] %v288
                  %v290 = vld [vmem:[%s274 + $0x38] sm:%s267]
                  %291 = vst [vmem:[%s275 + $0x1c] sm:%s267] %v290
                $region75: #{basic_block_forward.7} parent=62 // loop_footer
                  %s273 = sadd.s32 1, %s269
                $region76: #{basic_block_forward.7} parent=62 // loop_footer_branch
                  %268 = sbr.rel target = $region72
                $region77: #{basic_block_forward.7} parent=62 // loop_exit
                  _
              $region63: #{basic_block_forward.7} parent=47 // pred_fallthru
                _
            $region48: #{basic_block_forward.7} parent=43 // pred_fallthru
              _
            // Predicated region
            $region49: #{basic_block_forward.7} parent=43 // pred_check
              _
            $region50: #{basic_block_forward.7} parent=43 // pred_check_branch
              %229 = sbr.rel (0) target = $region52
            $region51: #{basic_block_forward.7} parent=43 // pred_region
              %s231 = ssub.s32 16, 1
              loop: start=0, step=1, limit=1
              $region53: #{basic_block_forward.7} parent=51 // loop_pre_header
                _
              $region54: #{basic_block_forward.7} parent=51 // loop_header
                %s233 = sphi 0, %s237
                %p234 = scmp.ge.s32.totalorder %s233, 1
                %s238 = sphi %s223, %s223
                %s239 = sphi %s219, %s219
              $region55: #{basic_block_forward.7} parent=51 // loop_header_branch
                %236 = sbr.rel (%p234) target = $region59
              $region56: #{basic_block_forward.7} parent=51 // loop_body
                %v240 = vld [vmem:[%s238] sm:%s231]
                %241 = vst [vmem:[%s239] sm:%s231] %v240
                %v242 = vld [vmem:[%s238 + $0x8] sm:%s231]
                %243 = vst [vmem:[%s239 + $0x4] sm:%s231] %v242
                %v244 = vld [vmem:[%s238 + $0x10] sm:%s231]
                %245 = vst [vmem:[%s239 + $0x8] sm:%s231] %v244
                %v246 = vld [vmem:[%s238 + $0x18] sm:%s231]
                %247 = vst [vmem:[%s239 + $0xc] sm:%s231] %v246
                %v248 = vld [vmem:[%s238 + $0x20] sm:%s231]
                %249 = vst [vmem:[%s239 + $0x10] sm:%s231] %v248
                %v250 = vld [vmem:[%s238 + $0x28] sm:%s231]
                %251 = vst [vmem:[%s239 + $0x14] sm:%s231] %v250
                %v252 = vld [vmem:[%s238 + $0x30] sm:%s231]
                %253 = vst [vmem:[%s239 + $0x18] sm:%s231] %v252
                %v254 = vld [vmem:[%s238 + $0x38] sm:%s231]
                %255 = vst [vmem:[%s239 + $0x1c] sm:%s231] %v254
              $region57: #{basic_block_forward.7} parent=51 // loop_footer
                %s237 = sadd.s32 1, %s233
              $region58: #{basic_block_forward.7} parent=51 // loop_footer_branch
                %232 = sbr.rel target = $region54
              $region59: #{basic_block_forward.7} parent=51 // loop_exit
                _
            $region52: #{basic_block_forward.7} parent=43 // pred_fallthru
              _
          $region44: #{basic_block_forward.7} parent=39 // pred_fallthru
            _
          %292 = vnop
        $region40: #{basic_block_forward.7} parent=31 // pred_fallthru
          _
      $region32: #{basic_block_forward.7} parent=5 // pred_fallthru
        _
      %p293 = scmp.le.s32.totalorder 1, %s12
      %p294 = scmp.lt.s32.totalorder %s12, 3
      %p295 = pnand %p293, %p294
      %p296 = pneg %p295
      // Predicated region
      $region78: #{basic_block_forward.7} parent=5 // pred_check
        _
      $region79: #{basic_block_forward.7} parent=5 // pred_check_branch
        %298 = sbr.rel (%p295) target = $region81
      $region80: #{basic_block_forward.7} parent=5 // pred_region
        %s299 = ssub.s32 %s12, 1
        %s300 = sand.u32 %s51, 1
        %s301 = sand.u32 %s51, 1
        %s302 = smul.addr %s301, 32
        %s303 = scalar_lea.vmem [#allocation2], %s302
        // Predicated region
        $region82: #{basic_block_forward.7} parent=80 // pred_check
          %p304 = pneg %p64
        $region83: #{basic_block_forward.7} parent=80 // pred_check_branch
          %306 = sbr.rel (%p304) target = $region85
        $region84: #{basic_block_forward.7} parent=80 // pred_region
          _
        $region85: #{basic_block_forward.7} parent=80 // pred_fallthru
          _
        %p307 = scmp.lt.s32.totalorder %s17, 1
        %s308 = scalar_select %p307, %s17, 1
        %s309 = smul.addr %s308, 8
        %s310 = smul.addr %s309, 4
        %s311 = scalar_lea.vmem %s0, %s310
        %p312 = pneg %p38
        %p313 = pneg %p35
        %s314 = sand.u32 %s51, 1
        %s315 = sand.u32 %s51, 1
        %s316 = smul.addr %s315, 32
        %s317 = scalar_lea.vmem [#allocation2], %s316
        %p318 = pneg %p64
        %p319 = pneg %p61
        %p320 = pneg %p85
        %p321 = pneg %p82
        %p322 = pneg %p106
        %p323 = pneg %p103
        %p324 = pneg %p127
        %p325 = pneg %p124
        %p326 = pneg %p148
        %p327 = pneg %p145
        %p328 = pneg %p174
        %p329 = pneg %p171
        %p330 = scmp.lt.s32.totalorder %s17, 1
        %s331 = scalar_select %p330, %s17, 1
        %s332 = smul.addr %s331, 8
        %s333 = smul.addr %s332, 8
        %s334 = scalar_lea.vmem %s6, %s333
        %p335 = scmp.lt.s32.totalorder %s17, 1
        %s336 = scalar_select %p335, %s17, 1
        %s337 = smul.addr %s336, 8
        %s338 = smul.addr %s337, 4
        %s339 = scalar_lea.vmem %s0, %s338
        %p340 = scmp.lt.s32.totalorder %s17, 1
        %s341 = scalar_select %p340, %s17, 1
        %s342 = smul.addr %s341, 8
        %s343 = smul.addr %s342, 8
        %s344 = scalar_lea.vmem %s6, %s343
        %v345 = vld [vmem:[%s339] sm:$0xf]
        %v346 = vld [vmem:[%s339 + $0x4] sm:$0xf]
        %v347 = vld [vmem:[%s339 + $0x8] sm:$0xf]
        %v348 = vld [vmem:[%s339 + $0xc] sm:$0xf]
        %v349 = vld [vmem:[%s339 + $0x10] sm:$0xf]
        %v350 = vld [vmem:[%s339 + $0x14] sm:$0xf]
        %v351 = vld [vmem:[%s339 + $0x18] sm:$0xf]
        %v352 = vld [vmem:[%s339 + $0x1c] sm:$0xf]
        %v353 = vunpack.c.l.bf16 %v345
        %v354 = vunpack.c.l.bf16 %v346
        %v355 = vunpack.c.l.bf16 %v347
        %v356 = vunpack.c.l.bf16 %v348
        %v357 = vunpack.c.l.bf16 %v349
        %v358 = vunpack.c.l.bf16 %v350
        %v359 = vunpack.c.l.bf16 %v351
        %v360 = vunpack.c.l.bf16 %v352
        %v361 = vld [vmem:[%s2] sm:$0x1]
        %v363 = vperm.slane %v361, 0
        %v365 = vmul.f32 %v353, %v363
        %v366 = vmul.f32 %v354, %v363
        %v367 = vmul.f32 %v355, %v363
        %v368 = vmul.f32 %v356, %v363
        %v369 = vmul.f32 %v357, %v363
        %v370 = vmul.f32 %v358, %v363
        %v371 = vmul.f32 %v359, %v363
        %v372 = vmul.f32 %v360, %v363
        %v373 = vld [vmem:[%s3] sm:$0x1]
        %v375 = vperm.slane %v373, 0
        %v377 = vadd.f32 %v365, %v375
        %v378 = vadd.f32 %v366, %v375
        %v379 = vadd.f32 %v367, %v375
        %v380 = vadd.f32 %v368, %v375
        %v381 = vadd.f32 %v369, %v375
        %v382 = vadd.f32 %v370, %v375
        %v383 = vadd.f32 %v371, %v375
        %v384 = vadd.f32 %v372, %v375
        %v385 = vld [vmem:[%s303] sm:$0xf]
        %v386 = vld [vmem:[%s303 + $0x4] sm:$0xf]
        %v387 = vld [vmem:[%s303 + $0x8] sm:$0xf]
        %v388 = vld [vmem:[%s303 + $0xc] sm:$0xf]
        %v389 = vld [vmem:[%s303 + $0x10] sm:$0xf]
        %v390 = vld [vmem:[%s303 + $0x14] sm:$0xf]
        %v391 = vld [vmem:[%s303 + $0x18] sm:$0xf]
        %v392 = vld [vmem:[%s303 + $0x1c] sm:$0xf]
        %v393 = vunpack.c.l.bf16 %v385
        %v394 = vunpack.c.l.bf16 %v386
        %v395 = vunpack.c.l.bf16 %v387
        %v396 = vunpack.c.l.bf16 %v388
        %v397 = vunpack.c.l.bf16 %v389
        %v398 = vunpack.c.l.bf16 %v390
        %v399 = vunpack.c.l.bf16 %v391
        %v400 = vunpack.c.l.bf16 %v392
        %v401 = vld [vmem:[%s4] sm:$0x1]
        %v403 = vperm.slane %v401, 0
        %v405 = vmul.f32 %v393, %v403
        %v406 = vmul.f32 %v394, %v403
        %v407 = vmul.f32 %v395, %v403
        %v408 = vmul.f32 %v396, %v403
        %v409 = vmul.f32 %v397, %v403
        %v410 = vmul.f32 %v398, %v403
        %v411 = vmul.f32 %v399, %v403
        %v412 = vmul.f32 %v400, %v403
        %v413 = vadd.f32 %v377, %v405
        %v414 = vadd.f32 %v378, %v406
        %v415 = vadd.f32 %v379, %v407
        %v416 = vadd.f32 %v380, %v408
        %v417 = vadd.f32 %v381, %v409
        %v418 = vadd.f32 %v382, %v410
        %v419 = vadd.f32 %v383, %v411
        %v420 = vadd.f32 %v384, %v412
        %v421 = vld [vmem:[%s5] sm:$0x1]
        %v423 = vperm.slane %v421, 0
        %v425 = vadd.f32 %v413, %v423
        %v426 = vadd.f32 %v414, %v423
        %v427 = vadd.f32 %v415, %v423
        %v428 = vadd.f32 %v416, %v423
        %v429 = vadd.f32 %v417, %v423
        %v430 = vadd.f32 %v418, %v423
        %v431 = vadd.f32 %v419, %v423
        %v432 = vadd.f32 %v420, %v423
        %v433 = vmax.f32 %v425, 0.0
        %v434 = vmax.f32 %v426, 0.0
        %v435 = vmax.f32 %v427, 0.0
        %v436 = vmax.f32 %v428, 0.0
        %v437 = vmax.f32 %v429, 0.0
        %v438 = vmax.f32 %v430, 0.0
        %v439 = vmax.f32 %v431, 0.0
        %v440 = vmax.f32 %v432, 0.0
        %441 = vst [vmem:[%s344] sm:$0xff] %v433
        %442 = vst [vmem:[%s344 + $0x8] sm:$0xff] %v434
        %443 = vst [vmem:[%s344 + $0x10] sm:$0xff] %v435
        %444 = vst [vmem:[%s344 + $0x18] sm:$0xff] %v436
        %445 = vst [vmem:[%s344 + $0x20] sm:$0xff] %v437
        %446 = vst [vmem:[%s344 + $0x28] sm:$0xff] %v438
        %447 = vst [vmem:[%s344 + $0x30] sm:$0xff] %v439
        %448 = vst [vmem:[%s344 + $0x38] sm:$0xff] %v440
        %p449 = scmp.lt.s32.totalorder %s17, 1
        %s450 = scalar_select %p449, %s17, 1
        %s451 = smul.addr %s450, 8
        %s452 = smul.addr %s451, 8
        %s453 = scalar_lea.vmem %s6, %s452
        // Predicated region
        $region86: #{basic_block_forward.7} parent=80 // pred_check
          %p454 = pneg %p171
        $region87: #{basic_block_forward.7} parent=80 // pred_check_branch
          %456 = sbr.rel (%p454) target = $region89
        $region88: #{basic_block_forward.7} parent=80 // pred_region
          _
        $region89: #{basic_block_forward.7} parent=80 // pred_fallthru
          _
      $region81: #{basic_block_forward.7} parent=5 // pred_fallthru
        _
      %p457 = scmp.le.s32.totalorder 2, %s12
      // Predicated region
      $region90: #{basic_block_forward.7} parent=5 // pred_check
        %p458 = pneg %p457
      $region91: #{basic_block_forward.7} parent=5 // pred_check_branch
        %460 = sbr.rel (%p458) target = $region93
      $region92: #{basic_block_forward.7} parent=5 // pred_region
        %s461 = ssub.s32 %s12, 2
        // Predicated region
        $region94: #{basic_block_forward.7} parent=92 // pred_check
          %p462 = pneg %p177
        $region95: #{basic_block_forward.7} parent=92 // pred_check_branch
          %464 = sbr.rel (%p462) target = $region97
        $region96: #{basic_block_forward.7} parent=92 // pred_region
          %p465 = scmp.lt.s32.totalorder %s18, 1
          %s466 = scalar_select %p465, %s18, 1
          %s467 = smul.addr %s466, 8
          %s468 = smul.addr %s467, 8
          %s469 = scalar_lea.vmem %s6, %s468
        $region97: #{basic_block_forward.7} parent=92 // pred_fallthru
          _
      $region93: #{basic_block_forward.7} parent=5 // pred_fallthru
        _
    $region6: #{basic_block_forward.7} parent=1 // loop_footer
      %s16 = sadd.s32 1, %s12
    $region7: #{basic_block_forward.7} parent=1 // loop_footer_branch
      %11 = sbr.rel target = $region3
    $region8: #{basic_block_forward.7} parent=1 // loop_exit
      _

// kernel: basic_block_forward.4
$region0: #{basic_block_forward.4}
  #allocation0 [shape = 'u32[]', space=smem, size = 0x4, offset = 0x4, fixed_abs, tag = 'smem constant byte address 0x4 - core index']
  #allocation1 [shape = 'u32[72,128]{1,0:T(1,128)}', space=vmem, size = 0x9000, scoped, tag = 'internal scratch']
  %s0 = inlined_call_operand.vmem [shape: bf16[2,4,9,9,128], index: 0, kind: input, shape index: {}]
  %s1 = inlined_call_operand.vmem [shape: bf16[9,128,256], index: 1, kind: input, shape index: {}]
  %s2 = inlined_call_operand.vmem [shape: bf16[2,64,256], index: 2, kind: output, shape index: {0}]
  %s3 = inlined_call_operand.vmem [shape: f32[2,8,256], index: 3, kind: output, shape index: {1}]
  %s4 = inlined_call_operand.vmem [shape: f32[2,8,256], index: 4, kind: output, shape index: {2}]
  %5 = xla_tuple %s2, %s3, %s4
  %s6 = sld [smem:[#allocation0]]
  $region57: #{basic_block_forward.4} parent=0
    _
  %s8 = ssub.s32 1, %s6
  %s9 = scalar_select 0, %s8, %s6
  loop: start=0, step=1, limit=4
  $region2: #{basic_block_forward.4} parent=0 // loop_pre_header
    _
  $region3: #{basic_block_forward.4} parent=0 // loop_header
    %s11 = sphi 0, %s15
    %p12 = scmp.ge.s32.totalorder %s11, 4
    %s21 = sphi 0, %s23
    %s24 = sphi 0, %s21
    %s25 = sphi 0, %s24
    %s41 = sphi 0, %s25
    %s45 = sphi 0, %s45
    %s47 = sphi 0, %s45
    %s48 = sphi 0, %s47
    %s62 = sphi 0, %s48
    %s68 = sphi 0, %s70
    %s71 = sphi 0, %s68
    %s72 = sphi 0, %s71
    %s88 = sphi 0, %s72
    %s94 = sphi 0, %s96
    %s97 = sphi 0, %s94
    %s98 = sphi 0, %s97
    %s114 = sphi 0, %s98
    %s120 = sphi 0, %s122
    %s123 = sphi 0, %s120
    %s124 = sphi 0, %s123
    %s140 = sphi 0, %s124
  $region4: #{basic_block_forward.4} parent=0 // loop_header_branch
    %14 = sbr.rel (%p12) target = $region8
  $region5: #{basic_block_forward.4} parent=0 // loop_body
    %s16 = ssub.s32 %s11, 1
    %s17 = ssub.s32 %s11, 2
    %s18 = sadd.s32 %s11, 1
    %s19 = ssub.s32 %s11, %s18
    %p20 = scmp.eq.s32.totalorder %s19, 0
    %s22 = sadd.s32 %s21, 1
    %s23 = scalar_select %p20, %s21, %s22
    %p26 = pneg %p20
    %p27 = scmp.eq.s32.totalorder %s11, 1
    %p28 = por %p26, %p27
    %p29 = scmp.ne.s32.totalorder %s21, %s24
    %p30 = scmp.eq.s32.totalorder %s11, 0
    %p31 = por %p29, %p30
    %p32 = scmp.ne.s32.totalorder %s21, %s24
    %p33 = scmp.eq.s32.totalorder %s16, 1
    %p34 = por %p32, %p33
    %p35 = scmp.ne.s32.totalorder %s24, %s25
    %p36 = scmp.eq.s32.totalorder %s16, 0
    %p37 = por %p35, %p36
    %p38 = scmp.ne.s32.totalorder %s24, %s25
    %p39 = scmp.eq.s32.totalorder %s17, 1
    %p40 = por %p38, %p39
    %p42 = scmp.ne.s32.totalorder %s25, %s41
    %p43 = scmp.eq.s32.totalorder %s17, 0
    %p44 = por %p42, %p43
    %s46 = sadd.s32 %s45, 1
    %p49 = scmp.eq.s32.totalorder %s11, 1
    %p50 = scmp.ne.s32.totalorder %s45, %s47
    %p51 = scmp.eq.s32.totalorder %s11, 0
    %p52 = por %p50, %p51
    %p53 = scmp.ne.s32.totalorder %s45, %s47
    %p54 = scmp.eq.s32.totalorder %s16, 1
    %p55 = por %p53, %p54
    %p56 = scmp.ne.s32.totalorder %s47, %s48
    %p57 = scmp.eq.s32.totalorder %s16, 0
    %p58 = por %p56, %p57
    %p59 = scmp.ne.s32.totalorder %s47, %s48
    %p60 = scmp.eq.s32.totalorder %s17, 1
    %p61 = por %p59, %p60
    %p63 = scmp.ne.s32.totalorder %s48, %s62
    %p64 = scmp.eq.s32.totalorder %s17, 0
    %p65 = por %p63, %p64
    %s66 = ssub.s32 %s11, %s18
    %p67 = scmp.eq.s32.totalorder %s66, 0
    %s69 = sadd.s32 %s68, 1
    %s70 = scalar_select %p67, %s68, %s69
    %p73 = pneg %p67
    %p74 = scmp.eq.s32.totalorder %s11, 1
    %p75 = por %p73, %p74
    %p76 = scmp.ne.s32.totalorder %s68, %s71
    %p77 = scmp.eq.s32.totalorder %s11, 0
    %p78 = por %p76, %p77
    %p79 = scmp.ne.s32.totalorder %s68, %s71
    %p80 = scmp.eq.s32.totalorder %s16, 1
    %p81 = por %p79, %p80
    %p82 = scmp.ne.s32.totalorder %s71, %s72
    %p83 = scmp.eq.s32.totalorder %s16, 0
    %p84 = por %p82, %p83
    %p85 = scmp.ne.s32.totalorder %s71, %s72
    %p86 = scmp.eq.s32.totalorder %s17, 1
    %p87 = por %p85, %p86
    %p89 = scmp.ne.s32.totalorder %s72, %s88
    %p90 = scmp.eq.s32.totalorder %s17, 0
    %p91 = por %p89, %p90
    %s92 = ssub.s32 %s11, %s18
    %p93 = scmp.eq.s32.totalorder %s92, 0
    %s95 = sadd.s32 %s94, 1
    %s96 = scalar_select %p93, %s94, %s95
    %p99 = pneg %p93
    %p100 = scmp.eq.s32.totalorder %s11, 1
    %p101 = por %p99, %p100
    %p102 = scmp.ne.s32.totalorder %s94, %s97
    %p103 = scmp.eq.s32.totalorder %s11, 0
    %p104 = por %p102, %p103
    %p105 = scmp.ne.s32.totalorder %s94, %s97
    %p106 = scmp.eq.s32.totalorder %s16, 1
    %p107 = por %p105, %p106
    %p108 = scmp.ne.s32.totalorder %s97, %s98
    %p109 = scmp.eq.s32.totalorder %s16, 0
    %p110 = por %p108, %p109
    %p111 = scmp.ne.s32.totalorder %s97, %s98
    %p112 = scmp.eq.s32.totalorder %s17, 1
    %p113 = por %p111, %p112
    %p115 = scmp.ne.s32.totalorder %s98, %s114
    %p116 = scmp.eq.s32.totalorder %s17, 0
    %p117 = por %p115, %p116
    %s118 = ssub.s32 %s11, %s18
    %p119 = scmp.eq.s32.totalorder %s118, 0
    %s121 = sadd.s32 %s120, 1
    %s122 = scalar_select %p119, %s120, %s121
    %p125 = pneg %p119
    %p126 = scmp.eq.s32.totalorder %s11, 1
    %p127 = por %p125, %p126
    %p128 = scmp.ne.s32.totalorder %s120, %s123
    %p129 = scmp.eq.s32.totalorder %s11, 0
    %p130 = por %p128, %p129
    %p131 = scmp.ne.s32.totalorder %s120, %s123
    %p132 = scmp.eq.s32.totalorder %s16, 1
    %p133 = por %p131, %p132
    %p134 = scmp.ne.s32.totalorder %s123, %s124
    %p135 = scmp.eq.s32.totalorder %s16, 0
    %p136 = por %p134, %p135
    %p137 = scmp.ne.s32.totalorder %s123, %s124
    %p138 = scmp.eq.s32.totalorder %s17, 1
    %p139 = por %p137, %p138
    %p141 = scmp.ne.s32.totalorder %s124, %s140
    %p142 = scmp.eq.s32.totalorder %s17, 0
    %p143 = por %p141, %p142
    %p144 = scmp.le.s32.totalorder 1, %s11
    %p145 = scmp.lt.s32.totalorder %s11, 3
    %p146 = pnand %p144, %p145
    %p147 = pneg %p146
    // Predicated region
    $region9: #{basic_block_forward.4} parent=5 // pred_check
      _
    $region10: #{basic_block_forward.4} parent=5 // pred_check_branch
      %149 = sbr.rel (%p146) target = $region12
    $region11: #{basic_block_forward.4} parent=5 // pred_region
      %s150 = ssub.s32 %s11, 1
      // Predicated region
      $region13: #{basic_block_forward.4} parent=11 // pred_check
        %p151 = pneg %p58
      $region14: #{basic_block_forward.4} parent=11 // pred_check_branch
        %153 = sbr.rel (%p151) target = $region16
      $region15: #{basic_block_forward.4} parent=11 // pred_region
        _
      $region16: #{basic_block_forward.4} parent=11 // pred_fallthru
        _
    $region12: #{basic_block_forward.4} parent=5 // pred_fallthru
      _
    %p154 = scmp.lt.s32.totalorder %s11, 2
    // Predicated region
    $region17: #{basic_block_forward.4} parent=5 // pred_check
      %p155 = pneg %p154
    $region18: #{basic_block_forward.4} parent=5 // pred_check_branch
      %157 = sbr.rel (%p155) target = $region20
    $region19: #{basic_block_forward.4} parent=5 // pred_region
      // Predicated region
      $region21: #{basic_block_forward.4} parent=19 // pred_check
        %p158 = pneg %p31
      $region22: #{basic_block_forward.4} parent=19 // pred_check_branch
        %160 = sbr.rel (%p158) target = $region24
      $region23: #{basic_block_forward.4} parent=19 // pred_region
        %p161 = scmp.lt.s32.totalorder %s11, 1
        %s162 = scalar_select %p161, %s11, 1
        %s163 = smul.addr %s162, 72
        %s164 = smul.addr %s163, 4
        %s165 = scalar_lea.vmem %s0, %s164
      $region24: #{basic_block_forward.4} parent=19 // pred_fallthru
        _
    $region20: #{basic_block_forward.4} parent=5 // pred_fallthru
      _
    %p166 = scmp.le.s32.totalorder 1, %s11
    %p167 = scmp.lt.s32.totalorder %s11, 3
    %p168 = pnand %p166, %p167
    %p169 = pneg %p168
    // Predicated region
    $region25: #{basic_block_forward.4} parent=5 // pred_check
      _
    $region26: #{basic_block_forward.4} parent=5 // pred_check_branch
      %171 = sbr.rel (%p168) target = $region28
    $region27: #{basic_block_forward.4} parent=5 // pred_region
      %s172 = ssub.s32 %s11, 1
      %p173 = scmp.lt.s32.totalorder %s16, 1
      %s174 = scalar_select %p173, %s16, 1
      %s175 = smul.addr %s174, 72
      %s176 = smul.addr %s175, 4
      %s177 = scalar_lea.vmem %s0, %s176
      %p178 = pneg %p37
      %p179 = pneg %p34
      %p180 = pneg %p58
      %p181 = pneg %p55
      %p182 = pneg %p84
      %p183 = pneg %p81
      %p184 = scmp.lt.s32.totalorder %s16, 1
      %s185 = scalar_select %p184, %s16, 1
      %s186 = smul.addr %s185, 16
      %s187 = smul.addr %s186, 4
      %s188 = scalar_lea.vmem %s2, %s187
      %p189 = pneg %p110
      %p190 = pneg %p107
      %p191 = scmp.lt.s32.totalorder %s16, 1
      %s192 = scalar_select %p191, %s16, 1
      %s193 = smul.addr %s192, 2
      %s194 = smul.addr %s193, 8
      %s195 = scalar_lea.vmem %s3, %s194
      %p196 = pneg %p136
      %p197 = pneg %p133
      %p198 = scmp.lt.s32.totalorder %s16, 1
      %s199 = scalar_select %p198, %s16, 1
      %s200 = smul.addr %s199, 2
      %s201 = smul.addr %s200, 8
      %s202 = scalar_lea.vmem %s4, %s201
      %p203 = scmp.lt.s32.totalorder %s16, 1
      %s204 = scalar_select %p203, %s16, 1
      %s205 = smul.addr %s204, 72
      %s206 = smul.addr %s205, 4
      %s207 = scalar_lea.vmem %s0, %s206
      %p208 = scmp.lt.s32.totalorder %s16, 1
      %s209 = scalar_select %p208, %s16, 1
      %s210 = smul.addr %s209, 16
      %s211 = smul.addr %s210, 4
      %s212 = scalar_lea.vmem %s2, %s211
      %p213 = scmp.lt.s32.totalorder %s16, 1
      %s214 = scalar_select %p213, %s16, 1
      %s215 = smul.addr %s214, 2
      %s216 = smul.addr %s215, 8
      %s217 = scalar_lea.vmem %s3, %s216
      %p218 = scmp.lt.s32.totalorder %s16, 1
      %s219 = scalar_select %p218, %s16, 1
      %s220 = smul.addr %s219, 2
      %s221 = smul.addr %s220, 8
      %s222 = scalar_lea.vmem %s4, %s221
      %v223 = vld [vmem:[%s207] sm:$0xf]
      %v224 = vld [vmem:[%s207 + $0x4] sm:$0x1]
      %v225 = vld [vmem:[%s207 + $0x8] sm:$0xf]
      %v226 = vld [vmem:[%s207 + $0xc] sm:$0x1]
      %v227 = vld [vmem:[%s207 + $0x10] sm:$0xf]
      %v228 = vld [vmem:[%s207 + $0x14] sm:$0x1]
      %v229 = vld [vmem:[%s207 + $0x18] sm:$0xf]
      %v230 = vld [vmem:[%s207 + $0x1c] sm:$0x1]
      %v231 = vld [vmem:[%s207 + $0x20] sm:$0xf]
      %v232 = vld [vmem:[%s207 + $0x24] sm:$0x1]
      %v233 = vld [vmem:[%s207 + $0x28] sm:$0xf]
      %v234 = vld [vmem:[%s207 + $0x2c] sm:$0x1]
      %v235 = vld [vmem:[%s207 + $0x30] sm:$0xf]
      %v236 = vld [vmem:[%s207 + $0x34] sm:$0x1]
      %v237 = vld [vmem:[%s207 + $0x38] sm:$0xf]
      %v238 = vld [vmem:[%s207 + $0x3c] sm:$0x1]
      %v239 = vld [vmem:[%s207 + $0x40] sm:$0xf]
      %v240 = vld [vmem:[%s207 + $0x44] sm:$0x1]
      %v241 = vld [vmem:[%s207 + $0x48] sm:$0xf]
      %v242 = vld [vmem:[%s207 + $0x50] sm:$0xf]
      %v243 = vld [vmem:[%s207 + $0x58] sm:$0xf]
      %v244 = vld [vmem:[%s207 + $0x60] sm:$0xf]
      %v245 = vld [vmem:[%s207 + $0x68] sm:$0xf]
      %v246 = vld [vmem:[%s207 + $0x70] sm:$0xf]
      %v247 = vld [vmem:[%s207 + $0x78] sm:$0xf]
      %v248 = vld [vmem:[%s207 + $0x80] sm:$0xf]
      %v249 = vld [vmem:[%s207 + $0x88] sm:$0xf]
      %v250 = vld [vmem:[%s207 + $0x90] sm:$0xf]
      %v251 = vld [vmem:[%s207 + $0x94] sm:$0x1]
      %v252 = vld [vmem:[%s207 + $0x98] sm:$0xf]
      %v253 = vld [vmem:[%s207 + $0x9c] sm:$0x1]
      %v254 = vld [vmem:[%s207 + $0xa0] sm:$0xf]
      %v255 = vld [vmem:[%s207 + $0xa4] sm:$0x1]
      %v256 = vld [vmem:[%s207 + $0xa8] sm:$0xf]
      %v257 = vld [vmem:[%s207 + $0xac] sm:$0x1]
      %v258 = vld [vmem:[%s207 + $0xb0] sm:$0xf]
      %v259 = vld [vmem:[%s207 + $0xb4] sm:$0x1]
      %v260 = vld [vmem:[%s207 + $0xb8] sm:$0xf]
      %v261 = vld [vmem:[%s207 + $0xbc] sm:$0x1]
      %v262 = vld [vmem:[%s207 + $0xc0] sm:$0xf]
      %v263 = vld [vmem:[%s207 + $0xc4] sm:$0x1]
      %v264 = vld [vmem:[%s207 + $0xc8] sm:$0xf]
      %v265 = vld [vmem:[%s207 + $0xcc] sm:$0x1]
      %v266 = vld [vmem:[%s207 + $0xd8] sm:$0xf]
      %v267 = vld [vmem:[%s207 + $0xe0] sm:$0xf]
      %v268 = vld [vmem:[%s207 + $0xe8] sm:$0xf]
      %v269 = vld [vmem:[%s207 + $0xf0] sm:$0xf]
      %v270 = vld [vmem:[%s207 + $0xf8] sm:$0xf]
      %v271 = vld [vmem:[%s207 + $0x100] sm:$0xf]
      %v272 = vld [vmem:[%s207 + $0x108] sm:$0xf]
      %v273 = vld [vmem:[%s207 + $0x110] sm:$0xf]
      %v274 = vld [vmem:[%s1] sm:$0xff]
      %v275 = vld [vmem:[%s1 + $0x8] sm:$0xff]
      %v276 = vld [vmem:[%s1 + $0x10] sm:$0xff]
      %v277 = vld [vmem:[%s1 + $0x18] sm:$0xff]
      %v278 = vld [vmem:[%s1 + $0x20] sm:$0xff]
      %v279 = vld [vmem:[%s1 + $0x28] sm:$0xff]
      %v280 = vld [vmem:[%s1 + $0x30] sm:$0xff]
      %v281 = vld [vmem:[%s1 + $0x38] sm:$0xff]
      %v282 = vld [vmem:[%s1 + $0x40] sm:$0xff]
      %v283 = vld [vmem:[%s1 + $0x48] sm:$0xff]
      %v284 = vld [vmem:[%s1 + $0x50] sm:$0xff]
      %v285 = vld [vmem:[%s1 + $0x58] sm:$0xff]
      %v286 = vld [vmem:[%s1 + $0x60] sm:$0xff]
      %v287 = vld [vmem:[%s1 + $0x68] sm:$0xff]
      %v288 = vld [vmem:[%s1 + $0x70] sm:$0xff]
      %v289 = vld [vmem:[%s1 + $0x78] sm:$0xff]
      %s290 = scalar_lea.vmem %s1, 128
      %v291 = vld [vmem:[%s290] sm:$0xff]
      %v292 = vld [vmem:[%s290 + $0x8] sm:$0xff]
      %v293 = vld [vmem:[%s290 + $0x10] sm:$0xff]
      %v294 = vld [vmem:[%s290 + $0x18] sm:$0xff]
      %v295 = vld [vmem:[%s290 + $0x20] sm:$0xff]
      %v296 = vld [vmem:[%s290 + $0x28] sm:$0xff]
      %v297 = vld [vmem:[%s290 + $0x30] sm:$0xff]
      %v298 = vld [vmem:[%s290 + $0x38] sm:$0xff]
      %v299 = vld [vmem:[%s290 + $0x40] sm:$0xff]
      %v300 = vld [vmem:[%s290 + $0x48] sm:$0xff]
      %v301 = vld [vmem:[%s290 + $0x50] sm:$0xff]
      %v302 = vld [vmem:[%s290 + $0x58] sm:$0xff]
      %v303 = vld [vmem:[%s290 + $0x60] sm:$0xff]
      %v304 = vld [vmem:[%s290 + $0x68] sm:$0xff]
      %v305 = vld [vmem:[%s290 + $0x70] sm:$0xff]
      %v306 = vld [vmem:[%s290 + $0x78] sm:$0xff]
      %v315 = vunpack.c.l.b16 %v241
      %v316 = vunpack.c.l.b16 %v242
      %v317 = vunpack.c.l.b16 %v243
      %v318 = vunpack.c.l.b16 %v244
      %v319 = vunpack.c.l.b16 %v245
      %v320 = vunpack.c.l.b16 %v246
      %v321 = vunpack.c.l.b16 %v247
      %v322 = vunpack.c.l.b16 %v248
      %v323 = vpack.c.b16 %v316, %v315
      %v324 = vpack.c.b16 %v318, %v317
      %v325 = vpack.c.b16 %v320, %v319
      %v326 = vpack.c.b16 %v322, %v321
      %v347 = vunpack.c.l.b16 %v291
      %v348 = vunpack.c.h.b16 %v291
      %v349 = vunpack.c.l.b16 %v292
      %v350 = vunpack.c.h.b16 %v292
      %v351 = vunpack.c.l.b16 %v293
      %v352 = vunpack.c.h.b16 %v293
      %v353 = vunpack.c.l.b16 %v294
      %v354 = vunpack.c.h.b16 %v294
      %v355 = vunpack.c.l.b16 %v295
      %v356 = vunpack.c.h.b16 %v295
      %v357 = vunpack.c.l.b16 %v296
      %v358 = vunpack.c.h.b16 %v296
      %v359 = vunpack.c.l.b16 %v297
      %v360 = vunpack.c.h.b16 %v297
      %v361 = vunpack.c.l.b16 %v298
      %v362 = vunpack.c.h.b16 %v298
      %v363 = vunpack.c.l.b16 %v299
      %v364 = vunpack.c.h.b16 %v299
      %v365 = vunpack.c.l.b16 %v300
      %v366 = vunpack.c.h.b16 %v300
      %v367 = vunpack.c.l.b16 %v301
      %v368 = vunpack.c.h.b16 %v301
      %v369 = vunpack.c.l.b16 %v302
      %v370 = vunpack.c.h.b16 %v302
      %v371 = vunpack.c.l.b16 %v303
      %v372 = vunpack.c.h.b16 %v303
      %v373 = vunpack.c.l.b16 %v304
      %v374 = vunpack.c.h.b16 %v304
      %v375 = vunpack.c.l.b16 %v305
      %v376 = vunpack.c.h.b16 %v305
      %v377 = vunpack.c.l.b16 %v306
      %v378 = vunpack.c.h.b16 %v306
      %v379 = vpack.c.b16 %v349, %v347
      %v380 = vpack.c.b16 %v350, %v348
      %v381 = vpack.c.b16 %v353, %v351
      %v382 = vpack.c.b16 %v354, %v352
      %v383 = vpack.c.b16 %v357, %v355
      %v384 = vpack.c.b16 %v358, %v356
      %v385 = vpack.c.b16 %v361, %v359
      %v386 = vpack.c.b16 %v362, %v360
      %v387 = vpack.c.b16 %v365, %v363
      %v388 = vpack.c.b16 %v366, %v364
      %v389 = vpack.c.b16 %v369, %v367
      %v390 = vpack.c.b16 %v370, %v368
      %v391 = vpack.c.b16 %v373, %v371
      %v392 = vpack.c.b16 %v374, %v372
      %v393 = vpack.c.b16 %v377, %v375
      %v394 = vpack.c.b16 %v378, %v376
      %411 = vmatpush.bf16.msra.mxu0 %v393
      %412 = vmatpush.bf16.msra.mxu0 %v391
      %413 = vmatpush.bf16.msra.mxu0 %v389
      %414 = vmatpush.bf16.msra.mxu0 %v387
      %415 = vmatpush.bf16.msra.mxu0 %v385
      %416 = vmatpush.bf16.msra.mxu0 %v383
      %417 = vmatpush.bf16.msra.mxu0 %v381
      %418 = vmatpush.bf16.msra.mxu0 %v379
      %419 = vmatmul.bf16.gmra.mxu0 %v323
      %v420 = vpop.f32.mrf.mxu0
      %v421 = vadd.f32 0.0, %v420
      %v422 = vpop.f32.mrf.mxu0
      %v423 = vadd.f32 0.0, %v422
      %424 = vmatmul.bf16.gmra.mxu0 %v324
      %v425 = vpop.f32.mrf.mxu0
      %v426 = vadd.f32 0.0, %v425
      %v427 = vpop.f32.mrf.mxu0
      %v428 = vadd.f32 0.0, %v427
      %429 = vmatmul.bf16.gmra.mxu0 %v325
      %v430 = vpop.f32.mrf.mxu0
      %v431 = vadd.f32 0.0, %v430
      %v432 = vpop.f32.mrf.mxu0
      %v433 = vadd.f32 0.0, %v432
      %434 = vmatmul.bf16.gmra.mxu0 %v326
      %v435 = vpop.f32.mrf.mxu0
      %v436 = vadd.f32 0.0, %v435
      %v437 = vpop.f32.mrf.mxu0
      %v438 = vadd.f32 0.0, %v437
      %439 = vdwg.mxu0
      %440 = vmatpush.bf16.msra.mxu0 %v394
      %441 = vmatpush.bf16.msra.mxu0 %v392
      %442 = vmatpush.bf16.msra.mxu0 %v390
      %443 = vmatpush.bf16.msra.mxu0 %v388
      %444 = vmatpush.bf16.msra.mxu0 %v386
      %445 = vmatpush.bf16.msra.mxu0 %v384
      %446 = vmatpush.bf16.msra.mxu0 %v382
      %447 = vmatpush.bf16.msra.mxu0 %v380
      %448 = vmatmul.bf16.gmra.mxu0 %v323
      %v449 = vpop.f32.mrf.mxu0
      %v450 = vadd.f32 0.0, %v449
      %v451 = vpop.f32.mrf.mxu0
      %v452 = vadd.f32 0.0, %v451
      %453 = vmatmul.bf16.gmra.mxu0 %v324
      %v454 = vpop.f32.mrf.mxu0
      %v455 = vadd.f32 0.0, %v454
      %v456 = vpop.f32.mrf.mxu0
      %v457 = vadd.f32 0.0, %v456
      %458 = vmatmul.bf16.gmra.mxu0 %v325
      %v459 = vpop.f32.mrf.mxu0
      %v460 = vadd.f32 0.0, %v459
      %v461 = vpop.f32.mrf.mxu0
      %v462 = vadd.f32 0.0, %v461
      %463 = vmatmul.bf16.gmra.mxu0 %v326
      %v464 = vpop.f32.mrf.mxu0
      %v465 = vadd.f32 0.0, %v464
      %v466 = vpop.f32.mrf.mxu0
      %v467 = vadd.f32 0.0, %v466
      %468 = vdwg.mxu0
      %v477 = vunpack.c.l.b16 %v223
      %v478 = vunpack.c.l.b16 %v225
      %v479 = vunpack.c.l.b16 %v227
      %v480 = vunpack.c.l.b16 %v229
      %v481 = vunpack.c.l.b16 %v231
      %v482 = vunpack.c.l.b16 %v233
      %v483 = vunpack.c.l.b16 %v235
      %v484 = vunpack.c.l.b16 %v237
      %v485 = vpack.c.b16 %v478, %v477
      %v486 = vpack.c.b16 %v480, %v479
      %v487 = vpack.c.b16 %v482, %v481
      %v488 = vpack.c.b16 %v484, %v483
      %v509 = vunpack.c.l.b16 %v274
      %v510 = vunpack.c.h.b16 %v274
      %v511 = vunpack.c.l.b16 %v275
      %v512 = vunpack.c.h.b16 %v275
      %v513 = vunpack.c.l.b16 %v276
      %v514 = vunpack.c.h.b16 %v276
      %v515 = vunpack.c.l.b16 %v277
      %v516 = vunpack.c.h.b16 %v277
      %v517 = vunpack.c.l.b16 %v278
      %v518 = vunpack.c.h.b16 %v278
      %v519 = vunpack.c.l.b16 %v279
      %v520 = vunpack.c.h.b16 %v279
      %v521 = vunpack.c.l.b16 %v280
      %v522 = vunpack.c.h.b16 %v280
      %v523 = vunpack.c.l.b16 %v281
      %v524 = vunpack.c.h.b16 %v281
      %v525 = vunpack.c.l.b16 %v282
      %v526 = vunpack.c.h.b16 %v282
      %v527 = vunpack.c.l.b16 %v283
      %v528 = vunpack.c.h.b16 %v283
      %v529 = vunpack.c.l.b16 %v284
      %v530 = vunpack.c.h.b16 %v284
      %v531 = vunpack.c.l.b16 %v285
      %v532 = vunpack.c.h.b16 %v285
      %v533 = vunpack.c.l.b16 %v286
      %v534 = vunpack.c.h.b16 %v286
      %v535 = vunpack.c.l.b16 %v287
      %v536 = vunpack.c.h.b16 %v287
      %v537 = vunpack.c.l.b16 %v288
      %v538 = vunpack.c.h.b16 %v288
      %v539 = vunpack.c.l.b16 %v289
      %v540 = vunpack.c.h.b16 %v289
      %v541 = vpack.c.b16 %v511, %v509
      %v542 = vpack.c.b16 %v512, %v510
      %v543 = vpack.c.b16 %v515, %v513
      %v544 = vpack.c.b16 %v516, %v514
      %v545 = vpack.c.b16 %v519, %v517
      %v546 = vpack.c.b16 %v520, %v518
      %v547 = vpack.c.b16 %v523, %v521
      %v548 = vpack.c.b16 %v524, %v522
      %v549 = vpack.c.b16 %v527, %v525
      %v550 = vpack.c.b16 %v528, %v526
      %v551 = vpack.c.b16 %v531, %v529
      %v552 = vpack.c.b16 %v532, %v530
      %v553 = vpack.c.b16 %v535, %v533
      %v554 = vpack.c.b16 %v536, %v534
      %v555 = vpack.c.b16 %v539, %v537
      %v556 = vpack.c.b16 %v540, %v538
      %573 = vmatpush.bf16.msra.mxu0 %v555
      %574 = vmatpush.bf16.msra.mxu0 %v553
      %575 = vmatpush.bf16.msra.mxu0 %v551
      %576 = vmatpush.bf16.msra.mxu0 %v549
      %577 = vmatpush.bf16.msra.mxu0 %v547
      %578 = vmatpush.bf16.msra.mxu0 %v545
      %579 = vmatpush.bf16.msra.mxu0 %v543
      %580 = vmatpush.bf16.msra.mxu0 %v541
      %581 = vmatmul.bf16.gmra.mxu0 %v485
      %v582 = vpop.f32.mrf.mxu0
      %v583 = vadd.f32 %v421, %v582
      %v584 = vpop.f32.mrf.mxu0
      %v585 = vadd.f32 %v423, %v584
      %586 = vmatmul.bf16.gmra.mxu0 %v486
      %v587 = vpop.f32.mrf.mxu0
      %v588 = vadd.f32 %v426, %v587
      %v589 = vpop.f32.mrf.mxu0
      %v590 = vadd.f32 %v428, %v589
      %591 = vmatmul.bf16.gmra.mxu0 %v487
      %v592 = vpop.f32.mrf.mxu0
      %v593 = vadd.f32 %v431, %v592
      %v594 = vpop.f32.mrf.mxu0
      %v595 = vadd.f32 %v433, %v594
      %596 = vmatmul.bf16.gmra.mxu0 %v488
      %v597 = vpop.f32.mrf.mxu0
      %v598 = vadd.f32 %v436, %v597
      %v599 = vpop.f32.mrf.mxu0
      %v600 = vadd.f32 %v438, %v599
      %601 = vdwg.mxu0
      %602 = vmatpush.bf16.msra.mxu0 %v556
      %603 = vmatpush.bf16.msra.mxu0 %v554
      %604 = vmatpush.bf16.msra.mxu0 %v552
      %605 = vmatpush.bf16.msra.mxu0 %v550
      %606 = vmatpush.bf16.msra.mxu0 %v548
      %607 = vmatpush.bf16.msra.mxu0 %v546
      %608 = vmatpush.bf16.msra.mxu0 %v544
      %609 = vmatpush.bf16.msra.mxu0 %v542
      %610 = vmatmul.bf16.gmra.mxu0 %v485
      %v611 = vpop.f32.mrf.mxu0
      %v612 = vadd.f32 %v450, %v611
      %v613 = vpop.f32.mrf.mxu0
      %v614 = vadd.f32 %v452, %v613
      %615 = vmatmul.bf16.gmra.mxu0 %v486
      %v616 = vpop.f32.mrf.mxu0
      %v617 = vadd.f32 %v455, %v616
      %v618 = vpop.f32.mrf.mxu0
      %v619 = vadd.f32 %v457, %v618
      %620 = vmatmul.bf16.gmra.mxu0 %v487
      %v621 = vpop.f32.mrf.mxu0
      %v622 = vadd.f32 %v460, %v621
      %v623 = vpop.f32.mrf.mxu0
      %v624 = vadd.f32 %v462, %v623
      %625 = vmatmul.bf16.gmra.mxu0 %v488
      %v626 = vpop.f32.mrf.mxu0
      %v627 = vadd.f32 %v465, %v626
      %v628 = vpop.f32.mrf.mxu0
      %v629 = vadd.f32 %v467, %v628
      %630 = vdwg.mxu0
      %vm631 = vsmask.f32 3328
      %vm632 = vsmask.f32 7440
      %vm633 = vmor %vm631, %vm632
      %v635 = vshrl.u32 %v223, 16
      %v637 = vrot.slane %v635, 4
      %v638 = vshll.u32 %v223, 16
      %v640 = vrot.slane %v638, 5
      %v641 = vor.u32 %v637, %v640
      %v642 = vrot.slane %v641, 4
      %v644 = vshll.u32 %v224, 16
      %v646 = vrot.slane %v644, 5
      %v647 = vsel %vm633, %v642, %v646
      %v649 = vshrl.u32 %v225, 16
      %v651 = vrot.slane %v649, 4
      %v652 = vshll.u32 %v225, 16
      %v654 = vrot.slane %v652, 5
      %v655 = vor.u32 %v651, %v654
      %v656 = vrot.slane %v655, 4
      %v658 = vshll.u32 %v226, 16
      %v660 = vrot.slane %v658, 5
      %v661 = vsel %vm633, %v656, %v660
      %v663 = vshrl.u32 %v227, 16
      %v665 = vrot.slane %v663, 4
      %v666 = vshll.u32 %v227, 16
      %v668 = vrot.slane %v666, 5
      %v669 = vor.u32 %v665, %v668
      %v670 = vrot.slane %v669, 4
      %v672 = vshll.u32 %v228, 16
      %v674 = vrot.slane %v672, 5
      %v675 = vsel %vm633, %v670, %v674
      %v677 = vshrl.u32 %v229, 16
      %v679 = vrot.slane %v677, 4
      %v680 = vshll.u32 %v229, 16
      %v682 = vrot.slane %v680, 5
      %v683 = vor.u32 %v679, %v682
      %v684 = vrot.slane %v683, 4
      %v686 = vshll.u32 %v230, 16
      %v688 = vrot.slane %v686, 5
      %v689 = vsel %vm633, %v684, %v688
      %v691 = vshrl.u32 %v231, 16
      %v693 = vrot.slane %v691, 4
      %v694 = vshll.u32 %v231, 16
      %v696 = vrot.slane %v694, 5
      %v697 = vor.u32 %v693, %v696
      %v698 = vrot.slane %v697, 4
      %v700 = vshll.u32 %v232, 16
      %v702 = vrot.slane %v700, 5
      %v703 = vsel %vm633, %v698, %v702
      %v705 = vshrl.u32 %v233, 16
      %v707 = vrot.slane %v705, 4
      %v708 = vshll.u32 %v233, 16
      %v710 = vrot.slane %v708, 5
      %v711 = vor.u32 %v707, %v710
      %v712 = vrot.slane %v711, 4
      %v714 = vshll.u32 %v234, 16
      %v716 = vrot.slane %v714, 5
      %v717 = vsel %vm633, %v712, %v716
      %v719 = vshrl.u32 %v235, 16
      %v721 = vrot.slane %v719, 4
      %v722 = vshll.u32 %v235, 16
      %v724 = vrot.slane %v722, 5
      %v725 = vor.u32 %v721, %v724
      %v726 = vrot.slane %v725, 4
      %v728 = vshll.u32 %v236, 16
      %v730 = vrot.slane %v728, 5
      %v731 = vsel %vm633, %v726, %v730
      %v733 = vshrl.u32 %v237, 16
      %v735 = vrot.slane %v733, 4
      %v736 = vshll.u32 %v237, 16
      %v738 = vrot.slane %v736, 5
      %v739 = vor.u32 %v735, %v738
      %v740 = vrot.slane %v739, 4
      %v742 = vshll.u32 %v238, 16
      %v744 = vrot.slane %v742, 5
      %v745 = vsel %vm633, %v740, %v744
      %s746 = scalar_lea.vmem %s1, 256
      %v747 = vld [vmem:[%s746] sm:$0xff]
      %v748 = vld [vmem:[%s746 + $0x8] sm:$0xff]
      %v749 = vld [vmem:[%s746 + $0x10] sm:$0xff]
      %v750 = vld [vmem:[%s746 + $0x18] sm:$0xff]
      %v751 = vld [vmem:[%s746 + $0x20] sm:$0xff]
      %v752 = vld [vmem:[%s746 + $0x28] sm:$0xff]
      %v753 = vld [vmem:[%s746 + $0x30] sm:$0xff]
      %v754 = vld [vmem:[%s746 + $0x38] sm:$0xff]
      %v755 = vld [vmem:[%s746 + $0x40] sm:$0xff]
      %v756 = vld [vmem:[%s746 + $0x48] sm:$0xff]
      %v757 = vld [vmem:[%s746 + $0x50] sm:$0xff]
      %v758 = vld [vmem:[%s746 + $0x58] sm:$0xff]
      %v759 = vld [vmem:[%s746 + $0x60] sm:$0xff]
      %v760 = vld [vmem:[%s746 + $0x68] sm:$0xff]
      %v761 = vld [vmem:[%s746 + $0x70] sm:$0xff]
      %v762 = vld [vmem:[%s746 + $0x78] sm:$0xff]
      %v763 = vunpack.c.l.b16 %v647
      %v764 = vunpack.c.l.b16 %v661
      %v765 = vunpack.c.l.b16 %v675
      %v766 = vunpack.c.l.b16 %v689
      %v767 = vunpack.c.l.b16 %v703
      %v768 = vunpack.c.l.b16 %v717
      %v769 = vunpack.c.l.b16 %v731
      %v770 = vunpack.c.l.b16 %v745
      %v771 = vpack.c.b16 %v764, %v763
      %v772 = vpack.c.b16 %v766, %v765
      %v773 = vpack.c.b16 %v768, %v767
      %v774 = vpack.c.b16 %v770, %v769
      %v795 = vunpack.c.l.b16 %v747
      %v796 = vunpack.c.h.b16 %v747
      %v797 = vunpack.c.l.b16 %v748
      %v798 = vunpack.c.h.b16 %v748
      %v799 = vunpack.c.l.b16 %v749
      %v800 = vunpack.c.h.b16 %v749
      %v801 = vunpack.c.l.b16 %v750
      %v802 = vunpack.c.h.b16 %v750
      %v803 = vunpack.c.l.b16 %v751
      %v804 = vunpack.c.h.b16 %v751
      %v805 = vunpack.c.l.b16 %v752
      %v806 = vunpack.c.h.b16 %v752
      %v807 = vunpack.c.l.b16 %v753
      %v808 = vunpack.c.h.b16 %v753
      %v809 = vunpack.c.l.b16 %v754
      %v810 = vunpack.c.h.b16 %v754
      %v811 = vunpack.c.l.b16 %v755
      %v812 = vunpack.c.h.b16 %v755
      %v813 = vunpack.c.l.b16 %v756
      %v814 = vunpack.c.h.b16 %v756
      %v815 = vunpack.c.l.b16 %v757
      %v816 = vunpack.c.h.b16 %v757
      %v817 = vunpack.c.l.b16 %v758
      %v818 = vunpack.c.h.b16 %v758
      %v819 = vunpack.c.l.b16 %v759
      %v820 = vunpack.c.h.b16 %v759
      %v821 = vunpack.c.l.b16 %v760
      %v822 = vunpack.c.h.b16 %v760
      %v823 = vunpack.c.l.b16 %v761
      %v824 = vunpack.c.h.b16 %v761
      %v825 = vunpack.c.l.b16 %v762
      %v826 = vunpack.c.h.b16 %v762
      %v827 = vpack.c.b16 %v797, %v795
      %v828 = vpack.c.b16 %v798, %v796
      %v829 = vpack.c.b16 %v801, %v799
      %v830 = vpack.c.b16 %v802, %v800
      %v831 = vpack.c.b16 %v805, %v803
      %v832 = vpack.c.b16 %v806, %v804
      %v833 = vpack.c.b16 %v809, %v807
      %v834 = vpack.c.b16 %v810, %v808
      %v835 = vpack.c.b16 %v813, %v811
      %v836 = vpack.c.b16 %v814, %v812
      %v837 = vpack.c.b16 %v817, %v815
      %v838 = vpack.c.b16 %v818, %v816
      %v839 = vpack.c.b16 %v821, %v819
      %v840 = vpack.c.b16 %v822, %v820
      %v841 = vpack.c.b16 %v825, %v823
      %v842 = vpack.c.b16 %v826, %v824
      %859 = vmatpush.bf16.msra.mxu0 %v841
      %860 = vmatpush.bf16.msra.mxu0 %v839
      %861 = vmatpush.bf16.msra.mxu0 %v837
      %862 = vmatpush.bf16.msra.mxu0 %v835
      %863 = vmatpush.bf16.msra.mxu0 %v833
      %864 = vmatpush.bf16.msra.mxu0 %v831
      %865 = vmatpush.bf16.msra.mxu0 %v829
      %866 = vmatpush.bf16.msra.mxu0 %v827
      %867 = vmatmul.bf16.gmra.mxu0 %v771
      %v868 = vpop.f32.mrf.mxu0
      %v869 = vadd.f32 0.0, %v868
      %v870 = vpop.f32.mrf.mxu0
      %v871 = vadd.f32 0.0, %v870
      %872 = vmatmul.bf16.gmra.mxu0 %v772
      %v873 = vpop.f32.mrf.mxu0
      %v874 = vadd.f32 0.0, %v873
      %v875 = vpop.f32.mrf.mxu0
      %v876 = vadd.f32 0.0, %v875
      %877 = vmatmul.bf16.gmra.mxu0 %v773
      %v878 = vpop.f32.mrf.mxu0
      %v879 = vadd.f32 0.0, %v878
      %v880 = vpop.f32.mrf.mxu0
      %v881 = vadd.f32 0.0, %v880
      %882 = vmatmul.bf16.gmra.mxu0 %v774
      %v883 = vpop.f32.mrf.mxu0
      %v884 = vadd.f32 0.0, %v883
      %v885 = vpop.f32.mrf.mxu0
      %v886 = vadd.f32 0.0, %v885
      %887 = vdwg.mxu0
      %888 = vmatpush.bf16.msra.mxu0 %v842
      %889 = vmatpush.bf16.msra.mxu0 %v840
      %890 = vmatpush.bf16.msra.mxu0 %v838
      %891 = vmatpush.bf16.msra.mxu0 %v836
      %892 = vmatpush.bf16.msra.mxu0 %v834
      %893 = vmatpush.bf16.msra.mxu0 %v832
      %894 = vmatpush.bf16.msra.mxu0 %v830
      %895 = vmatpush.bf16.msra.mxu0 %v828
      %896 = vmatmul.bf16.gmra.mxu0 %v771
      %v897 = vpop.f32.mrf.mxu0
      %v898 = vadd.f32 0.0, %v897
      %v899 = vpop.f32.mrf.mxu0
      %v900 = vadd.f32 0.0, %v899
      %901 = vmatmul.bf16.gmra.mxu0 %v772
      %v902 = vpop.f32.mrf.mxu0
      %v903 = vadd.f32 0.0, %v902
      %v904 = vpop.f32.mrf.mxu0
      %v905 = vadd.f32 0.0, %v904
      %906 = vmatmul.bf16.gmra.mxu0 %v773
      %v907 = vpop.f32.mrf.mxu0
      %v908 = vadd.f32 0.0, %v907
      %v909 = vpop.f32.mrf.mxu0
      %v910 = vadd.f32 0.0, %v909
      %911 = vmatmul.bf16.gmra.mxu0 %v774
      %v912 = vpop.f32.mrf.mxu0
      %v913 = vadd.f32 0.0, %v912
      %v914 = vpop.f32.mrf.mxu0
      %v915 = vadd.f32 0.0, %v914
      %916 = vdwg.mxu0
      %v917 = vadd.f32 %v583, %v869
      %v918 = vadd.f32 %v612, %v898
      %v919 = vadd.f32 %v585, %v871
      %v920 = vadd.f32 %v614, %v900
      %v921 = vadd.f32 %v588, %v874
      %v922 = vadd.f32 %v617, %v903
      %v923 = vadd.f32 %v590, %v876
      %v924 = vadd.f32 %v619, %v905
      %v925 = vadd.f32 %v593, %v879
      %v926 = vadd.f32 %v622, %v908
      %v927 = vadd.f32 %v595, %v881
      %v928 = vadd.f32 %v624, %v910
      %v929 = vadd.f32 %v598, %v884
      %v930 = vadd.f32 %v627, %v913
      %v931 = vadd.f32 %v600, %v886
      %v932 = vadd.f32 %v629, %v915
      %s933 = scalar_lea.vmem %s1, 384
      %v934 = vld [vmem:[%s933] sm:$0xff]
      %v935 = vld [vmem:[%s933 + $0x8] sm:$0xff]
      %v936 = vld [vmem:[%s933 + $0x10] sm:$0xff]
      %v937 = vld [vmem:[%s933 + $0x18] sm:$0xff]
      %v938 = vld [vmem:[%s933 + $0x20] sm:$0xff]
      %v939 = vld [vmem:[%s933 + $0x28] sm:$0xff]
      %v940 = vld [vmem:[%s933 + $0x30] sm:$0xff]
      %v941 = vld [vmem:[%s933 + $0x38] sm:$0xff]
      %v942 = vld [vmem:[%s933 + $0x40] sm:$0xff]
      %v943 = vld [vmem:[%s933 + $0x48] sm:$0xff]
      %v944 = vld [vmem:[%s933 + $0x50] sm:$0xff]
      %v945 = vld [vmem:[%s933 + $0x58] sm:$0xff]
      %v946 = vld [vmem:[%s933 + $0x60] sm:$0xff]
      %v947 = vld [vmem:[%s933 + $0x68] sm:$0xff]
      %v948 = vld [vmem:[%s933 + $0x70] sm:$0xff]
      %v949 = vld [vmem:[%s933 + $0x78] sm:$0xff]
      %v958 = vunpack.c.l.b16 %v250
      %v959 = vunpack.c.l.b16 %v252
      %v960 = vunpack.c.l.b16 %v254
      %v961 = vunpack.c.l.b16 %v256
      %v962 = vunpack.c.l.b16 %v258
      %v963 = vunpack.c.l.b16 %v260
      %v964 = vunpack.c.l.b16 %v262
      %v965 = vunpack.c.l.b16 %v264
      %v966 = vpack.c.b16 %v959, %v958
      %v967 = vpack.c.b16 %v961, %v960
      %v968 = vpack.c.b16 %v963, %v962
      %v969 = vpack.c.b16 %v965, %v964
      %v990 = vunpack.c.l.b16 %v934
      %v991 = vunpack.c.h.b16 %v934
      %v992 = vunpack.c.l.b16 %v935
      %v993 = vunpack.c.h.b16 %v935
      %v994 = vunpack.c.l.b16 %v936
      %v995 = vunpack.c.h.b16 %v936
      %v996 = vunpack.c.l.b16 %v937
      %v997 = vunpack.c.h.b16 %v937
      %v998 = vunpack.c.l.b16 %v938
      %v999 = vunpack.c.h.b16 %v938
      %v1000 = vunpack.c.l.b16 %v939
      %v1001 = vunpack.c.h.b16 %v939
      %v1002 = vunpack.c.l.b16 %v940
      %v1003 = vunpack.c.h.b16 %v940
      %v1004 = vunpack.c.l.b16 %v941
      %v1005 = vunpack.c.h.b16 %v941
      %v1006 = vunpack.c.l.b16 %v942
      %v1007 = vunpack.c.h.b16 %v942
      %v1008 = vunpack.c.l.b16 %v943
      %v1009 = vunpack.c.h.b16 %v943
      %v1010 = vunpack.c.l.b16 %v944
      %v1011 = vunpack.c.h.b16 %v944
      %v1012 = vunpack.c.l.b16 %v945
      %v1013 = vunpack.c.h.b16 %v945
      %v1014 = vunpack.c.l.b16 %v946
      %v1015 = vunpack.c.h.b16 %v946
      %v1016 = vunpack.c.l.b16 %v947
      %v1017 = vunpack.c.h.b16 %v947
      %v1018 = vunpack.c.l.b16 %v948
      %v1019 = vunpack.c.h.b16 %v948
      %v1020 = vunpack.c.l.b16 %v949
      %v1021 = vunpack.c.h.b16 %v949
      %v1022 = vpack.c.b16 %v992, %v990
      %v1023 = vpack.c.b16 %v993, %v991
      %v1024 = vpack.c.b16 %v996, %v994
      %v1025 = vpack.c.b16 %v997, %v995
      %v1026 = vpack.c.b16 %v1000, %v998
      %v1027 = vpack.c.b16 %v1001, %v999
      %v1028 = vpack.c.b16 %v1004, %v1002
      %v1029 = vpack.c.b16 %v1005, %v1003
      %v1030 = vpack.c.b16 %v1008, %v1006
      %v1031 = vpack.c.b16 %v1009, %v1007
      %v1032 = vpack.c.b16 %v1012, %v1010
      %v1033 = vpack.c.b16 %v1013, %v1011
      %v1034 = vpack.c.b16 %v1016, %v1014
      %v1035 = vpack.c.b16 %v1017, %v1015
      %v1036 = vpack.c.b16 %v1020, %v1018
      %v1037 = vpack.c.b16 %v1021, %v1019
      %1054 = vmatpush.bf16.msra.mxu0 %v1036
      %1055 = vmatpush.bf16.msra.mxu0 %v1034
      %1056 = vmatpush.bf16.msra.mxu0 %v1032
      %1057 = vmatpush.bf16.msra.mxu0 %v1030
      %1058 = vmatpush.bf16.msra.mxu0 %v1028
      %1059 = vmatpush.bf16.msra.mxu0 %v1026
      %1060 = vmatpush.bf16.msra.mxu0 %v1024
      %1061 = vmatpush.bf16.msra.mxu0 %v1022
      %1062 = vmatmul.bf16.gmra.mxu0 %v966
      %v1063 = vpop.f32.mrf.mxu0
      %v1064 = vadd.f32 0.0, %v1063
      %v1065 = vpop.f32.mrf.mxu0
      %v1066 = vadd.f32 0.0, %v1065
      %1067 = vmatmul.bf16.gmra.mxu0 %v967
      %v1068 = vpop.f32.mrf.mxu0
      %v1069 = vadd.f32 0.0, %v1068
      %v1070 = vpop.f32.mrf.mxu0
      %v1071 = vadd.f32 0.0, %v1070
      %1072 = vmatmul.bf16.gmra.mxu0 %v968
      %v1073 = vpop.f32.mrf.mxu0
      %v1074 = vadd.f32 0.0, %v1073
      %v1075 = vpop.f32.mrf.mxu0
      %v1076 = vadd.f32 0.0, %v1075
      %1077 = vmatmul.bf16.gmra.mxu0 %v969
      %v1078 = vpop.f32.mrf.mxu0
      %v1079 = vadd.f32 0.0, %v1078
      %v1080 = vpop.f32.mrf.mxu0
      %v1081 = vadd.f32 0.0, %v1080
      %1082 = vdwg.mxu0
      %1083 = vmatpush.bf16.msra.mxu0 %v1037
      %1084 = vmatpush.bf16.msra.mxu0 %v1035
      %1085 = vmatpush.bf16.msra.mxu0 %v1033
      %1086 = vmatpush.bf16.msra.mxu0 %v1031
      %1087 = vmatpush.bf16.msra.mxu0 %v1029
      %1088 = vmatpush.bf16.msra.mxu0 %v1027
      %1089 = vmatpush.bf16.msra.mxu0 %v1025
      %1090 = vmatpush.bf16.msra.mxu0 %v1023
      %1091 = vmatmul.bf16.gmra.mxu0 %v966
      %v1092 = vpop.f32.mrf.mxu0
      %v1093 = vadd.f32 0.0, %v1092
      %v1094 = vpop.f32.mrf.mxu0
      %v1095 = vadd.f32 0.0, %v1094
      %1096 = vmatmul.bf16.gmra.mxu0 %v967
      %v1097 = vpop.f32.mrf.mxu0
      %v1098 = vadd.f32 0.0, %v1097
      %v1099 = vpop.f32.mrf.mxu0
      %v1100 = vadd.f32 0.0, %v1099
      %1101 = vmatmul.bf16.gmra.mxu0 %v968
      %v1102 = vpop.f32.mrf.mxu0
      %v1103 = vadd.f32 0.0, %v1102
      %v1104 = vpop.f32.mrf.mxu0
      %v1105 = vadd.f32 0.0, %v1104
      %1106 = vmatmul.bf16.gmra.mxu0 %v969
      %v1107 = vpop.f32.mrf.mxu0
      %v1108 = vadd.f32 0.0, %v1107
      %v1109 = vpop.f32.mrf.mxu0
      %v1110 = vadd.f32 0.0, %v1109
      %1111 = vdwg.mxu0
      %v1112 = vadd.f32 %v917, %v1064
      %v1113 = vadd.f32 %v918, %v1093
      %v1114 = vadd.f32 %v919, %v1066
      %v1115 = vadd.f32 %v920, %v1095
      %v1116 = vadd.f32 %v921, %v1069
      %v1117 = vadd.f32 %v922, %v1098
      %v1118 = vadd.f32 %v923, %v1071
      %v1119 = vadd.f32 %v924, %v1100
      %v1120 = vadd.f32 %v925, %v1074
      %v1121 = vadd.f32 %v926, %v1103
      %v1122 = vadd.f32 %v927, %v1076
      %v1123 = vadd.f32 %v928, %v1105
      %v1124 = vadd.f32 %v929, %v1079
      %v1125 = vadd.f32 %v930, %v1108
      %v1126 = vadd.f32 %v931, %v1081
      %v1127 = vadd.f32 %v932, %v1110
      %s1128 = scalar_lea.vmem %s1, 512
      %v1129 = vld [vmem:[%s1128] sm:$0xff]
      %v1130 = vld [vmem:[%s1128 + $0x8] sm:$0xff]
      %v1131 = vld [vmem:[%s1128 + $0x10] sm:$0xff]
      %v1132 = vld [vmem:[%s1128 + $0x18] sm:$0xff]
      %v1133 = vld [vmem:[%s1128 + $0x20] sm:$0xff]
      %v1134 = vld [vmem:[%s1128 + $0x28] sm:$0xff]
      %v1135 = vld [vmem:[%s1128 + $0x30] sm:$0xff]
      %v1136 = vld [vmem:[%s1128 + $0x38] sm:$0xff]
      %v1137 = vld [vmem:[%s1128 + $0x40] sm:$0xff]
      %v1138 = vld [vmem:[%s1128 + $0x48] sm:$0xff]
      %v1139 = vld [vmem:[%s1128 + $0x50] sm:$0xff]
      %v1140 = vld [vmem:[%s1128 + $0x58] sm:$0xff]
      %v1141 = vld [vmem:[%s1128 + $0x60] sm:$0xff]
      %v1142 = vld [vmem:[%s1128 + $0x68] sm:$0xff]
      %v1143 = vld [vmem:[%s1128 + $0x70] sm:$0xff]
      %v1144 = vld [vmem:[%s1128 + $0x78] sm:$0xff]
      %v1153 = vunpack.c.l.b16 %v266
      %v1154 = vunpack.c.l.b16 %v267
      %v1155 = vunpack.c.l.b16 %v268
      %v1156 = vunpack.c.l.b16 %v269
      %v1157 = vunpack.c.l.b16 %v270
      %v1158 = vunpack.c.l.b16 %v271
      %v1159 = vunpack.c.l.b16 %v272
      %v1160 = vunpack.c.l.b16 %v273
      %v1161 = vpack.c.b16 %v1154, %v1153
      %v1162 = vpack.c.b16 %v1156, %v1155
      %v1163 = vpack.c.b16 %v1158, %v1157
      %v1164 = vpack.c.b16 %v1160, %v1159
      %v1185 = vunpack.c.l.b16 %v1129
      %v1186 = vunpack.c.h.b16 %v1129
      %v1187 = vunpack.c.l.b16 %v1130
      %v1188 = vunpack.c.h.b16 %v1130
      %v1189 = vunpack.c.l.b16 %v1131
      %v1190 = vunpack.c.h.b16 %v1131
      %v1191 = vunpack.c.l.b16 %v1132
      %v1192 = vunpack.c.h.b16 %v1132
      %v1193 = vunpack.c.l.b16 %v1133
      %v1194 = vunpack.c.h.b16 %v1133
      %v1195 = vunpack.c.l.b16 %v1134
      %v1196 = vunpack.c.h.b16 %v1134
      %v1197 = vunpack.c.l.b16 %v1135
      %v1198 = vunpack.c.h.b16 %v1135
      %v1199 = vunpack.c.l.b16 %v1136
      %v1200 = vunpack.c.h.b16 %v1136
      %v1201 = vunpack.c.l.b16 %v1137
      %v1202 = vunpack.c.h.b16 %v1137
      %v1203 = vunpack.c.l.b16 %v1138
      %v1204 = vunpack.c.h.b16 %v1138
      %v1205 = vunpack.c.l.b16 %v1139
      %v1206 = vunpack.c.h.b16 %v1139
      %v1207 = vunpack.c.l.b16 %v1140
      %v1208 = vunpack.c.h.b16 %v1140
      %v1209 = vunpack.c.l.b16 %v1141
      %v1210 = vunpack.c.h.b16 %v1141
      %v1211 = vunpack.c.l.b16 %v1142
      %v1212 = vunpack.c.h.b16 %v1142
      %v1213 = vunpack.c.l.b16 %v1143
      %v1214 = vunpack.c.h.b16 %v1143
      %v1215 = vunpack.c.l.b16 %v1144
      %v1216 = vunpack.c.h.b16 %v1144
      %v1217 = vpack.c.b16 %v1187, %v1185
      %v1218 = vpack.c.b16 %v1188, %v1186
      %v1219 = vpack.c.b16 %v1191, %v1189
      %v1220 = vpack.c.b16 %v1192, %v1190
      %v1221 = vpack.c.b16 %v1195, %v1193
      %v1222 = vpack.c.b16 %v1196, %v1194
      %v1223 = vpack.c.b16 %v1199, %v1197
      %v1224 = vpack.c.b16 %v1200, %v1198
      %v1225 = vpack.c.b16 %v1203, %v1201
      %v1226 = vpack.c.b16 %v1204, %v1202
      %v1227 = vpack.c.b16 %v1207, %v1205
      %v1228 = vpack.c.b16 %v1208, %v1206
      %v1229 = vpack.c.b16 %v1211, %v1209
      %v1230 = vpack.c.b16 %v1212, %v1210
      %v1231 = vpack.c.b16 %v1215, %v1213
      %v1232 = vpack.c.b16 %v1216, %v1214
      %1249 = vmatpush.bf16.msra.mxu0 %v1231
      %1250 = vmatpush.bf16.msra.mxu0 %v1229
      %1251 = vmatpush.bf16.msra.mxu0 %v1227
      %1252 = vmatpush.bf16.msra.mxu0 %v1225
      %1253 = vmatpush.bf16.msra.mxu0 %v1223
      %1254 = vmatpush.bf16.msra.mxu0 %v1221
      %1255 = vmatpush.bf16.msra.mxu0 %v1219
      %1256 = vmatpush.bf16.msra.mxu0 %v1217
      %1257 = vmatmul.bf16.gmra.mxu0 %v1161
      %v1258 = vpop.f32.mrf.mxu0
      %v1259 = vadd.f32 0.0, %v1258
      %v1260 = vpop.f32.mrf.mxu0
      %v1261 = vadd.f32 0.0, %v1260
      %1262 = vmatmul.bf16.gmra.mxu0 %v1162
      %v1263 = vpop.f32.mrf.mxu0
      %v1264 = vadd.f32 0.0, %v1263
      %v1265 = vpop.f32.mrf.mxu0
      %v1266 = vadd.f32 0.0, %v1265
      %1267 = vmatmul.bf16.gmra.mxu0 %v1163
      %v1268 = vpop.f32.mrf.mxu0
      %v1269 = vadd.f32 0.0, %v1268
      %v1270 = vpop.f32.mrf.mxu0
      %v1271 = vadd.f32 0.0, %v1270
      %1272 = vmatmul.bf16.gmra.mxu0 %v1164
      %v1273 = vpop.f32.mrf.mxu0
      %v1274 = vadd.f32 0.0, %v1273
      %v1275 = vpop.f32.mrf.mxu0
      %v1276 = vadd.f32 0.0, %v1275
      %1277 = vdwg.mxu0
      %1278 = vmatpush.bf16.msra.mxu0 %v1232
      %1279 = vmatpush.bf16.msra.mxu0 %v1230
      %1280 = vmatpush.bf16.msra.mxu0 %v1228
      %1281 = vmatpush.bf16.msra.mxu0 %v1226
      %1282 = vmatpush.bf16.msra.mxu0 %v1224
      %1283 = vmatpush.bf16.msra.mxu0 %v1222
      %1284 = vmatpush.bf16.msra.mxu0 %v1220
      %1285 = vmatpush.bf16.msra.mxu0 %v1218
      %1286 = vmatmul.bf16.gmra.mxu0 %v1161
      %v1287 = vpop.f32.mrf.mxu0
      %v1288 = vadd.f32 0.0, %v1287
      %v1289 = vpop.f32.mrf.mxu0
      %v1290 = vadd.f32 0.0, %v1289
      %1291 = vmatmul.bf16.gmra.mxu0 %v1162
      %v1292 = vpop.f32.mrf.mxu0
      %v1293 = vadd.f32 0.0, %v1292
      %v1294 = vpop.f32.mrf.mxu0
      %v1295 = vadd.f32 0.0, %v1294
      %1296 = vmatmul.bf16.gmra.mxu0 %v1163
      %v1297 = vpop.f32.mrf.mxu0
      %v1298 = vadd.f32 0.0, %v1297
      %v1299 = vpop.f32.mrf.mxu0
      %v1300 = vadd.f32 0.0, %v1299
      %1301 = vmatmul.bf16.gmra.mxu0 %v1164
      %v1302 = vpop.f32.mrf.mxu0
      %v1303 = vadd.f32 0.0, %v1302
      %v1304 = vpop.f32.mrf.mxu0
      %v1305 = vadd.f32 0.0, %v1304
      %1306 = vdwg.mxu0
      %v1307 = vadd.f32 %v1112, %v1259
      %v1308 = vadd.f32 %v1113, %v1288
      %v1309 = vadd.f32 %v1114, %v1261
      %v1310 = vadd.f32 %v1115, %v1290
      %v1311 = vadd.f32 %v1116, %v1264
      %v1312 = vadd.f32 %v1117, %v1293
      %v1313 = vadd.f32 %v1118, %v1266
      %v1314 = vadd.f32 %v1119, %v1295
      %v1315 = vadd.f32 %v1120, %v1269
      %v1316 = vadd.f32 %v1121, %v1298
      %v1317 = vadd.f32 %v1122, %v1271
      %v1318 = vadd.f32 %v1123, %v1300
      %v1319 = vadd.f32 %v1124, %v1274
      %v1320 = vadd.f32 %v1125, %v1303
      %v1321 = vadd.f32 %v1126, %v1276
      %v1322 = vadd.f32 %v1127, %v1305
      %v1324 = vshrl.u32 %v250, 16
      %v1326 = vrot.slane %v1324, 4
      %v1327 = vshll.u32 %v250, 16
      %v1329 = vrot.slane %v1327, 5
      %v1330 = vor.u32 %v1326, %v1329
      %v1331 = vrot.slane %v1330, 4
      %v1333 = vshll.u32 %v251, 16
      %v1335 = vrot.slane %v1333, 5
      %v1336 = vsel %vm633, %v1331, %v1335
      %v1338 = vshrl.u32 %v252, 16
      %v1340 = vrot.slane %v1338, 4
      %v1341 = vshll.u32 %v252, 16
      %v1343 = vrot.slane %v1341, 5
      %v1344 = vor.u32 %v1340, %v1343
      %v1345 = vrot.slane %v1344, 4
      %v1347 = vshll.u32 %v253, 16
      %v1349 = vrot.slane %v1347, 5
      %v1350 = vsel %vm633, %v1345, %v1349
      %v1352 = vshrl.u32 %v254, 16
      %v1354 = vrot.slane %v1352, 4
      %v1355 = vshll.u32 %v254, 16
      %v1357 = vrot.slane %v1355, 5
      %v1358 = vor.u32 %v1354, %v1357
      %v1359 = vrot.slane %v1358, 4
      %v1361 = vshll.u32 %v255, 16
      %v1363 = vrot.slane %v1361, 5
      %v1364 = vsel %vm633, %v1359, %v1363
      %v1366 = vshrl.u32 %v256, 16
      %v1368 = vrot.slane %v1366, 4
      %v1369 = vshll.u32 %v256, 16
      %v1371 = vrot.slane %v1369, 5
      %v1372 = vor.u32 %v1368, %v1371
      %v1373 = vrot.slane %v1372, 4
      %v1375 = vshll.u32 %v257, 16
      %v1377 = vrot.slane %v1375, 5
      %v1378 = vsel %vm633, %v1373, %v1377
      %v1380 = vshrl.u32 %v258, 16
      %v1382 = vrot.slane %v1380, 4
      %v1383 = vshll.u32 %v258, 16
      %v1385 = vrot.slane %v1383, 5
      %v1386 = vor.u32 %v1382, %v1385
      %v1387 = vrot.slane %v1386, 4
      %v1389 = vshll.u32 %v259, 16
      %v1391 = vrot.slane %v1389, 5
      %v1392 = vsel %vm633, %v1387, %v1391
      %v1394 = vshrl.u32 %v260, 16
      %v1396 = vrot.slane %v1394, 4
      %v1397 = vshll.u32 %v260, 16
      %v1399 = vrot.slane %v1397, 5
      %v1400 = vor.u32 %v1396, %v1399
      %v1401 = vrot.slane %v1400, 4
      %v1403 = vshll.u32 %v261, 16
      %v1405 = vrot.slane %v1403, 5
      %v1406 = vsel %vm633, %v1401, %v1405
      %v1408 = vshrl.u32 %v262, 16
      %v1410 = vrot.slane %v1408, 4
      %v1411 = vshll.u32 %v262, 16
      %v1413 = vrot.slane %v1411, 5
      %v1414 = vor.u32 %v1410, %v1413
      %v1415 = vrot.slane %v1414, 4
      %v1417 = vshll.u32 %v263, 16
      %v1419 = vrot.slane %v1417, 5
      %v1420 = vsel %vm633, %v1415, %v1419
      %v1422 = vshrl.u32 %v264, 16
      %v1424 = vrot.slane %v1422, 4
      %v1425 = vshll.u32 %v264, 16
      %v1427 = vrot.slane %v1425, 5
      %v1428 = vor.u32 %v1424, %v1427
      %v1429 = vrot.slane %v1428, 4
      %v1431 = vshll.u32 %v265, 16
      %v1433 = vrot.slane %v1431, 5
      %v1434 = vsel %vm633, %v1429, %v1433
      %s1435 = scalar_lea.vmem %s1, 640
      %v1436 = vld [vmem:[%s1435] sm:$0xff]
      %v1437 = vld [vmem:[%s1435 + $0x8] sm:$0xff]
      %v1438 = vld [vmem:[%s1435 + $0x10] sm:$0xff]
      %v1439 = vld [vmem:[%s1435 + $0x18] sm:$0xff]
      %v1440 = vld [vmem:[%s1435 + $0x20] sm:$0xff]
      %v1441 = vld [vmem:[%s1435 + $0x28] sm:$0xff]
      %v1442 = vld [vmem:[%s1435 + $0x30] sm:$0xff]
      %v1443 = vld [vmem:[%s1435 + $0x38] sm:$0xff]
      %v1444 = vld [vmem:[%s1435 + $0x40] sm:$0xff]
      %v1445 = vld [vmem:[%s1435 + $0x48] sm:$0xff]
      %v1446 = vld [vmem:[%s1435 + $0x50] sm:$0xff]
      %v1447 = vld [vmem:[%s1435 + $0x58] sm:$0xff]
      %v1448 = vld [vmem:[%s1435 + $0x60] sm:$0xff]
      %v1449 = vld [vmem:[%s1435 + $0x68] sm:$0xff]
      %v1450 = vld [vmem:[%s1435 + $0x70] sm:$0xff]
      %v1451 = vld [vmem:[%s1435 + $0x78] sm:$0xff]
      %v1452 = vunpack.c.l.b16 %v1336
      %v1453 = vunpack.c.l.b16 %v1350
      %v1454 = vunpack.c.l.b16 %v1364
      %v1455 = vunpack.c.l.b16 %v1378
      %v1456 = vunpack.c.l.b16 %v1392
      %v1457 = vunpack.c.l.b16 %v1406
      %v1458 = vunpack.c.l.b16 %v1420
      %v1459 = vunpack.c.l.b16 %v1434
      %v1460 = vpack.c.b16 %v1453, %v1452
      %v1461 = vpack.c.b16 %v1455, %v1454
      %v1462 = vpack.c.b16 %v1457, %v1456
      %v1463 = vpack.c.b16 %v1459, %v1458
      %v1484 = vunpack.c.l.b16 %v1436
      %v1485 = vunpack.c.h.b16 %v1436
      %v1486 = vunpack.c.l.b16 %v1437
      %v1487 = vunpack.c.h.b16 %v1437
      %v1488 = vunpack.c.l.b16 %v1438
      %v1489 = vunpack.c.h.b16 %v1438
      %v1490 = vunpack.c.l.b16 %v1439
      %v1491 = vunpack.c.h.b16 %v1439
      %v1492 = vunpack.c.l.b16 %v1440
      %v1493 = vunpack.c.h.b16 %v1440
      %v1494 = vunpack.c.l.b16 %v1441
      %v1495 = vunpack.c.h.b16 %v1441
      %v1496 = vunpack.c.l.b16 %v1442
      %v1497 = vunpack.c.h.b16 %v1442
      %v1498 = vunpack.c.l.b16 %v1443
      %v1499 = vunpack.c.h.b16 %v1443
      %v1500 = vunpack.c.l.b16 %v1444
      %v1501 = vunpack.c.h.b16 %v1444
      %v1502 = vunpack.c.l.b16 %v1445
      %v1503 = vunpack.c.h.b16 %v1445
      %v1504 = vunpack.c.l.b16 %v1446
      %v1505 = vunpack.c.h.b16 %v1446
      %v1506 = vunpack.c.l.b16 %v1447
      %v1507 = vunpack.c.h.b16 %v1447
      %v1508 = vunpack.c.l.b16 %v1448
      %v1509 = vunpack.c.h.b16 %v1448
      %v1510 = vunpack.c.l.b16 %v1449
      %v1511 = vunpack.c.h.b16 %v1449
      %v1512 = vunpack.c.l.b16 %v1450
      %v1513 = vunpack.c.h.b16 %v1450
      %v1514 = vunpack.c.l.b16 %v1451
      %v1515 = vunpack.c.h.b16 %v1451
      %v1516 = vpack.c.b16 %v1486, %v1484
      %v1517 = vpack.c.b16 %v1487, %v1485
      %v1518 = vpack.c.b16 %v1490, %v1488
      %v1519 = vpack.c.b16 %v1491, %v1489
      %v1520 = vpack.c.b16 %v1494, %v1492
      %v1521 = vpack.c.b16 %v1495, %v1493
      %v1522 = vpack.c.b16 %v1498, %v1496
      %v1523 = vpack.c.b16 %v1499, %v1497
      %v1524 = vpack.c.b16 %v1502, %v1500
      %v1525 = vpack.c.b16 %v1503, %v1501
      %v1526 = vpack.c.b16 %v1506, %v1504
      %v1527 = vpack.c.b16 %v1507, %v1505
      %v1528 = vpack.c.b16 %v1510, %v1508
      %v1529 = vpack.c.b16 %v1511, %v1509
      %v1530 = vpack.c.b16 %v1514, %v1512
      %v1531 = vpack.c.b16 %v1515, %v1513
      %1548 = vmatpush.bf16.msra.mxu0 %v1530
      %1549 = vmatpush.bf16.msra.mxu0 %v1528
      %1550 = vmatpush.bf16.msra.mxu0 %v1526
      %1551 = vmatpush.bf16.msra.mxu0 %v1524
      %1552 = vmatpush.bf16.msra.mxu0 %v1522
      %1553 = vmatpush.bf16.msra.mxu0 %v1520
      %1554 = vmatpush.bf16.msra.mxu0 %v1518
      %1555 = vmatpush.bf16.msra.mxu0 %v1516
      %1556 = vmatmul.bf16.gmra.mxu0 %v1460
      %v1557 = vpop.f32.mrf.mxu0
      %v1558 = vadd.f32 0.0, %v1557
      %v1559 = vpop.f32.mrf.mxu0
      %v1560 = vadd.f32 0.0, %v1559
      %1561 = vmatmul.bf16.gmra.mxu0 %v1461
      %v1562 = vpop.f32.mrf.mxu0
      %v1563 = vadd.f32 0.0, %v1562
      %v1564 = vpop.f32.mrf.mxu0
      %v1565 = vadd.f32 0.0, %v1564
      %1566 = vmatmul.bf16.gmra.mxu0 %v1462
      %v1567 = vpop.f32.mrf.mxu0
      %v1568 = vadd.f32 0.0, %v1567
      %v1569 = vpop.f32.mrf.mxu0
      %v1570 = vadd.f32 0.0, %v1569
      %1571 = vmatmul.bf16.gmra.mxu0 %v1463
      %v1572 = vpop.f32.mrf.mxu0
      %v1573 = vadd.f32 0.0, %v1572
      %v1574 = vpop.f32.mrf.mxu0
      %v1575 = vadd.f32 0.0, %v1574
      %1576 = vdwg.mxu0
      %1577 = vmatpush.bf16.msra.mxu0 %v1531
      %1578 = vmatpush.bf16.msra.mxu0 %v1529
      %1579 = vmatpush.bf16.msra.mxu0 %v1527
      %1580 = vmatpush.bf16.msra.mxu0 %v1525
      %1581 = vmatpush.bf16.msra.mxu0 %v1523
      %1582 = vmatpush.bf16.msra.mxu0 %v1521
      %1583 = vmatpush.bf16.msra.mxu0 %v1519
      %1584 = vmatpush.bf16.msra.mxu0 %v1517
      %1585 = vmatmul.bf16.gmra.mxu0 %v1460
      %v1586 = vpop.f32.mrf.mxu0
      %v1587 = vadd.f32 0.0, %v1586
      %v1588 = vpop.f32.mrf.mxu0
      %v1589 = vadd.f32 0.0, %v1588
      %1590 = vmatmul.bf16.gmra.mxu0 %v1461
      %v1591 = vpop.f32.mrf.mxu0
      %v1592 = vadd.f32 0.0, %v1591
      %v1593 = vpop.f32.mrf.mxu0
      %v1594 = vadd.f32 0.0, %v1593
      %1595 = vmatmul.bf16.gmra.mxu0 %v1462
      %v1596 = vpop.f32.mrf.mxu0
      %v1597 = vadd.f32 0.0, %v1596
      %v1598 = vpop.f32.mrf.mxu0
      %v1599 = vadd.f32 0.0, %v1598
      %1600 = vmatmul.bf16.gmra.mxu0 %v1463
      %v1601 = vpop.f32.mrf.mxu0
      %v1602 = vadd.f32 0.0, %v1601
      %v1603 = vpop.f32.mrf.mxu0
      %v1604 = vadd.f32 0.0, %v1603
      %1605 = vdwg.mxu0
      %v1606 = vadd.f32 %v1307, %v1558
      %v1607 = vadd.f32 %v1308, %v1587
      %v1608 = vadd.f32 %v1309, %v1560
      %v1609 = vadd.f32 %v1310, %v1589
      %v1610 = vadd.f32 %v1311, %v1563
      %v1611 = vadd.f32 %v1312, %v1592
      %v1612 = vadd.f32 %v1313, %v1565
      %v1613 = vadd.f32 %v1314, %v1594
      %v1614 = vadd.f32 %v1315, %v1568
      %v1615 = vadd.f32 %v1316, %v1597
      %v1616 = vadd.f32 %v1317, %v1570
      %v1617 = vadd.f32 %v1318, %v1599
      %v1618 = vadd.f32 %v1319, %v1573
      %v1619 = vadd.f32 %v1320, %v1602
      %v1620 = vadd.f32 %v1321, %v1575
      %v1621 = vadd.f32 %v1322, %v1604
      %s1622 = scalar_lea.vmem %s1, 768
      %v1623 = vld [vmem:[%s1622] sm:$0xff]
      %v1624 = vld [vmem:[%s1622 + $0x8] sm:$0xff]
      %v1625 = vld [vmem:[%s1622 + $0x10] sm:$0xff]
      %v1626 = vld [vmem:[%s1622 + $0x18] sm:$0xff]
      %v1627 = vld [vmem:[%s1622 + $0x20] sm:$0xff]
      %v1628 = vld [vmem:[%s1622 + $0x28] sm:$0xff]
      %v1629 = vld [vmem:[%s1622 + $0x30] sm:$0xff]
      %v1630 = vld [vmem:[%s1622 + $0x38] sm:$0xff]
      %v1631 = vld [vmem:[%s1622 + $0x40] sm:$0xff]
      %v1632 = vld [vmem:[%s1622 + $0x48] sm:$0xff]
      %v1633 = vld [vmem:[%s1622 + $0x50] sm:$0xff]
      %v1634 = vld [vmem:[%s1622 + $0x58] sm:$0xff]
      %v1635 = vld [vmem:[%s1622 + $0x60] sm:$0xff]
      %v1636 = vld [vmem:[%s1622 + $0x68] sm:$0xff]
      %v1637 = vld [vmem:[%s1622 + $0x70] sm:$0xff]
      %v1638 = vld [vmem:[%s1622 + $0x78] sm:$0xff]
      %v1640 = vunpack.c.l.b16 %v239
      %v1641 = vpack.c.b16 %v479, %v478
      %v1642 = vpack.c.b16 %v481, %v480
      %v1643 = vpack.c.b16 %v483, %v482
      %v1644 = vpack.c.b16 %v1640, %v484
      %v1665 = vunpack.c.l.b16 %v1623
      %v1666 = vunpack.c.h.b16 %v1623
      %v1667 = vunpack.c.l.b16 %v1624
      %v1668 = vunpack.c.h.b16 %v1624
      %v1669 = vunpack.c.l.b16 %v1625
      %v1670 = vunpack.c.h.b16 %v1625
      %v1671 = vunpack.c.l.b16 %v1626
      %v1672 = vunpack.c.h.b16 %v1626
      %v1673 = vunpack.c.l.b16 %v1627
      %v1674 = vunpack.c.h.b16 %v1627
      %v1675 = vunpack.c.l.b16 %v1628
      %v1676 = vunpack.c.h.b16 %v1628
      %v1677 = vunpack.c.l.b16 %v1629
      %v1678 = vunpack.c.h.b16 %v1629
      %v1679 = vunpack.c.l.b16 %v1630
      %v1680 = vunpack.c.h.b16 %v1630
      %v1681 = vunpack.c.l.b16 %v1631
      %v1682 = vunpack.c.h.b16 %v1631
      %v1683 = vunpack.c.l.b16 %v1632
      %v1684 = vunpack.c.h.b16 %v1632
      %v1685 = vunpack.c.l.b16 %v1633
      %v1686 = vunpack.c.h.b16 %v1633
      %v1687 = vunpack.c.l.b16 %v1634
      %v1688 = vunpack.c.h.b16 %v1634
      %v1689 = vunpack.c.l.b16 %v1635
      %v1690 = vunpack.c.h.b16 %v1635
      %v1691 = vunpack.c.l.b16 %v1636
      %v1692 = vunpack.c.h.b16 %v1636
      %v1693 = vunpack.c.l.b16 %v1637
      %v1694 = vunpack.c.h.b16 %v1637
      %v1695 = vunpack.c.l.b16 %v1638
      %v1696 = vunpack.c.h.b16 %v1638
      %v1697 = vpack.c.b16 %v1667, %v1665
      %v1698 = vpack.c.b16 %v1668, %v1666
      %v1699 = vpack.c.b16 %v1671, %v1669
      %v1700 = vpack.c.b16 %v1672, %v1670
      %v1701 = vpack.c.b16 %v1675, %v1673
      %v1702 = vpack.c.b16 %v1676, %v1674
      %v1703 = vpack.c.b16 %v1679, %v1677
      %v1704 = vpack.c.b16 %v1680, %v1678
      %v1705 = vpack.c.b16 %v1683, %v1681
      %v1706 = vpack.c.b16 %v1684, %v1682
      %v1707 = vpack.c.b16 %v1687, %v1685
      %v1708 = vpack.c.b16 %v1688, %v1686
      %v1709 = vpack.c.b16 %v1691, %v1689
      %v1710 = vpack.c.b16 %v1692, %v1690
      %v1711 = vpack.c.b16 %v1695, %v1693
      %v1712 = vpack.c.b16 %v1696, %v1694
      %1729 = vmatpush.bf16.msra.mxu0 %v1711
      %1730 = vmatpush.bf16.msra.mxu0 %v1709
      %1731 = vmatpush.bf16.msra.mxu0 %v1707
      %1732 = vmatpush.bf16.msra.mxu0 %v1705
      %1733 = vmatpush.bf16.msra.mxu0 %v1703
      %1734 = vmatpush.bf16.msra.mxu0 %v1701
      %1735 = vmatpush.bf16.msra.mxu0 %v1699
      %1736 = vmatpush.bf16.msra.mxu0 %v1697
      %1737 = vmatmul.bf16.gmra.mxu0 %v1641
      %v1738 = vpop.f32.mrf.mxu0
      %v1739 = vadd.f32 0.0, %v1738
      %v1740 = vpop.f32.mrf.mxu0
      %v1741 = vadd.f32 0.0, %v1740
      %1742 = vmatmul.bf16.gmra.mxu0 %v1642
      %v1743 = vpop.f32.mrf.mxu0
      %v1744 = vadd.f32 0.0, %v1743
      %v1745 = vpop.f32.mrf.mxu0
      %v1746 = vadd.f32 0.0, %v1745
      %1747 = vmatmul.bf16.gmra.mxu0 %v1643
      %v1748 = vpop.f32.mrf.mxu0
      %v1749 = vadd.f32 0.0, %v1748
      %v1750 = vpop.f32.mrf.mxu0
      %v1751 = vadd.f32 0.0, %v1750
      %1752 = vmatmul.bf16.gmra.mxu0 %v1644
      %v1753 = vpop.f32.mrf.mxu0
      %v1754 = vadd.f32 0.0, %v1753
      %v1755 = vpop.f32.mrf.mxu0
      %v1756 = vadd.f32 0.0, %v1755
      %1757 = vdwg.mxu0
      %1758 = vmatpush.bf16.msra.mxu0 %v1712
      %1759 = vmatpush.bf16.msra.mxu0 %v1710
      %1760 = vmatpush.bf16.msra.mxu0 %v1708
      %1761 = vmatpush.bf16.msra.mxu0 %v1706
      %1762 = vmatpush.bf16.msra.mxu0 %v1704
      %1763 = vmatpush.bf16.msra.mxu0 %v1702
      %1764 = vmatpush.bf16.msra.mxu0 %v1700
      %1765 = vmatpush.bf16.msra.mxu0 %v1698
      %1766 = vmatmul.bf16.gmra.mxu0 %v1641
      %v1767 = vpop.f32.mrf.mxu0
      %v1768 = vadd.f32 0.0, %v1767
      %v1769 = vpop.f32.mrf.mxu0
      %v1770 = vadd.f32 0.0, %v1769
      %1771 = vmatmul.bf16.gmra.mxu0 %v1642
      %v1772 = vpop.f32.mrf.mxu0
      %v1773 = vadd.f32 0.0, %v1772
      %v1774 = vpop.f32.mrf.mxu0
      %v1775 = vadd.f32 0.0, %v1774
      %1776 = vmatmul.bf16.gmra.mxu0 %v1643
      %v1777 = vpop.f32.mrf.mxu0
      %v1778 = vadd.f32 0.0, %v1777
      %v1779 = vpop.f32.mrf.mxu0
      %v1780 = vadd.f32 0.0, %v1779
      %1781 = vmatmul.bf16.gmra.mxu0 %v1644
      %v1782 = vpop.f32.mrf.mxu0
      %v1783 = vadd.f32 0.0, %v1782
      %v1784 = vpop.f32.mrf.mxu0
      %v1785 = vadd.f32 0.0, %v1784
      %1786 = vdwg.mxu0
      %v1787 = vadd.f32 %v1606, %v1739
      %v1788 = vadd.f32 %v1607, %v1768
      %v1789 = vadd.f32 %v1608, %v1741
      %v1790 = vadd.f32 %v1609, %v1770
      %v1791 = vadd.f32 %v1610, %v1744
      %v1792 = vadd.f32 %v1611, %v1773
      %v1793 = vadd.f32 %v1612, %v1746
      %v1794 = vadd.f32 %v1613, %v1775
      %v1795 = vadd.f32 %v1614, %v1749
      %v1796 = vadd.f32 %v1615, %v1778
      %v1797 = vadd.f32 %v1616, %v1751
      %v1798 = vadd.f32 %v1617, %v1780
      %v1799 = vadd.f32 %v1618, %v1754
      %v1800 = vadd.f32 %v1619, %v1783
      %v1801 = vadd.f32 %v1620, %v1756
      %v1802 = vadd.f32 %v1621, %v1785
      %s1803 = scalar_lea.vmem %s1, 896
      %v1804 = vld [vmem:[%s1803] sm:$0xff]
      %v1805 = vld [vmem:[%s1803 + $0x8] sm:$0xff]
      %v1806 = vld [vmem:[%s1803 + $0x10] sm:$0xff]
      %v1807 = vld [vmem:[%s1803 + $0x18] sm:$0xff]
      %v1808 = vld [vmem:[%s1803 + $0x20] sm:$0xff]
      %v1809 = vld [vmem:[%s1803 + $0x28] sm:$0xff]
      %v1810 = vld [vmem:[%s1803 + $0x30] sm:$0xff]
      %v1811 = vld [vmem:[%s1803 + $0x38] sm:$0xff]
      %v1812 = vld [vmem:[%s1803 + $0x40] sm:$0xff]
      %v1813 = vld [vmem:[%s1803 + $0x48] sm:$0xff]
      %v1814 = vld [vmem:[%s1803 + $0x50] sm:$0xff]
      %v1815 = vld [vmem:[%s1803 + $0x58] sm:$0xff]
      %v1816 = vld [vmem:[%s1803 + $0x60] sm:$0xff]
      %v1817 = vld [vmem:[%s1803 + $0x68] sm:$0xff]
      %v1818 = vld [vmem:[%s1803 + $0x70] sm:$0xff]
      %v1819 = vld [vmem:[%s1803 + $0x78] sm:$0xff]
      %v1821 = vunpack.c.l.b16 %v249
      %v1822 = vpack.c.b16 %v317, %v316
      %v1823 = vpack.c.b16 %v319, %v318
      %v1824 = vpack.c.b16 %v321, %v320
      %v1825 = vpack.c.b16 %v1821, %v322
      %v1846 = vunpack.c.l.b16 %v1804
      %v1847 = vunpack.c.h.b16 %v1804
      %v1848 = vunpack.c.l.b16 %v1805
      %v1849 = vunpack.c.h.b16 %v1805
      %v1850 = vunpack.c.l.b16 %v1806
      %v1851 = vunpack.c.h.b16 %v1806
      %v1852 = vunpack.c.l.b16 %v1807
      %v1853 = vunpack.c.h.b16 %v1807
      %v1854 = vunpack.c.l.b16 %v1808
      %v1855 = vunpack.c.h.b16 %v1808
      %v1856 = vunpack.c.l.b16 %v1809
      %v1857 = vunpack.c.h.b16 %v1809
      %v1858 = vunpack.c.l.b16 %v1810
      %v1859 = vunpack.c.h.b16 %v1810
      %v1860 = vunpack.c.l.b16 %v1811
      %v1861 = vunpack.c.h.b16 %v1811
      %v1862 = vunpack.c.l.b16 %v1812
      %v1863 = vunpack.c.h.b16 %v1812
      %v1864 = vunpack.c.l.b16 %v1813
      %v1865 = vunpack.c.h.b16 %v1813
      %v1866 = vunpack.c.l.b16 %v1814
      %v1867 = vunpack.c.h.b16 %v1814
      %v1868 = vunpack.c.l.b16 %v1815
      %v1869 = vunpack.c.h.b16 %v1815
      %v1870 = vunpack.c.l.b16 %v1816
      %v1871 = vunpack.c.h.b16 %v1816
      %v1872 = vunpack.c.l.b16 %v1817
      %v1873 = vunpack.c.h.b16 %v1817
      %v1874 = vunpack.c.l.b16 %v1818
      %v1875 = vunpack.c.h.b16 %v1818
      %v1876 = vunpack.c.l.b16 %v1819
      %v1877 = vunpack.c.h.b16 %v1819
      %v1878 = vpack.c.b16 %v1848, %v1846
      %v1879 = vpack.c.b16 %v1849, %v1847
      %v1880 = vpack.c.b16 %v1852, %v1850
      %v1881 = vpack.c.b16 %v1853, %v1851
      %v1882 = vpack.c.b16 %v1856, %v1854
      %v1883 = vpack.c.b16 %v1857, %v1855
      %v1884 = vpack.c.b16 %v1860, %v1858
      %v1885 = vpack.c.b16 %v1861, %v1859
      %v1886 = vpack.c.b16 %v1864, %v1862
      %v1887 = vpack.c.b16 %v1865, %v1863
      %v1888 = vpack.c.b16 %v1868, %v1866
      %v1889 = vpack.c.b16 %v1869, %v1867
      %v1890 = vpack.c.b16 %v1872, %v1870
      %v1891 = vpack.c.b16 %v1873, %v1871
      %v1892 = vpack.c.b16 %v1876, %v1874
      %v1893 = vpack.c.b16 %v1877, %v1875
      %1910 = vmatpush.bf16.msra.mxu0 %v1892
      %1911 = vmatpush.bf16.msra.mxu0 %v1890
      %1912 = vmatpush.bf16.msra.mxu0 %v1888
      %1913 = vmatpush.bf16.msra.mxu0 %v1886
      %1914 = vmatpush.bf16.msra.mxu0 %v1884
      %1915 = vmatpush.bf16.msra.mxu0 %v1882
      %1916 = vmatpush.bf16.msra.mxu0 %v1880
      %1917 = vmatpush.bf16.msra.mxu0 %v1878
      %1918 = vmatmul.bf16.gmra.mxu0 %v1822
      %v1919 = vpop.f32.mrf.mxu0
      %v1920 = vadd.f32 0.0, %v1919
      %v1921 = vpop.f32.mrf.mxu0
      %v1922 = vadd.f32 0.0, %v1921
      %1923 = vmatmul.bf16.gmra.mxu0 %v1823
      %v1924 = vpop.f32.mrf.mxu0
      %v1925 = vadd.f32 0.0, %v1924
      %v1926 = vpop.f32.mrf.mxu0
      %v1927 = vadd.f32 0.0, %v1926
      %1928 = vmatmul.bf16.gmra.mxu0 %v1824
      %v1929 = vpop.f32.mrf.mxu0
      %v1930 = vadd.f32 0.0, %v1929
      %v1931 = vpop.f32.mrf.mxu0
      %v1932 = vadd.f32 0.0, %v1931
      %1933 = vmatmul.bf16.gmra.mxu0 %v1825
      %v1934 = vpop.f32.mrf.mxu0
      %v1935 = vadd.f32 0.0, %v1934
      %v1936 = vpop.f32.mrf.mxu0
      %v1937 = vadd.f32 0.0, %v1936
      %1938 = vdwg.mxu0
      %1939 = vmatpush.bf16.msra.mxu0 %v1893
      %1940 = vmatpush.bf16.msra.mxu0 %v1891
      %1941 = vmatpush.bf16.msra.mxu0 %v1889
      %1942 = vmatpush.bf16.msra.mxu0 %v1887
      %1943 = vmatpush.bf16.msra.mxu0 %v1885
      %1944 = vmatpush.bf16.msra.mxu0 %v1883
      %1945 = vmatpush.bf16.msra.mxu0 %v1881
      %1946 = vmatpush.bf16.msra.mxu0 %v1879
      %1947 = vmatmul.bf16.gmra.mxu0 %v1822
      %v1948 = vpop.f32.mrf.mxu0
      %v1949 = vadd.f32 0.0, %v1948
      %v1950 = vpop.f32.mrf.mxu0
      %v1951 = vadd.f32 0.0, %v1950
      %1952 = vmatmul.bf16.gmra.mxu0 %v1823
      %v1953 = vpop.f32.mrf.mxu0
      %v1954 = vadd.f32 0.0, %v1953
      %v1955 = vpop.f32.mrf.mxu0
      %v1956 = vadd.f32 0.0, %v1955
      %1957 = vmatmul.bf16.gmra.mxu0 %v1824
      %v1958 = vpop.f32.mrf.mxu0
      %v1959 = vadd.f32 0.0, %v1958
      %v1960 = vpop.f32.mrf.mxu0
      %v1961 = vadd.f32 0.0, %v1960
      %1962 = vmatmul.bf16.gmra.mxu0 %v1825
      %v1963 = vpop.f32.mrf.mxu0
      %v1964 = vadd.f32 0.0, %v1963
      %v1965 = vpop.f32.mrf.mxu0
      %v1966 = vadd.f32 0.0, %v1965
      %1967 = vdwg.mxu0
      %v1968 = vadd.f32 %v1787, %v1920
      %v1969 = vadd.f32 %v1788, %v1949
      %v1970 = vadd.f32 %v1789, %v1922
      %v1971 = vadd.f32 %v1790, %v1951
      %v1972 = vadd.f32 %v1791, %v1925
      %v1973 = vadd.f32 %v1792, %v1954
      %v1974 = vadd.f32 %v1793, %v1927
      %v1975 = vadd.f32 %v1794, %v1956
      %v1976 = vadd.f32 %v1795, %v1930
      %v1977 = vadd.f32 %v1796, %v1959
      %v1978 = vadd.f32 %v1797, %v1932
      %v1979 = vadd.f32 %v1798, %v1961
      %v1980 = vadd.f32 %v1799, %v1935
      %v1981 = vadd.f32 %v1800, %v1964
      %v1982 = vadd.f32 %v1801, %v1937
      %v1983 = vadd.f32 %v1802, %v1966
      %v1985 = vshrl.u32 %v239, 16
      %v1987 = vrot.slane %v1985, 4
      %v1988 = vshll.u32 %v239, 16
      %v1990 = vrot.slane %v1988, 5
      %v1991 = vor.u32 %v1987, %v1990
      %v1992 = vrot.slane %v1991, 4
      %v1994 = vshll.u32 %v240, 16
      %v1996 = vrot.slane %v1994, 5
      %v1997 = vsel %vm633, %v1992, %v1996
      %s1998 = scalar_lea.vmem %s1, 1024
      %v1999 = vld [vmem:[%s1998] sm:$0xff]
      %v2000 = vld [vmem:[%s1998 + $0x8] sm:$0xff]
      %v2001 = vld [vmem:[%s1998 + $0x10] sm:$0xff]
      %v2002 = vld [vmem:[%s1998 + $0x18] sm:$0xff]
      %v2003 = vld [vmem:[%s1998 + $0x20] sm:$0xff]
      %v2004 = vld [vmem:[%s1998 + $0x28] sm:$0xff]
      %v2005 = vld [vmem:[%s1998 + $0x30] sm:$0xff]
      %v2006 = vld [vmem:[%s1998 + $0x38] sm:$0xff]
      %v2007 = vld [vmem:[%s1998 + $0x40] sm:$0xff]
      %v2008 = vld [vmem:[%s1998 + $0x48] sm:$0xff]
      %v2009 = vld [vmem:[%s1998 + $0x50] sm:$0xff]
      %v2010 = vld [vmem:[%s1998 + $0x58] sm:$0xff]
      %v2011 = vld [vmem:[%s1998 + $0x60] sm:$0xff]
      %v2012 = vld [vmem:[%s1998 + $0x68] sm:$0xff]
      %v2013 = vld [vmem:[%s1998 + $0x70] sm:$0xff]
      %v2014 = vld [vmem:[%s1998 + $0x78] sm:$0xff]
      %v2015 = vunpack.c.l.b16 %v1997
      %v2016 = vpack.c.b16 %v765, %v764
      %v2017 = vpack.c.b16 %v767, %v766
      %v2018 = vpack.c.b16 %v769, %v768
      %v2019 = vpack.c.b16 %v2015, %v770
      %v2040 = vunpack.c.l.b16 %v1999
      %v2041 = vunpack.c.h.b16 %v1999
      %v2042 = vunpack.c.l.b16 %v2000
      %v2043 = vunpack.c.h.b16 %v2000
      %v2044 = vunpack.c.l.b16 %v2001
      %v2045 = vunpack.c.h.b16 %v2001
      %v2046 = vunpack.c.l.b16 %v2002
      %v2047 = vunpack.c.h.b16 %v2002
      %v2048 = vunpack.c.l.b16 %v2003
      %v2049 = vunpack.c.h.b16 %v2003
      %v2050 = vunpack.c.l.b16 %v2004
      %v2051 = vunpack.c.h.b16 %v2004
      %v2052 = vunpack.c.l.b16 %v2005
      %v2053 = vunpack.c.h.b16 %v2005
      %v2054 = vunpack.c.l.b16 %v2006
      %v2055 = vunpack.c.h.b16 %v2006
      %v2056 = vunpack.c.l.b16 %v2007
      %v2057 = vunpack.c.h.b16 %v2007
      %v2058 = vunpack.c.l.b16 %v2008
      %v2059 = vunpack.c.h.b16 %v2008
      %v2060 = vunpack.c.l.b16 %v2009
      %v2061 = vunpack.c.h.b16 %v2009
      %v2062 = vunpack.c.l.b16 %v2010
      %v2063 = vunpack.c.h.b16 %v2010
      %v2064 = vunpack.c.l.b16 %v2011
      %v2065 = vunpack.c.h.b16 %v2011
      %v2066 = vunpack.c.l.b16 %v2012
      %v2067 = vunpack.c.h.b16 %v2012
      %v2068 = vunpack.c.l.b16 %v2013
      %v2069 = vunpack.c.h.b16 %v2013
      %v2070 = vunpack.c.l.b16 %v2014
      %v2071 = vunpack.c.h.b16 %v2014
      %v2072 = vpack.c.b16 %v2042, %v2040
      %v2073 = vpack.c.b16 %v2043, %v2041
      %v2074 = vpack.c.b16 %v2046, %v2044
      %v2075 = vpack.c.b16 %v2047, %v2045
      %v2076 = vpack.c.b16 %v2050, %v2048
      %v2077 = vpack.c.b16 %v2051, %v2049
      %v2078 = vpack.c.b16 %v2054, %v2052
      %v2079 = vpack.c.b16 %v2055, %v2053
      %v2080 = vpack.c.b16 %v2058, %v2056
      %v2081 = vpack.c.b16 %v2059, %v2057
      %v2082 = vpack.c.b16 %v2062, %v2060
      %v2083 = vpack.c.b16 %v2063, %v2061
      %v2084 = vpack.c.b16 %v2066, %v2064
      %v2085 = vpack.c.b16 %v2067, %v2065
      %v2086 = vpack.c.b16 %v2070, %v2068
      %v2087 = vpack.c.b16 %v2071, %v2069
      %2104 = vmatpush.bf16.msra.mxu0 %v2086
      %2105 = vmatpush.bf16.msra.mxu0 %v2084
      %2106 = vmatpush.bf16.msra.mxu0 %v2082
      %2107 = vmatpush.bf16.msra.mxu0 %v2080
      %2108 = vmatpush.bf16.msra.mxu0 %v2078
      %2109 = vmatpush.bf16.msra.mxu0 %v2076
      %2110 = vmatpush.bf16.msra.mxu0 %v2074
      %2111 = vmatpush.bf16.msra.mxu0 %v2072
      %2112 = vmatmul.bf16.gmra.mxu0 %v2016
      %v2113 = vpop.f32.mrf.mxu0
      %v2114 = vadd.f32 0.0, %v2113
      %v2115 = vpop.f32.mrf.mxu0
      %v2116 = vadd.f32 0.0, %v2115
      %2117 = vmatmul.bf16.gmra.mxu0 %v2017
      %v2118 = vpop.f32.mrf.mxu0
      %v2119 = vadd.f32 0.0, %v2118
      %v2120 = vpop.f32.mrf.mxu0
      %v2121 = vadd.f32 0.0, %v2120
      %2122 = vmatmul.bf16.gmra.mxu0 %v2018
      %v2123 = vpop.f32.mrf.mxu0
      %v2124 = vadd.f32 0.0, %v2123
      %v2125 = vpop.f32.mrf.mxu0
      %v2126 = vadd.f32 0.0, %v2125
      %2127 = vmatmul.bf16.gmra.mxu0 %v2019
      %v2128 = vpop.f32.mrf.mxu0
      %v2129 = vadd.f32 0.0, %v2128
      %v2130 = vpop.f32.mrf.mxu0
      %v2131 = vadd.f32 0.0, %v2130
      %2132 = vdwg.mxu0
      %2133 = vmatpush.bf16.msra.mxu0 %v2087
      %2134 = vmatpush.bf16.msra.mxu0 %v2085
      %2135 = vmatpush.bf16.msra.mxu0 %v2083
      %2136 = vmatpush.bf16.msra.mxu0 %v2081
      %2137 = vmatpush.bf16.msra.mxu0 %v2079
      %2138 = vmatpush.bf16.msra.mxu0 %v2077
      %2139 = vmatpush.bf16.msra.mxu0 %v2075
      %2140 = vmatpush.bf16.msra.mxu0 %v2073
      %2141 = vmatmul.bf16.gmra.mxu0 %v2016
      %v2142 = vpop.f32.mrf.mxu0
      %v2143 = vadd.f32 0.0, %v2142
      %v2144 = vpop.f32.mrf.mxu0
      %v2145 = vadd.f32 0.0, %v2144
      %2146 = vmatmul.bf16.gmra.mxu0 %v2017
      %v2147 = vpop.f32.mrf.mxu0
      %v2148 = vadd.f32 0.0, %v2147
      %v2149 = vpop.f32.mrf.mxu0
      %v2150 = vadd.f32 0.0, %v2149
      %2151 = vmatmul.bf16.gmra.mxu0 %v2018
      %v2152 = vpop.f32.mrf.mxu0
      %v2153 = vadd.f32 0.0, %v2152
      %v2154 = vpop.f32.mrf.mxu0
      %v2155 = vadd.f32 0.0, %v2154
      %2156 = vmatmul.bf16.gmra.mxu0 %v2019
      %v2157 = vpop.f32.mrf.mxu0
      %v2158 = vadd.f32 0.0, %v2157
      %v2159 = vpop.f32.mrf.mxu0
      %v2160 = vadd.f32 0.0, %v2159
      %2161 = vdwg.mxu0
      %v2162 = vadd.f32 %v1968, %v2114
      %v2163 = vadd.f32 %v1969, %v2143
      %v2164 = vadd.f32 %v1970, %v2116
      %v2165 = vadd.f32 %v1971, %v2145
      %v2166 = vadd.f32 %v1972, %v2119
      %v2167 = vadd.f32 %v1973, %v2148
      %v2168 = vadd.f32 %v1974, %v2121
      %v2169 = vadd.f32 %v1975, %v2150
      %v2170 = vadd.f32 %v1976, %v2124
      %v2171 = vadd.f32 %v1977, %v2153
      %v2172 = vadd.f32 %v1978, %v2126
      %v2173 = vadd.f32 %v1979, %v2155
      %v2174 = vadd.f32 %v1980, %v2129
      %v2175 = vadd.f32 %v1981, %v2158
      %v2176 = vadd.f32 %v1982, %v2131
      %v2177 = vadd.f32 %v1983, %v2160
      %v2178 = vpack.c.bf16 %v2163, %v2162
      %v2179 = vpack.c.bf16 %v2165, %v2164
      %v2180 = vpack.c.bf16 %v2167, %v2166
      %v2181 = vpack.c.bf16 %v2169, %v2168
      %v2182 = vpack.c.bf16 %v2171, %v2170
      %v2183 = vpack.c.bf16 %v2173, %v2172
      %v2184 = vpack.c.bf16 %v2175, %v2174
      %v2185 = vpack.c.bf16 %v2177, %v2176
      %2186 = vst [vmem:[%s212] sm:$0xff] %v2178
      %2187 = vst [vmem:[%s212 + $0x8] sm:$0xff] %v2179
      %2188 = vst [vmem:[%s212 + $0x10] sm:$0xff] %v2180
      %2189 = vst [vmem:[%s212 + $0x18] sm:$0xff] %v2181
      %2190 = vst [vmem:[%s212 + $0x20] sm:$0xff] %v2182
      %2191 = vst [vmem:[%s212 + $0x28] sm:$0xff] %v2183
      %2192 = vst [vmem:[%s212 + $0x30] sm:$0xff] %v2184
      %2193 = vst [vmem:[%s212 + $0x38] sm:$0xff] %v2185
      %v2194 = vadd.f32 %v2162, %v2164
      %v2195 = vadd.f32 %v2194, %v2166
      %v2196 = vadd.f32 %v2195, %v2168
      %v2197 = vadd.f32 %v2196, %v2170
      %v2198 = vadd.f32 %v2197, %v2172
      %v2199 = vadd.f32 %v2198, %v2174
      %v2200 = vadd.f32 %v2199, %v2176
      %v2201 = vrot.slane %v2200, 4
      %v2202 = vadd.f32 %v2200, %v2201
      %v2203 = vrot.slane %v2202, 2
      %v2204 = vadd.f32 %v2202, %v2203
      %v2205 = vrot.slane %v2204, 1
      %v2206 = vadd.f32 %v2204, %v2205
      %v2207 = vadd.f32 %v2163, %v2165
      %v2208 = vadd.f32 %v2207, %v2167
      %v2209 = vadd.f32 %v2208, %v2169
      %v2210 = vadd.f32 %v2209, %v2171
      %v2211 = vadd.f32 %v2210, %v2173
      %v2212 = vadd.f32 %v2211, %v2175
      %v2213 = vadd.f32 %v2212, %v2177
      %v2214 = vrot.slane %v2213, 4
      %v2215 = vadd.f32 %v2213, %v2214
      %v2216 = vrot.slane %v2215, 2
      %v2217 = vadd.f32 %v2215, %v2216
      %v2218 = vrot.slane %v2217, 1
      %v2219 = vadd.f32 %v2217, %v2218
      %v2220 = vmul.f32 %v2162, %v2162
      %v2221 = vmul.f32 %v2163, %v2163
      %v2222 = vmul.f32 %v2164, %v2164
      %v2223 = vmul.f32 %v2165, %v2165
      %v2224 = vmul.f32 %v2166, %v2166
      %v2225 = vmul.f32 %v2167, %v2167
      %v2226 = vmul.f32 %v2168, %v2168
      %v2227 = vmul.f32 %v2169, %v2169
      %v2228 = vmul.f32 %v2170, %v2170
      %v2229 = vmul.f32 %v2171, %v2171
      %v2230 = vmul.f32 %v2172, %v2172
      %v2231 = vmul.f32 %v2173, %v2173
      %v2232 = vmul.f32 %v2174, %v2174
      %v2233 = vmul.f32 %v2175, %v2175
      %v2234 = vmul.f32 %v2176, %v2176
      %v2235 = vmul.f32 %v2177, %v2177
      %v2236 = vadd.f32 %v2220, %v2222
      %v2237 = vadd.f32 %v2236, %v2224
      %v2238 = vadd.f32 %v2237, %v2226
      %v2239 = vadd.f32 %v2238, %v2228
      %v2240 = vadd.f32 %v2239, %v2230
      %v2241 = vadd.f32 %v2240, %v2232
      %v2242 = vadd.f32 %v2241, %v2234
      %v2243 = vrot.slane %v2242, 4
      %v2244 = vadd.f32 %v2242, %v2243
      %v2245 = vrot.slane %v2244, 2
      %v2246 = vadd.f32 %v2244, %v2245
      %v2247 = vrot.slane %v2246, 1
      %v2248 = vadd.f32 %v2246, %v2247
      %v2249 = vadd.f32 %v2221, %v2223
      %v2250 = vadd.f32 %v2249, %v2225
      %v2251 = vadd.f32 %v2250, %v2227
      %v2252 = vadd.f32 %v2251, %v2229
      %v2253 = vadd.f32 %v2252, %v2231
      %v2254 = vadd.f32 %v2253, %v2233
      %v2255 = vadd.f32 %v2254, %v2235
      %v2256 = vrot.slane %v2255, 4
      %v2257 = vadd.f32 %v2255, %v2256
      %v2258 = vrot.slane %v2257, 2
      %v2259 = vadd.f32 %v2257, %v2258
      %v2260 = vrot.slane %v2259, 1
      %v2261 = vadd.f32 %v2259, %v2260
      %2262 = vst [vmem:[%s217] sm:$0xff] %v2206
      %2263 = vst [vmem:[%s217 + $0x8] sm:$0xff] %v2219
      %2264 = vst [vmem:[%s222] sm:$0xff] %v2248
      %2265 = vst [vmem:[%s222 + $0x8] sm:$0xff] %v2261
      %p2266 = scmp.lt.s32.totalorder %s16, 1
      %s2267 = scalar_select %p2266, %s16, 1
      %s2268 = smul.addr %s2267, 16
      %s2269 = smul.addr %s2268, 4
      %s2270 = scalar_lea.vmem %s2, %s2269
      %p2271 = scmp.lt.s32.totalorder %s16, 1
      %s2272 = scalar_select %p2271, %s16, 1
      %s2273 = smul.addr %s2272, 2
      %s2274 = smul.addr %s2273, 8
      %s2275 = scalar_lea.vmem %s3, %s2274
      %p2276 = scmp.lt.s32.totalorder %s16, 1
      %s2277 = scalar_select %p2276, %s16, 1
      %s2278 = smul.addr %s2277, 2
      %s2279 = smul.addr %s2278, 8
      %s2280 = scalar_lea.vmem %s4, %s2279
      // Predicated region
      $region29: #{basic_block_forward.4} parent=27 // pred_check
        %p2281 = pneg %p81
      $region30: #{basic_block_forward.4} parent=27 // pred_check_branch
        %2283 = sbr.rel (%p2281) target = $region32
      $region31: #{basic_block_forward.4} parent=27 // pred_region
        _
      $region32: #{basic_block_forward.4} parent=27 // pred_fallthru
        _
      // Predicated region
      $region33: #{basic_block_forward.4} parent=27 // pred_check
        %p2284 = pneg %p107
      $region34: #{basic_block_forward.4} parent=27 // pred_check_branch
        %2286 = sbr.rel (%p2284) target = $region36
      $region35: #{basic_block_forward.4} parent=27 // pred_region
        _
      $region36: #{basic_block_forward.4} parent=27 // pred_fallthru
        _
      // Predicated region
      $region37: #{basic_block_forward.4} parent=27 // pred_check
        %p2287 = pneg %p133
      $region38: #{basic_block_forward.4} parent=27 // pred_check_branch
        %2289 = sbr.rel (%p2287) target = $region40
      $region39: #{basic_block_forward.4} parent=27 // pred_region
        _
      $region40: #{basic_block_forward.4} parent=27 // pred_fallthru
        _
    $region28: #{basic_block_forward.4} parent=5 // pred_fallthru
      _
    %p2290 = scmp.le.s32.totalorder 2, %s11
    // Predicated region
    $region41: #{basic_block_forward.4} parent=5 // pred_check
      %p2291 = pneg %p2290
    $region42: #{basic_block_forward.4} parent=5 // pred_check_branch
      %2293 = sbr.rel (%p2291) target = $region44
    $region43: #{basic_block_forward.4} parent=5 // pred_region
      %s2294 = ssub.s32 %s11, 2
      // Predicated region
      $region45: #{basic_block_forward.4} parent=43 // pred_check
        %p2295 = pneg %p87
      $region46: #{basic_block_forward.4} parent=43 // pred_check_branch
        %2297 = sbr.rel (%p2295) target = $region48
      $region47: #{basic_block_forward.4} parent=43 // pred_region
        %p2298 = scmp.lt.s32.totalorder %s17, 1
        %s2299 = scalar_select %p2298, %s17, 1
        %s2300 = smul.addr %s2299, 16
        %s2301 = smul.addr %s2300, 4
        %s2302 = scalar_lea.vmem %s2, %s2301
      $region48: #{basic_block_forward.4} parent=43 // pred_fallthru
        _
      // Predicated region
      $region49: #{basic_block_forward.4} parent=43 // pred_check
        %p2303 = pneg %p113
      $region50: #{basic_block_forward.4} parent=43 // pred_check_branch
        %2305 = sbr.rel (%p2303) target = $region52
      $region51: #{basic_block_forward.4} parent=43 // pred_region
        %p2306 = scmp.lt.s32.totalorder %s17, 1
        %s2307 = scalar_select %p2306, %s17, 1
        %s2308 = smul.addr %s2307, 2
        %s2309 = smul.addr %s2308, 8
        %s2310 = scalar_lea.vmem %s3, %s2309
      $region52: #{basic_block_forward.4} parent=43 // pred_fallthru
        _
      // Predicated region
      $region53: #{basic_block_forward.4} parent=43 // pred_check
        %p2311 = pneg %p139
      $region54: #{basic_block_forward.4} parent=43 // pred_check_branch
        %2313 = sbr.rel (%p2311) target = $region56
      $region55: #{basic_block_forward.4} parent=43 // pred_region
        %p2314 = scmp.lt.s32.totalorder %s17, 1
        %s2315 = scalar_select %p2314, %s17, 1
        %s2316 = smul.addr %s2315, 2
        %s2317 = smul.addr %s2316, 8
        %s2318 = scalar_lea.vmem %s4, %s2317
      $region56: #{basic_block_forward.4} parent=43 // pred_fallthru
        _
    $region44: #{basic_block_forward.4} parent=5 // pred_fallthru
      _
  $region6: #{basic_block_forward.4} parent=0 // loop_footer
    %s15 = sadd.s32 1, %s11
  $region7: #{basic_block_forward.4} parent=0 // loop_footer_branch
    %10 = sbr.rel target = $region3
  $region8: #{basic_block_forward.4} parent=0 // loop_exit
    _

// kernel: basic_block_forward.6
$region0: #{basic_block_forward.6}
  #allocation0 [shape = 'u32[]', space=smem, size = 0x4, offset = 0x4, fixed_abs, tag = 'smem constant byte address 0x4 - core index']
  #allocation1 [shape = 'u32[72,128]{1,0:T(1,128)}', space=vmem, size = 0x9000, scoped, tag = 'internal scratch']
  %s0 = inlined_call_operand.vmem [shape: bf16[2,10,10,128], index: 0, kind: input, shape index: {}]
  %s1 = inlined_call_operand.vmem [shape: bf16[9,128,128], index: 1, kind: input, shape index: {}]
  %s2 = inlined_call_operand.vmem [shape: bf16[2,64,128], index: 2, kind: output, shape index: {0}]
  %s3 = inlined_call_operand.vmem [shape: f32[2,8,128], index: 3, kind: output, shape index: {1}]
  %s4 = inlined_call_operand.vmem [shape: f32[2,8,128], index: 4, kind: output, shape index: {2}]
  %5 = xla_tuple %s2, %s3, %s4
  %s6 = sld [smem:[#allocation0]]
  $region57: #{basic_block_forward.6} parent=0
    _
  %s8 = ssub.s32 1, %s6
  %s9 = scalar_select 0, %s8, %s6
  loop: start=0, step=1, limit=4
  $region2: #{basic_block_forward.6} parent=0 // loop_pre_header
    _
  $region3: #{basic_block_forward.6} parent=0 // loop_header
    %s11 = sphi 0, %s15
    %p12 = scmp.ge.s32.totalorder %s11, 4
    %s21 = sphi 0, %s23
    %s24 = sphi 0, %s21
    %s25 = sphi 0, %s24
    %s41 = sphi 0, %s25
    %s45 = sphi 0, %s45
    %s47 = sphi 0, %s45
    %s48 = sphi 0, %s47
    %s62 = sphi 0, %s48
    %s68 = sphi 0, %s70
    %s71 = sphi 0, %s68
    %s72 = sphi 0, %s71
    %s88 = sphi 0, %s72
    %s94 = sphi 0, %s96
    %s97 = sphi 0, %s94
    %s98 = sphi 0, %s97
    %s114 = sphi 0, %s98
    %s120 = sphi 0, %s122
    %s123 = sphi 0, %s120
    %s124 = sphi 0, %s123
    %s140 = sphi 0, %s124
  $region4: #{basic_block_forward.6} parent=0 // loop_header_branch
    %14 = sbr.rel (%p12) target = $region8
  $region5: #{basic_block_forward.6} parent=0 // loop_body
    %s16 = ssub.s32 %s11, 1
    %s17 = ssub.s32 %s11, 2
    %s18 = sadd.s32 %s11, 1
    %s19 = ssub.s32 %s11, %s18
    %p20 = scmp.eq.s32.totalorder %s19, 0
    %s22 = sadd.s32 %s21, 1
    %s23 = scalar_select %p20, %s21, %s22
    %p26 = pneg %p20
    %p27 = scmp.eq.s32.totalorder %s11, 1
    %p28 = por %p26, %p27
    %p29 = scmp.ne.s32.totalorder %s21, %s24
    %p30 = scmp.eq.s32.totalorder %s11, 0
    %p31 = por %p29, %p30
    %p32 = scmp.ne.s32.totalorder %s21, %s24
    %p33 = scmp.eq.s32.totalorder %s16, 1
    %p34 = por %p32, %p33
    %p35 = scmp.ne.s32.totalorder %s24, %s25
    %p36 = scmp.eq.s32.totalorder %s16, 0
    %p37 = por %p35, %p36
    %p38 = scmp.ne.s32.totalorder %s24, %s25
    %p39 = scmp.eq.s32.totalorder %s17, 1
    %p40 = por %p38, %p39
    %p42 = scmp.ne.s32.totalorder %s25, %s41
    %p43 = scmp.eq.s32.totalorder %s17, 0
    %p44 = por %p42, %p43
    %s46 = sadd.s32 %s45, 1
    %p49 = scmp.eq.s32.totalorder %s11, 1
    %p50 = scmp.ne.s32.totalorder %s45, %s47
    %p51 = scmp.eq.s32.totalorder %s11, 0
    %p52 = por %p50, %p51
    %p53 = scmp.ne.s32.totalorder %s45, %s47
    %p54 = scmp.eq.s32.totalorder %s16, 1
    %p55 = por %p53, %p54
    %p56 = scmp.ne.s32.totalorder %s47, %s48
    %p57 = scmp.eq.s32.totalorder %s16, 0
    %p58 = por %p56, %p57
    %p59 = scmp.ne.s32.totalorder %s47, %s48
    %p60 = scmp.eq.s32.totalorder %s17, 1
    %p61 = por %p59, %p60
    %p63 = scmp.ne.s32.totalorder %s48, %s62
    %p64 = scmp.eq.s32.totalorder %s17, 0
    %p65 = por %p63, %p64
    %s66 = ssub.s32 %s11, %s18
    %p67 = scmp.eq.s32.totalorder %s66, 0
    %s69 = sadd.s32 %s68, 1
    %s70 = scalar_select %p67, %s68, %s69
    %p73 = pneg %p67
    %p74 = scmp.eq.s32.totalorder %s11, 1
    %p75 = por %p73, %p74
    %p76 = scmp.ne.s32.totalorder %s68, %s71
    %p77 = scmp.eq.s32.totalorder %s11, 0
    %p78 = por %p76, %p77
    %p79 = scmp.ne.s32.totalorder %s68, %s71
    %p80 = scmp.eq.s32.totalorder %s16, 1
    %p81 = por %p79, %p80
    %p82 = scmp.ne.s32.totalorder %s71, %s72
    %p83 = scmp.eq.s32.totalorder %s16, 0
    %p84 = por %p82, %p83
    %p85 = scmp.ne.s32.totalorder %s71, %s72
    %p86 = scmp.eq.s32.totalorder %s17, 1
    %p87 = por %p85, %p86
    %p89 = scmp.ne.s32.totalorder %s72, %s88
    %p90 = scmp.eq.s32.totalorder %s17, 0
    %p91 = por %p89, %p90
    %s92 = ssub.s32 %s11, %s18
    %p93 = scmp.eq.s32.totalorder %s92, 0
    %s95 = sadd.s32 %s94, 1
    %s96 = scalar_select %p93, %s94, %s95
    %p99 = pneg %p93
    %p100 = scmp.eq.s32.totalorder %s11, 1
    %p101 = por %p99, %p100
    %p102 = scmp.ne.s32.totalorder %s94, %s97
    %p103 = scmp.eq.s32.totalorder %s11, 0
    %p104 = por %p102, %p103
    %p105 = scmp.ne.s32.totalorder %s94, %s97
    %p106 = scmp.eq.s32.totalorder %s16, 1
    %p107 = por %p105, %p106
    %p108 = scmp.ne.s32.totalorder %s97, %s98
    %p109 = scmp.eq.s32.totalorder %s16, 0
    %p110 = por %p108, %p109
    %p111 = scmp.ne.s32.totalorder %s97, %s98
    %p112 = scmp.eq.s32.totalorder %s17, 1
    %p113 = por %p111, %p112
    %p115 = scmp.ne.s32.totalorder %s98, %s114
    %p116 = scmp.eq.s32.totalorder %s17, 0
    %p117 = por %p115, %p116
    %s118 = ssub.s32 %s11, %s18
    %p119 = scmp.eq.s32.totalorder %s118, 0
    %s121 = sadd.s32 %s120, 1
    %s122 = scalar_select %p119, %s120, %s121
    %p125 = pneg %p119
    %p126 = scmp.eq.s32.totalorder %s11, 1
    %p127 = por %p125, %p126
    %p128 = scmp.ne.s32.totalorder %s120, %s123
    %p129 = scmp.eq.s32.totalorder %s11, 0
    %p130 = por %p128, %p129
    %p131 = scmp.ne.s32.totalorder %s120, %s123
    %p132 = scmp.eq.s32.totalorder %s16, 1
    %p133 = por %p131, %p132
    %p134 = scmp.ne.s32.totalorder %s123, %s124
    %p135 = scmp.eq.s32.totalorder %s16, 0
    %p136 = por %p134, %p135
    %p137 = scmp.ne.s32.totalorder %s123, %s124
    %p138 = scmp.eq.s32.totalorder %s17, 1
    %p139 = por %p137, %p138
    %p141 = scmp.ne.s32.totalorder %s124, %s140
    %p142 = scmp.eq.s32.totalorder %s17, 0
    %p143 = por %p141, %p142
    %p144 = scmp.le.s32.totalorder 1, %s11
    %p145 = scmp.lt.s32.totalorder %s11, 3
    %p146 = pnand %p144, %p145
    %p147 = pneg %p146
    // Predicated region
    $region9: #{basic_block_forward.6} parent=5 // pred_check
      _
    $region10: #{basic_block_forward.6} parent=5 // pred_check_branch
      %149 = sbr.rel (%p146) target = $region12
    $region11: #{basic_block_forward.6} parent=5 // pred_region
      %s150 = ssub.s32 %s11, 1
      // Predicated region
      $region13: #{basic_block_forward.6} parent=11 // pred_check
        %p151 = pneg %p58
      $region14: #{basic_block_forward.6} parent=11 // pred_check_branch
        %153 = sbr.rel (%p151) target = $region16
      $region15: #{basic_block_forward.6} parent=11 // pred_region
        _
      $region16: #{basic_block_forward.6} parent=11 // pred_fallthru
        _
    $region12: #{basic_block_forward.6} parent=5 // pred_fallthru
      _
    %p154 = scmp.lt.s32.totalorder %s11, 2
    // Predicated region
    $region17: #{basic_block_forward.6} parent=5 // pred_check
      %p155 = pneg %p154
    $region18: #{basic_block_forward.6} parent=5 // pred_check_branch
      %157 = sbr.rel (%p155) target = $region20
    $region19: #{basic_block_forward.6} parent=5 // pred_region
      // Predicated region
      $region21: #{basic_block_forward.6} parent=19 // pred_check
        %p158 = pneg %p31
      $region22: #{basic_block_forward.6} parent=19 // pred_check_branch
        %160 = sbr.rel (%p158) target = $region24
      $region23: #{basic_block_forward.6} parent=19 // pred_region
        %p161 = scmp.lt.s32.totalorder %s11, 1
        %s162 = scalar_select %p161, %s11, 1
        %s163 = smul.addr %s162, 20
        %s164 = smul.addr %s163, 4
        %s165 = scalar_lea.vmem %s0, %s164
      $region24: #{basic_block_forward.6} parent=19 // pred_fallthru
        _
    $region20: #{basic_block_forward.6} parent=5 // pred_fallthru
      _
    %p166 = scmp.le.s32.totalorder 1, %s11
    %p167 = scmp.lt.s32.totalorder %s11, 3
    %p168 = pnand %p166, %p167
    %p169 = pneg %p168
    // Predicated region
    $region25: #{basic_block_forward.6} parent=5 // pred_check
      _
    $region26: #{basic_block_forward.6} parent=5 // pred_check_branch
      %171 = sbr.rel (%p168) target = $region28
    $region27: #{basic_block_forward.6} parent=5 // pred_region
      %s172 = ssub.s32 %s11, 1
      %p173 = scmp.lt.s32.totalorder %s16, 1
      %s174 = scalar_select %p173, %s16, 1
      %s175 = smul.addr %s174, 20
      %s176 = smul.addr %s175, 4
      %s177 = scalar_lea.vmem %s0, %s176
      %p178 = pneg %p37
      %p179 = pneg %p34
      %p180 = pneg %p58
      %p181 = pneg %p55
      %p182 = pneg %p84
      %p183 = pneg %p81
      %p184 = scmp.lt.s32.totalorder %s16, 1
      %s185 = scalar_select %p184, %s16, 1
      %s186 = smul.addr %s185, 8
      %s187 = smul.addr %s186, 4
      %s188 = scalar_lea.vmem %s2, %s187
      %p189 = pneg %p110
      %p190 = pneg %p107
      %p191 = scmp.lt.s32.totalorder %s16, 1
      %s192 = scalar_select %p191, %s16, 1
      %s193 = smul.addr %s192, 8
      %s194 = scalar_lea.vmem %s3, %s193
      %p195 = pneg %p136
      %p196 = pneg %p133
      %p197 = scmp.lt.s32.totalorder %s16, 1
      %s198 = scalar_select %p197, %s16, 1
      %s199 = smul.addr %s198, 8
      %s200 = scalar_lea.vmem %s4, %s199
      %p201 = scmp.lt.s32.totalorder %s16, 1
      %s202 = scalar_select %p201, %s16, 1
      %s203 = smul.addr %s202, 20
      %s204 = smul.addr %s203, 4
      %s205 = scalar_lea.vmem %s0, %s204
      %p206 = scmp.lt.s32.totalorder %s16, 1
      %s207 = scalar_select %p206, %s16, 1
      %s208 = smul.addr %s207, 8
      %s209 = smul.addr %s208, 4
      %s210 = scalar_lea.vmem %s2, %s209
      %p211 = scmp.lt.s32.totalorder %s16, 1
      %s212 = scalar_select %p211, %s16, 1
      %s213 = smul.addr %s212, 8
      %s214 = scalar_lea.vmem %s3, %s213
      %p215 = scmp.lt.s32.totalorder %s16, 1
      %s216 = scalar_select %p215, %s16, 1
      %s217 = smul.addr %s216, 8
      %s218 = scalar_lea.vmem %s4, %s217
      %v219 = vld [vmem:[%s205] sm:$0xf]
      %v220 = vld [vmem:[%s205 + $0x4] sm:$0x1]
      %v221 = vld [vmem:[%s205 + $0x8] sm:$0xf]
      %v222 = vld [vmem:[%s205 + $0xc] sm:$0x1]
      %v223 = vld [vmem:[%s205 + $0x10] sm:$0xf]
      %v224 = vld [vmem:[%s205 + $0x14] sm:$0x1]
      %v225 = vld [vmem:[%s205 + $0x18] sm:$0xf]
      %v226 = vld [vmem:[%s205 + $0x1c] sm:$0x1]
      %v227 = vld [vmem:[%s205 + $0x20] sm:$0xf]
      %v228 = vld [vmem:[%s205 + $0x24] sm:$0x1]
      %v229 = vld [vmem:[%s205 + $0x28] sm:$0xf]
      %v230 = vld [vmem:[%s205 + $0x2c] sm:$0x1]
      %v231 = vld [vmem:[%s205 + $0x30] sm:$0xf]
      %v232 = vld [vmem:[%s205 + $0x34] sm:$0x1]
      %v233 = vld [vmem:[%s205 + $0x38] sm:$0xf]
      %v234 = vld [vmem:[%s205 + $0x3c] sm:$0x1]
      %v235 = vld [vmem:[%s205 + $0x40] sm:$0xf]
      %v236 = vld [vmem:[%s205 + $0x44] sm:$0x1]
      %v237 = vld [vmem:[%s205 + $0x48] sm:$0xf]
      %v238 = vld [vmem:[%s205 + $0x4c] sm:$0x1]
      %v239 = vld [vmem:[%s1] sm:$0xf]
      %v240 = vld [vmem:[%s1 + $0x4] sm:$0xf]
      %v241 = vld [vmem:[%s1 + $0x8] sm:$0xf]
      %v242 = vld [vmem:[%s1 + $0xc] sm:$0xf]
      %v243 = vld [vmem:[%s1 + $0x10] sm:$0xf]
      %v244 = vld [vmem:[%s1 + $0x14] sm:$0xf]
      %v245 = vld [vmem:[%s1 + $0x18] sm:$0xf]
      %v246 = vld [vmem:[%s1 + $0x1c] sm:$0xf]
      %v247 = vld [vmem:[%s1 + $0x20] sm:$0xf]
      %v248 = vld [vmem:[%s1 + $0x24] sm:$0xf]
      %v249 = vld [vmem:[%s1 + $0x28] sm:$0xf]
      %v250 = vld [vmem:[%s1 + $0x2c] sm:$0xf]
      %v251 = vld [vmem:[%s1 + $0x30] sm:$0xf]
      %v252 = vld [vmem:[%s1 + $0x34] sm:$0xf]
      %v253 = vld [vmem:[%s1 + $0x38] sm:$0xf]
      %v254 = vld [vmem:[%s1 + $0x3c] sm:$0xf]
      %vm255 = vsmask.f32 3328
      %vm256 = vsmask.f32 7440
      %vm257 = vmor %vm255, %vm256
      %v259 = vshrl.u32 %v219, 16
      %v261 = vrot.slane %v259, 4
      %v262 = vshll.u32 %v219, 16
      %v264 = vrot.slane %v262, 5
      %v265 = vor.u32 %v261, %v264
      %v266 = vrot.slane %v265, 4
      %v268 = vshll.u32 %v220, 16
      %v270 = vrot.slane %v268, 5
      %v271 = vsel %vm257, %v266, %v270
      %v273 = vshrl.u32 %v221, 16
      %v275 = vrot.slane %v273, 4
      %v276 = vshll.u32 %v221, 16
      %v278 = vrot.slane %v276, 5
      %v279 = vor.u32 %v275, %v278
      %v280 = vrot.slane %v279, 4
      %v282 = vshll.u32 %v222, 16
      %v284 = vrot.slane %v282, 5
      %v285 = vsel %vm257, %v280, %v284
      %v287 = vshrl.u32 %v223, 16
      %v289 = vrot.slane %v287, 4
      %v290 = vshll.u32 %v223, 16
      %v292 = vrot.slane %v290, 5
      %v293 = vor.u32 %v289, %v292
      %v294 = vrot.slane %v293, 4
      %v296 = vshll.u32 %v224, 16
      %v298 = vrot.slane %v296, 5
      %v299 = vsel %vm257, %v294, %v298
      %v301 = vshrl.u32 %v225, 16
      %v303 = vrot.slane %v301, 4
      %v304 = vshll.u32 %v225, 16
      %v306 = vrot.slane %v304, 5
      %v307 = vor.u32 %v303, %v306
      %v308 = vrot.slane %v307, 4
      %v310 = vshll.u32 %v226, 16
      %v312 = vrot.slane %v310, 5
      %v313 = vsel %vm257, %v308, %v312
      %v315 = vshrl.u32 %v227, 16
      %v317 = vrot.slane %v315, 4
      %v318 = vshll.u32 %v227, 16
      %v320 = vrot.slane %v318, 5
      %v321 = vor.u32 %v317, %v320
      %v322 = vrot.slane %v321, 4
      %v324 = vshll.u32 %v228, 16
      %v326 = vrot.slane %v324, 5
      %v327 = vsel %vm257, %v322, %v326
      %v329 = vshrl.u32 %v229, 16
      %v331 = vrot.slane %v329, 4
      %v332 = vshll.u32 %v229, 16
      %v334 = vrot.slane %v332, 5
      %v335 = vor.u32 %v331, %v334
      %v336 = vrot.slane %v335, 4
      %v338 = vshll.u32 %v230, 16
      %v340 = vrot.slane %v338, 5
      %v341 = vsel %vm257, %v336, %v340
      %v343 = vshrl.u32 %v231, 16
      %v345 = vrot.slane %v343, 4
      %v346 = vshll.u32 %v231, 16
      %v348 = vrot.slane %v346, 5
      %v349 = vor.u32 %v345, %v348
      %v350 = vrot.slane %v349, 4
      %v352 = vshll.u32 %v232, 16
      %v354 = vrot.slane %v352, 5
      %v355 = vsel %vm257, %v350, %v354
      %v357 = vshrl.u32 %v233, 16
      %v359 = vrot.slane %v357, 4
      %v360 = vshll.u32 %v233, 16
      %v362 = vrot.slane %v360, 5
      %v363 = vor.u32 %v359, %v362
      %v364 = vrot.slane %v363, 4
      %v366 = vshll.u32 %v234, 16
      %v368 = vrot.slane %v366, 5
      %v369 = vsel %vm257, %v364, %v368
      %s370 = scalar_lea.vmem %s1, 64
      %v371 = vld [vmem:[%s370] sm:$0xf]
      %v372 = vld [vmem:[%s370 + $0x4] sm:$0xf]
      %v373 = vld [vmem:[%s370 + $0x8] sm:$0xf]
      %v374 = vld [vmem:[%s370 + $0xc] sm:$0xf]
      %v375 = vld [vmem:[%s370 + $0x10] sm:$0xf]
      %v376 = vld [vmem:[%s370 + $0x14] sm:$0xf]
      %v377 = vld [vmem:[%s370 + $0x18] sm:$0xf]
      %v378 = vld [vmem:[%s370 + $0x1c] sm:$0xf]
      %v379 = vld [vmem:[%s370 + $0x20] sm:$0xf]
      %v380 = vld [vmem:[%s370 + $0x24] sm:$0xf]
      %v381 = vld [vmem:[%s370 + $0x28] sm:$0xf]
      %v382 = vld [vmem:[%s370 + $0x2c] sm:$0xf]
      %v383 = vld [vmem:[%s370 + $0x30] sm:$0xf]
      %v384 = vld [vmem:[%s370 + $0x34] sm:$0xf]
      %v385 = vld [vmem:[%s370 + $0x38] sm:$0xf]
      %v386 = vld [vmem:[%s370 + $0x3c] sm:$0xf]
      %v387 = vunpack.c.l.b16 %v271
      %v388 = vunpack.c.l.b16 %v285
      %v389 = vunpack.c.l.b16 %v299
      %v390 = vunpack.c.l.b16 %v313
      %v391 = vunpack.c.l.b16 %v327
      %v392 = vunpack.c.l.b16 %v341
      %v393 = vunpack.c.l.b16 %v355
      %v394 = vunpack.c.l.b16 %v369
      %v395 = vpack.c.b16 %v388, %v387
      %v396 = vpack.c.b16 %v390, %v389
      %v397 = vpack.c.b16 %v392, %v391
      %v398 = vpack.c.b16 %v394, %v393
      %v419 = vunpack.c.l.b16 %v371
      %v420 = vunpack.c.l.b16 %v372
      %v421 = vunpack.c.l.b16 %v373
      %v422 = vunpack.c.l.b16 %v374
      %v423 = vunpack.c.l.b16 %v375
      %v424 = vunpack.c.l.b16 %v376
      %v425 = vunpack.c.l.b16 %v377
      %v426 = vunpack.c.l.b16 %v378
      %v427 = vunpack.c.l.b16 %v379
      %v428 = vunpack.c.l.b16 %v380
      %v429 = vunpack.c.l.b16 %v381
      %v430 = vunpack.c.l.b16 %v382
      %v431 = vunpack.c.l.b16 %v383
      %v432 = vunpack.c.l.b16 %v384
      %v433 = vunpack.c.l.b16 %v385
      %v434 = vunpack.c.l.b16 %v386
      %v435 = vpack.c.b16 %v420, %v419
      %v436 = vpack.c.b16 %v422, %v421
      %v437 = vpack.c.b16 %v424, %v423
      %v438 = vpack.c.b16 %v426, %v425
      %v439 = vpack.c.b16 %v428, %v427
      %v440 = vpack.c.b16 %v430, %v429
      %v441 = vpack.c.b16 %v432, %v431
      %v442 = vpack.c.b16 %v434, %v433
      %451 = vmatpush.bf16.msra.mxu0 %v442
      %452 = vmatpush.bf16.msra.mxu0 %v441
      %453 = vmatpush.bf16.msra.mxu0 %v440
      %454 = vmatpush.bf16.msra.mxu0 %v439
      %455 = vmatpush.bf16.msra.mxu0 %v438
      %456 = vmatpush.bf16.msra.mxu0 %v437
      %457 = vmatpush.bf16.msra.mxu0 %v436
      %458 = vmatpush.bf16.msra.mxu0 %v435
      %459 = vmatmul.bf16.gmra.mxu0 %v395
      %v460 = vpop.f32.mrf.mxu0
      %v461 = vadd.f32 0.0, %v460
      %v462 = vpop.f32.mrf.mxu0
      %v463 = vadd.f32 0.0, %v462
      %464 = vmatmul.bf16.gmra.mxu0 %v396
      %v465 = vpop.f32.mrf.mxu0
      %v466 = vadd.f32 0.0, %v465
      %v467 = vpop.f32.mrf.mxu0
      %v468 = vadd.f32 0.0, %v467
      %469 = vmatmul.bf16.gmra.mxu0 %v397
      %v470 = vpop.f32.mrf.mxu0
      %v471 = vadd.f32 0.0, %v470
      %v472 = vpop.f32.mrf.mxu0
      %v473 = vadd.f32 0.0, %v472
      %474 = vmatmul.bf16.gmra.mxu0 %v398
      %v475 = vpop.f32.mrf.mxu0
      %v476 = vadd.f32 0.0, %v475
      %v477 = vpop.f32.mrf.mxu0
      %v478 = vadd.f32 0.0, %v477
      %479 = vdwg.mxu0
      %v488 = vunpack.c.l.b16 %v219
      %v489 = vunpack.c.l.b16 %v221
      %v490 = vunpack.c.l.b16 %v223
      %v491 = vunpack.c.l.b16 %v225
      %v492 = vunpack.c.l.b16 %v227
      %v493 = vunpack.c.l.b16 %v229
      %v494 = vunpack.c.l.b16 %v231
      %v495 = vunpack.c.l.b16 %v233
      %v496 = vpack.c.b16 %v489, %v488
      %v497 = vpack.c.b16 %v491, %v490
      %v498 = vpack.c.b16 %v493, %v492
      %v499 = vpack.c.b16 %v495, %v494
      %v520 = vunpack.c.l.b16 %v239
      %v521 = vunpack.c.l.b16 %v240
      %v522 = vunpack.c.l.b16 %v241
      %v523 = vunpack.c.l.b16 %v242
      %v524 = vunpack.c.l.b16 %v243
      %v525 = vunpack.c.l.b16 %v244
      %v526 = vunpack.c.l.b16 %v245
      %v527 = vunpack.c.l.b16 %v246
      %v528 = vunpack.c.l.b16 %v247
      %v529 = vunpack.c.l.b16 %v248
      %v530 = vunpack.c.l.b16 %v249
      %v531 = vunpack.c.l.b16 %v250
      %v532 = vunpack.c.l.b16 %v251
      %v533 = vunpack.c.l.b16 %v252
      %v534 = vunpack.c.l.b16 %v253
      %v535 = vunpack.c.l.b16 %v254
      %v536 = vpack.c.b16 %v521, %v520
      %v537 = vpack.c.b16 %v523, %v522
      %v538 = vpack.c.b16 %v525, %v524
      %v539 = vpack.c.b16 %v527, %v526
      %v540 = vpack.c.b16 %v529, %v528
      %v541 = vpack.c.b16 %v531, %v530
      %v542 = vpack.c.b16 %v533, %v532
      %v543 = vpack.c.b16 %v535, %v534
      %552 = vmatpush.bf16.msra.mxu0 %v543
      %553 = vmatpush.bf16.msra.mxu0 %v542
      %554 = vmatpush.bf16.msra.mxu0 %v541
      %555 = vmatpush.bf16.msra.mxu0 %v540
      %556 = vmatpush.bf16.msra.mxu0 %v539
      %557 = vmatpush.bf16.msra.mxu0 %v538
      %558 = vmatpush.bf16.msra.mxu0 %v537
      %559 = vmatpush.bf16.msra.mxu0 %v536
      %560 = vmatmul.bf16.gmra.mxu0 %v496
      %v561 = vpop.f32.mrf.mxu0
      %v562 = vadd.f32 %v461, %v561
      %v563 = vpop.f32.mrf.mxu0
      %v564 = vadd.f32 %v463, %v563
      %565 = vmatmul.bf16.gmra.mxu0 %v497
      %v566 = vpop.f32.mrf.mxu0
      %v567 = vadd.f32 %v466, %v566
      %v568 = vpop.f32.mrf.mxu0
      %v569 = vadd.f32 %v468, %v568
      %570 = vmatmul.bf16.gmra.mxu0 %v498
      %v571 = vpop.f32.mrf.mxu0
      %v572 = vadd.f32 %v471, %v571
      %v573 = vpop.f32.mrf.mxu0
      %v574 = vadd.f32 %v473, %v573
      %575 = vmatmul.bf16.gmra.mxu0 %v499
      %v576 = vpop.f32.mrf.mxu0
      %v577 = vadd.f32 %v476, %v576
      %v578 = vpop.f32.mrf.mxu0
      %v579 = vadd.f32 %v478, %v578
      %580 = vdwg.mxu0
      %vm589 = vcmask 1042432
      %vm590 = vcmask 1046532
      %vm591 = vmor %vm589, %vm590
      %v592 = vrot.slane %v219, 5
      %v593 = vrot.slane %v592, 4
      %v594 = vrot.slane %v220, 5
      %v595 = vsel %vm591, %v593, %v594
      %v596 = vrot.slane %v221, 5
      %v597 = vrot.slane %v596, 4
      %v598 = vrot.slane %v222, 5
      %v599 = vsel %vm591, %v597, %v598
      %v600 = vrot.slane %v223, 5
      %v601 = vrot.slane %v600, 4
      %v602 = vrot.slane %v224, 5
      %v603 = vsel %vm591, %v601, %v602
      %v604 = vrot.slane %v225, 5
      %v605 = vrot.slane %v604, 4
      %v606 = vrot.slane %v226, 5
      %v607 = vsel %vm591, %v605, %v606
      %v608 = vrot.slane %v227, 5
      %v609 = vrot.slane %v608, 4
      %v610 = vrot.slane %v228, 5
      %v611 = vsel %vm591, %v609, %v610
      %v612 = vrot.slane %v229, 5
      %v613 = vrot.slane %v612, 4
      %v614 = vrot.slane %v230, 5
      %v615 = vsel %vm591, %v613, %v614
      %v616 = vrot.slane %v231, 5
      %v617 = vrot.slane %v616, 4
      %v618 = vrot.slane %v232, 5
      %v619 = vsel %vm591, %v617, %v618
      %v620 = vrot.slane %v233, 5
      %v621 = vrot.slane %v620, 4
      %v622 = vrot.slane %v234, 5
      %v623 = vsel %vm591, %v621, %v622
      %s624 = scalar_lea.vmem %s1, 128
      %v625 = vld [vmem:[%s624] sm:$0xf]
      %v626 = vld [vmem:[%s624 + $0x4] sm:$0xf]
      %v627 = vld [vmem:[%s624 + $0x8] sm:$0xf]
      %v628 = vld [vmem:[%s624 + $0xc] sm:$0xf]
      %v629 = vld [vmem:[%s624 + $0x10] sm:$0xf]
      %v630 = vld [vmem:[%s624 + $0x14] sm:$0xf]
      %v631 = vld [vmem:[%s624 + $0x18] sm:$0xf]
      %v632 = vld [vmem:[%s624 + $0x1c] sm:$0xf]
      %v633 = vld [vmem:[%s624 + $0x20] sm:$0xf]
      %v634 = vld [vmem:[%s624 + $0x24] sm:$0xf]
      %v635 = vld [vmem:[%s624 + $0x28] sm:$0xf]
      %v636 = vld [vmem:[%s624 + $0x2c] sm:$0xf]
      %v637 = vld [vmem:[%s624 + $0x30] sm:$0xf]
      %v638 = vld [vmem:[%s624 + $0x34] sm:$0xf]
      %v639 = vld [vmem:[%s624 + $0x38] sm:$0xf]
      %v640 = vld [vmem:[%s624 + $0x3c] sm:$0xf]
      %v641 = vunpack.c.l.b16 %v595
      %v642 = vunpack.c.l.b16 %v599
      %v643 = vunpack.c.l.b16 %v603
      %v644 = vunpack.c.l.b16 %v607
      %v645 = vunpack.c.l.b16 %v611
      %v646 = vunpack.c.l.b16 %v615
      %v647 = vunpack.c.l.b16 %v619
      %v648 = vunpack.c.l.b16 %v623
      %v649 = vpack.c.b16 %v642, %v641
      %v650 = vpack.c.b16 %v644, %v643
      %v651 = vpack.c.b16 %v646, %v645
      %v652 = vpack.c.b16 %v648, %v647
      %v673 = vunpack.c.l.b16 %v625
      %v674 = vunpack.c.l.b16 %v626
      %v675 = vunpack.c.l.b16 %v627
      %v676 = vunpack.c.l.b16 %v628
      %v677 = vunpack.c.l.b16 %v629
      %v678 = vunpack.c.l.b16 %v630
      %v679 = vunpack.c.l.b16 %v631
      %v680 = vunpack.c.l.b16 %v632
      %v681 = vunpack.c.l.b16 %v633
      %v682 = vunpack.c.l.b16 %v634
      %v683 = vunpack.c.l.b16 %v635
      %v684 = vunpack.c.l.b16 %v636
      %v685 = vunpack.c.l.b16 %v637
      %v686 = vunpack.c.l.b16 %v638
      %v687 = vunpack.c.l.b16 %v639
      %v688 = vunpack.c.l.b16 %v640
      %v689 = vpack.c.b16 %v674, %v673
      %v690 = vpack.c.b16 %v676, %v675
      %v691 = vpack.c.b16 %v678, %v677
      %v692 = vpack.c.b16 %v680, %v679
      %v693 = vpack.c.b16 %v682, %v681
      %v694 = vpack.c.b16 %v684, %v683
      %v695 = vpack.c.b16 %v686, %v685
      %v696 = vpack.c.b16 %v688, %v687
      %705 = vmatpush.bf16.msra.mxu0 %v696
      %706 = vmatpush.bf16.msra.mxu0 %v695
      %707 = vmatpush.bf16.msra.mxu0 %v694
      %708 = vmatpush.bf16.msra.mxu0 %v693
      %709 = vmatpush.bf16.msra.mxu0 %v692
      %710 = vmatpush.bf16.msra.mxu0 %v691
      %711 = vmatpush.bf16.msra.mxu0 %v690
      %712 = vmatpush.bf16.msra.mxu0 %v689
      %713 = vmatmul.bf16.gmra.mxu0 %v649
      %v714 = vpop.f32.mrf.mxu0
      %v715 = vadd.f32 0.0, %v714
      %v716 = vpop.f32.mrf.mxu0
      %v717 = vadd.f32 0.0, %v716
      %718 = vmatmul.bf16.gmra.mxu0 %v650
      %v719 = vpop.f32.mrf.mxu0
      %v720 = vadd.f32 0.0, %v719
      %v721 = vpop.f32.mrf.mxu0
      %v722 = vadd.f32 0.0, %v721
      %723 = vmatmul.bf16.gmra.mxu0 %v651
      %v724 = vpop.f32.mrf.mxu0
      %v725 = vadd.f32 0.0, %v724
      %v726 = vpop.f32.mrf.mxu0
      %v727 = vadd.f32 0.0, %v726
      %728 = vmatmul.bf16.gmra.mxu0 %v652
      %v729 = vpop.f32.mrf.mxu0
      %v730 = vadd.f32 0.0, %v729
      %v731 = vpop.f32.mrf.mxu0
      %v732 = vadd.f32 0.0, %v731
      %733 = vdwg.mxu0
      %v734 = vadd.f32 %v562, %v715
      %v735 = vadd.f32 %v564, %v717
      %v736 = vadd.f32 %v567, %v720
      %v737 = vadd.f32 %v569, %v722
      %v738 = vadd.f32 %v572, %v725
      %v739 = vadd.f32 %v574, %v727
      %v740 = vadd.f32 %v577, %v730
      %v741 = vadd.f32 %v579, %v732
      %s742 = scalar_lea.vmem %s1, 192
      %v743 = vld [vmem:[%s742] sm:$0xf]
      %v744 = vld [vmem:[%s742 + $0x4] sm:$0xf]
      %v745 = vld [vmem:[%s742 + $0x8] sm:$0xf]
      %v746 = vld [vmem:[%s742 + $0xc] sm:$0xf]
      %v747 = vld [vmem:[%s742 + $0x10] sm:$0xf]
      %v748 = vld [vmem:[%s742 + $0x14] sm:$0xf]
      %v749 = vld [vmem:[%s742 + $0x18] sm:$0xf]
      %v750 = vld [vmem:[%s742 + $0x1c] sm:$0xf]
      %v751 = vld [vmem:[%s742 + $0x20] sm:$0xf]
      %v752 = vld [vmem:[%s742 + $0x24] sm:$0xf]
      %v753 = vld [vmem:[%s742 + $0x28] sm:$0xf]
      %v754 = vld [vmem:[%s742 + $0x2c] sm:$0xf]
      %v755 = vld [vmem:[%s742 + $0x30] sm:$0xf]
      %v756 = vld [vmem:[%s742 + $0x34] sm:$0xf]
      %v757 = vld [vmem:[%s742 + $0x38] sm:$0xf]
      %v758 = vld [vmem:[%s742 + $0x3c] sm:$0xf]
      %v760 = vunpack.c.l.b16 %v235
      %v761 = vpack.c.b16 %v490, %v489
      %v762 = vpack.c.b16 %v492, %v491
      %v763 = vpack.c.b16 %v494, %v493
      %v764 = vpack.c.b16 %v760, %v495
      %v785 = vunpack.c.l.b16 %v743
      %v786 = vunpack.c.l.b16 %v744
      %v787 = vunpack.c.l.b16 %v745
      %v788 = vunpack.c.l.b16 %v746
      %v789 = vunpack.c.l.b16 %v747
      %v790 = vunpack.c.l.b16 %v748
      %v791 = vunpack.c.l.b16 %v749
      %v792 = vunpack.c.l.b16 %v750
      %v793 = vunpack.c.l.b16 %v751
      %v794 = vunpack.c.l.b16 %v752
      %v795 = vunpack.c.l.b16 %v753
      %v796 = vunpack.c.l.b16 %v754
      %v797 = vunpack.c.l.b16 %v755
      %v798 = vunpack.c.l.b16 %v756
      %v799 = vunpack.c.l.b16 %v757
      %v800 = vunpack.c.l.b16 %v758
      %v801 = vpack.c.b16 %v786, %v785
      %v802 = vpack.c.b16 %v788, %v787
      %v803 = vpack.c.b16 %v790, %v789
      %v804 = vpack.c.b16 %v792, %v791
      %v805 = vpack.c.b16 %v794, %v793
      %v806 = vpack.c.b16 %v796, %v795
      %v807 = vpack.c.b16 %v798, %v797
      %v808 = vpack.c.b16 %v800, %v799
      %817 = vmatpush.bf16.msra.mxu0 %v808
      %818 = vmatpush.bf16.msra.mxu0 %v807
      %819 = vmatpush.bf16.msra.mxu0 %v806
      %820 = vmatpush.bf16.msra.mxu0 %v805
      %821 = vmatpush.bf16.msra.mxu0 %v804
      %822 = vmatpush.bf16.msra.mxu0 %v803
      %823 = vmatpush.bf16.msra.mxu0 %v802
      %824 = vmatpush.bf16.msra.mxu0 %v801
      %825 = vmatmul.bf16.gmra.mxu0 %v761
      %v826 = vpop.f32.mrf.mxu0
      %v827 = vadd.f32 0.0, %v826
      %v828 = vpop.f32.mrf.mxu0
      %v829 = vadd.f32 0.0, %v828
      %830 = vmatmul.bf16.gmra.mxu0 %v762
      %v831 = vpop.f32.mrf.mxu0
      %v832 = vadd.f32 0.0, %v831
      %v833 = vpop.f32.mrf.mxu0
      %v834 = vadd.f32 0.0, %v833
      %835 = vmatmul.bf16.gmra.mxu0 %v763
      %v836 = vpop.f32.mrf.mxu0
      %v837 = vadd.f32 0.0, %v836
      %v838 = vpop.f32.mrf.mxu0
      %v839 = vadd.f32 0.0, %v838
      %840 = vmatmul.bf16.gmra.mxu0 %v764
      %v841 = vpop.f32.mrf.mxu0
      %v842 = vadd.f32 0.0, %v841
      %v843 = vpop.f32.mrf.mxu0
      %v844 = vadd.f32 0.0, %v843
      %845 = vdwg.mxu0
      %v846 = vadd.f32 %v734, %v827
      %v847 = vadd.f32 %v735, %v829
      %v848 = vadd.f32 %v736, %v832
      %v849 = vadd.f32 %v737, %v834
      %v850 = vadd.f32 %v738, %v837
      %v851 = vadd.f32 %v739, %v839
      %v852 = vadd.f32 %v740, %v842
      %v853 = vadd.f32 %v741, %v844
      %v855 = vshrl.u32 %v235, 16
      %v857 = vrot.slane %v855, 4
      %v858 = vshll.u32 %v235, 16
      %v860 = vrot.slane %v858, 5
      %v861 = vor.u32 %v857, %v860
      %v862 = vrot.slane %v861, 4
      %v864 = vshll.u32 %v236, 16
      %v866 = vrot.slane %v864, 5
      %v867 = vsel %vm257, %v862, %v866
      %s868 = scalar_lea.vmem %s1, 256
      %v869 = vld [vmem:[%s868] sm:$0xf]
      %v870 = vld [vmem:[%s868 + $0x4] sm:$0xf]
      %v871 = vld [vmem:[%s868 + $0x8] sm:$0xf]
      %v872 = vld [vmem:[%s868 + $0xc] sm:$0xf]
      %v873 = vld [vmem:[%s868 + $0x10] sm:$0xf]
      %v874 = vld [vmem:[%s868 + $0x14] sm:$0xf]
      %v875 = vld [vmem:[%s868 + $0x18] sm:$0xf]
      %v876 = vld [vmem:[%s868 + $0x1c] sm:$0xf]
      %v877 = vld [vmem:[%s868 + $0x20] sm:$0xf]
      %v878 = vld [vmem:[%s868 + $0x24] sm:$0xf]
      %v879 = vld [vmem:[%s868 + $0x28] sm:$0xf]
      %v880 = vld [vmem:[%s868 + $0x2c] sm:$0xf]
      %v881 = vld [vmem:[%s868 + $0x30] sm:$0xf]
      %v882 = vld [vmem:[%s868 + $0x34] sm:$0xf]
      %v883 = vld [vmem:[%s868 + $0x38] sm:$0xf]
      %v884 = vld [vmem:[%s868 + $0x3c] sm:$0xf]
      %v885 = vunpack.c.l.b16 %v867
      %v886 = vpack.c.b16 %v389, %v388
      %v887 = vpack.c.b16 %v391, %v390
      %v888 = vpack.c.b16 %v393, %v392
      %v889 = vpack.c.b16 %v885, %v394
      %v910 = vunpack.c.l.b16 %v869
      %v911 = vunpack.c.l.b16 %v870
      %v912 = vunpack.c.l.b16 %v871
      %v913 = vunpack.c.l.b16 %v872
      %v914 = vunpack.c.l.b16 %v873
      %v915 = vunpack.c.l.b16 %v874
      %v916 = vunpack.c.l.b16 %v875
      %v917 = vunpack.c.l.b16 %v876
      %v918 = vunpack.c.l.b16 %v877
      %v919 = vunpack.c.l.b16 %v878
      %v920 = vunpack.c.l.b16 %v879
      %v921 = vunpack.c.l.b16 %v880
      %v922 = vunpack.c.l.b16 %v881
      %v923 = vunpack.c.l.b16 %v882
      %v924 = vunpack.c.l.b16 %v883
      %v925 = vunpack.c.l.b16 %v884
      %v926 = vpack.c.b16 %v911, %v910
      %v927 = vpack.c.b16 %v913, %v912
      %v928 = vpack.c.b16 %v915, %v914
      %v929 = vpack.c.b16 %v917, %v916
      %v930 = vpack.c.b16 %v919, %v918
      %v931 = vpack.c.b16 %v921, %v920
      %v932 = vpack.c.b16 %v923, %v922
      %v933 = vpack.c.b16 %v925, %v924
      %942 = vmatpush.bf16.msra.mxu0 %v933
      %943 = vmatpush.bf16.msra.mxu0 %v932
      %944 = vmatpush.bf16.msra.mxu0 %v931
      %945 = vmatpush.bf16.msra.mxu0 %v930
      %946 = vmatpush.bf16.msra.mxu0 %v929
      %947 = vmatpush.bf16.msra.mxu0 %v928
      %948 = vmatpush.bf16.msra.mxu0 %v927
      %949 = vmatpush.bf16.msra.mxu0 %v926
      %950 = vmatmul.bf16.gmra.mxu0 %v886
      %v951 = vpop.f32.mrf.mxu0
      %v952 = vadd.f32 0.0, %v951
      %v953 = vpop.f32.mrf.mxu0
      %v954 = vadd.f32 0.0, %v953
      %955 = vmatmul.bf16.gmra.mxu0 %v887
      %v956 = vpop.f32.mrf.mxu0
      %v957 = vadd.f32 0.0, %v956
      %v958 = vpop.f32.mrf.mxu0
      %v959 = vadd.f32 0.0, %v958
      %960 = vmatmul.bf16.gmra.mxu0 %v888
      %v961 = vpop.f32.mrf.mxu0
      %v962 = vadd.f32 0.0, %v961
      %v963 = vpop.f32.mrf.mxu0
      %v964 = vadd.f32 0.0, %v963
      %965 = vmatmul.bf16.gmra.mxu0 %v889
      %v966 = vpop.f32.mrf.mxu0
      %v967 = vadd.f32 0.0, %v966
      %v968 = vpop.f32.mrf.mxu0
      %v969 = vadd.f32 0.0, %v968
      %970 = vdwg.mxu0
      %v971 = vadd.f32 %v846, %v952
      %v972 = vadd.f32 %v847, %v954
      %v973 = vadd.f32 %v848, %v957
      %v974 = vadd.f32 %v849, %v959
      %v975 = vadd.f32 %v850, %v962
      %v976 = vadd.f32 %v851, %v964
      %v977 = vadd.f32 %v852, %v967
      %v978 = vadd.f32 %v853, %v969
      %v980 = vrot.slane %v235, 5
      %v981 = vrot.slane %v980, 4
      %v982 = vrot.slane %v236, 5
      %v983 = vsel %vm591, %v981, %v982
      %s984 = scalar_lea.vmem %s1, 320
      %v985 = vld [vmem:[%s984] sm:$0xf]
      %v986 = vld [vmem:[%s984 + $0x4] sm:$0xf]
      %v987 = vld [vmem:[%s984 + $0x8] sm:$0xf]
      %v988 = vld [vmem:[%s984 + $0xc] sm:$0xf]
      %v989 = vld [vmem:[%s984 + $0x10] sm:$0xf]
      %v990 = vld [vmem:[%s984 + $0x14] sm:$0xf]
      %v991 = vld [vmem:[%s984 + $0x18] sm:$0xf]
      %v992 = vld [vmem:[%s984 + $0x1c] sm:$0xf]
      %v993 = vld [vmem:[%s984 + $0x20] sm:$0xf]
      %v994 = vld [vmem:[%s984 + $0x24] sm:$0xf]
      %v995 = vld [vmem:[%s984 + $0x28] sm:$0xf]
      %v996 = vld [vmem:[%s984 + $0x2c] sm:$0xf]
      %v997 = vld [vmem:[%s984 + $0x30] sm:$0xf]
      %v998 = vld [vmem:[%s984 + $0x34] sm:$0xf]
      %v999 = vld [vmem:[%s984 + $0x38] sm:$0xf]
      %v1000 = vld [vmem:[%s984 + $0x3c] sm:$0xf]
      %v1001 = vunpack.c.l.b16 %v983
      %v1002 = vpack.c.b16 %v643, %v642
      %v1003 = vpack.c.b16 %v645, %v644
      %v1004 = vpack.c.b16 %v647, %v646
      %v1005 = vpack.c.b16 %v1001, %v648
      %v1026 = vunpack.c.l.b16 %v985
      %v1027 = vunpack.c.l.b16 %v986
      %v1028 = vunpack.c.l.b16 %v987
      %v1029 = vunpack.c.l.b16 %v988
      %v1030 = vunpack.c.l.b16 %v989
      %v1031 = vunpack.c.l.b16 %v990
      %v1032 = vunpack.c.l.b16 %v991
      %v1033 = vunpack.c.l.b16 %v992
      %v1034 = vunpack.c.l.b16 %v993
      %v1035 = vunpack.c.l.b16 %v994
      %v1036 = vunpack.c.l.b16 %v995
      %v1037 = vunpack.c.l.b16 %v996
      %v1038 = vunpack.c.l.b16 %v997
      %v1039 = vunpack.c.l.b16 %v998
      %v1040 = vunpack.c.l.b16 %v999
      %v1041 = vunpack.c.l.b16 %v1000
      %v1042 = vpack.c.b16 %v1027, %v1026
      %v1043 = vpack.c.b16 %v1029, %v1028
      %v1044 = vpack.c.b16 %v1031, %v1030
      %v1045 = vpack.c.b16 %v1033, %v1032
      %v1046 = vpack.c.b16 %v1035, %v1034
      %v1047 = vpack.c.b16 %v1037, %v1036
      %v1048 = vpack.c.b16 %v1039, %v1038
      %v1049 = vpack.c.b16 %v1041, %v1040
      %1058 = vmatpush.bf16.msra.mxu0 %v1049
      %1059 = vmatpush.bf16.msra.mxu0 %v1048
      %1060 = vmatpush.bf16.msra.mxu0 %v1047
      %1061 = vmatpush.bf16.msra.mxu0 %v1046
      %1062 = vmatpush.bf16.msra.mxu0 %v1045
      %1063 = vmatpush.bf16.msra.mxu0 %v1044
      %1064 = vmatpush.bf16.msra.mxu0 %v1043
      %1065 = vmatpush.bf16.msra.mxu0 %v1042
      %1066 = vmatmul.bf16.gmra.mxu0 %v1002
      %v1067 = vpop.f32.mrf.mxu0
      %v1068 = vadd.f32 0.0, %v1067
      %v1069 = vpop.f32.mrf.mxu0
      %v1070 = vadd.f32 0.0, %v1069
      %1071 = vmatmul.bf16.gmra.mxu0 %v1003
      %v1072 = vpop.f32.mrf.mxu0
      %v1073 = vadd.f32 0.0, %v1072
      %v1074 = vpop.f32.mrf.mxu0
      %v1075 = vadd.f32 0.0, %v1074
      %1076 = vmatmul.bf16.gmra.mxu0 %v1004
      %v1077 = vpop.f32.mrf.mxu0
      %v1078 = vadd.f32 0.0, %v1077
      %v1079 = vpop.f32.mrf.mxu0
      %v1080 = vadd.f32 0.0, %v1079
      %1081 = vmatmul.bf16.gmra.mxu0 %v1005
      %v1082 = vpop.f32.mrf.mxu0
      %v1083 = vadd.f32 0.0, %v1082
      %v1084 = vpop.f32.mrf.mxu0
      %v1085 = vadd.f32 0.0, %v1084
      %1086 = vdwg.mxu0
      %v1087 = vadd.f32 %v971, %v1068
      %v1088 = vadd.f32 %v972, %v1070
      %v1089 = vadd.f32 %v973, %v1073
      %v1090 = vadd.f32 %v974, %v1075
      %v1091 = vadd.f32 %v975, %v1078
      %v1092 = vadd.f32 %v976, %v1080
      %v1093 = vadd.f32 %v977, %v1083
      %v1094 = vadd.f32 %v978, %v1085
      %s1095 = scalar_lea.vmem %s1, 384
      %v1096 = vld [vmem:[%s1095] sm:$0xf]
      %v1097 = vld [vmem:[%s1095 + $0x4] sm:$0xf]
      %v1098 = vld [vmem:[%s1095 + $0x8] sm:$0xf]
      %v1099 = vld [vmem:[%s1095 + $0xc] sm:$0xf]
      %v1100 = vld [vmem:[%s1095 + $0x10] sm:$0xf]
      %v1101 = vld [vmem:[%s1095 + $0x14] sm:$0xf]
      %v1102 = vld [vmem:[%s1095 + $0x18] sm:$0xf]
      %v1103 = vld [vmem:[%s1095 + $0x1c] sm:$0xf]
      %v1104 = vld [vmem:[%s1095 + $0x20] sm:$0xf]
      %v1105 = vld [vmem:[%s1095 + $0x24] sm:$0xf]
      %v1106 = vld [vmem:[%s1095 + $0x28] sm:$0xf]
      %v1107 = vld [vmem:[%s1095 + $0x2c] sm:$0xf]
      %v1108 = vld [vmem:[%s1095 + $0x30] sm:$0xf]
      %v1109 = vld [vmem:[%s1095 + $0x34] sm:$0xf]
      %v1110 = vld [vmem:[%s1095 + $0x38] sm:$0xf]
      %v1111 = vld [vmem:[%s1095 + $0x3c] sm:$0xf]
      %v1113 = vunpack.c.l.b16 %v237
      %v1114 = vpack.c.b16 %v1113, %v760
      %v1132 = vunpack.c.l.b16 %v1096
      %v1133 = vunpack.c.l.b16 %v1097
      %v1134 = vunpack.c.l.b16 %v1098
      %v1135 = vunpack.c.l.b16 %v1099
      %v1136 = vunpack.c.l.b16 %v1100
      %v1137 = vunpack.c.l.b16 %v1101
      %v1138 = vunpack.c.l.b16 %v1102
      %v1139 = vunpack.c.l.b16 %v1103
      %v1140 = vunpack.c.l.b16 %v1104
      %v1141 = vunpack.c.l.b16 %v1105
      %v1142 = vunpack.c.l.b16 %v1106
      %v1143 = vunpack.c.l.b16 %v1107
      %v1144 = vunpack.c.l.b16 %v1108
      %v1145 = vunpack.c.l.b16 %v1109
      %v1146 = vunpack.c.l.b16 %v1110
      %v1147 = vunpack.c.l.b16 %v1111
      %v1148 = vpack.c.b16 %v1133, %v1132
      %v1149 = vpack.c.b16 %v1135, %v1134
      %v1150 = vpack.c.b16 %v1137, %v1136
      %v1151 = vpack.c.b16 %v1139, %v1138
      %v1152 = vpack.c.b16 %v1141, %v1140
      %v1153 = vpack.c.b16 %v1143, %v1142
      %v1154 = vpack.c.b16 %v1145, %v1144
      %v1155 = vpack.c.b16 %v1147, %v1146
      %1164 = vmatpush.bf16.msra.mxu0 %v1155
      %1165 = vmatpush.bf16.msra.mxu0 %v1154
      %1166 = vmatpush.bf16.msra.mxu0 %v1153
      %1167 = vmatpush.bf16.msra.mxu0 %v1152
      %1168 = vmatpush.bf16.msra.mxu0 %v1151
      %1169 = vmatpush.bf16.msra.mxu0 %v1150
      %1170 = vmatpush.bf16.msra.mxu0 %v1149
      %1171 = vmatpush.bf16.msra.mxu0 %v1148
      %1172 = vmatmul.bf16.gmra.mxu0 %v497
      %v1173 = vpop.f32.mrf.mxu0
      %v1174 = vadd.f32 0.0, %v1173
      %v1175 = vpop.f32.mrf.mxu0
      %v1176 = vadd.f32 0.0, %v1175
      %1177 = vmatmul.bf16.gmra.mxu0 %v498
      %v1178 = vpop.f32.mrf.mxu0
      %v1179 = vadd.f32 0.0, %v1178
      %v1180 = vpop.f32.mrf.mxu0
      %v1181 = vadd.f32 0.0, %v1180
      %1182 = vmatmul.bf16.gmra.mxu0 %v499
      %v1183 = vpop.f32.mrf.mxu0
      %v1184 = vadd.f32 0.0, %v1183
      %v1185 = vpop.f32.mrf.mxu0
      %v1186 = vadd.f32 0.0, %v1185
      %1187 = vmatmul.bf16.gmra.mxu0 %v1114
      %v1188 = vpop.f32.mrf.mxu0
      %v1189 = vadd.f32 0.0, %v1188
      %v1190 = vpop.f32.mrf.mxu0
      %v1191 = vadd.f32 0.0, %v1190
      %1192 = vdwg.mxu0
      %v1193 = vadd.f32 %v1087, %v1174
      %v1194 = vadd.f32 %v1088, %v1176
      %v1195 = vadd.f32 %v1089, %v1179
      %v1196 = vadd.f32 %v1090, %v1181
      %v1197 = vadd.f32 %v1091, %v1184
      %v1198 = vadd.f32 %v1092, %v1186
      %v1199 = vadd.f32 %v1093, %v1189
      %v1200 = vadd.f32 %v1094, %v1191
      %v1202 = vshrl.u32 %v237, 16
      %v1204 = vrot.slane %v1202, 4
      %v1205 = vshll.u32 %v237, 16
      %v1207 = vrot.slane %v1205, 5
      %v1208 = vor.u32 %v1204, %v1207
      %v1209 = vrot.slane %v1208, 4
      %v1211 = vshll.u32 %v238, 16
      %v1213 = vrot.slane %v1211, 5
      %v1214 = vsel %vm257, %v1209, %v1213
      %s1215 = scalar_lea.vmem %s1, 448
      %v1216 = vld [vmem:[%s1215] sm:$0xf]
      %v1217 = vld [vmem:[%s1215 + $0x4] sm:$0xf]
      %v1218 = vld [vmem:[%s1215 + $0x8] sm:$0xf]
      %v1219 = vld [vmem:[%s1215 + $0xc] sm:$0xf]
      %v1220 = vld [vmem:[%s1215 + $0x10] sm:$0xf]
      %v1221 = vld [vmem:[%s1215 + $0x14] sm:$0xf]
      %v1222 = vld [vmem:[%s1215 + $0x18] sm:$0xf]
      %v1223 = vld [vmem:[%s1215 + $0x1c] sm:$0xf]
      %v1224 = vld [vmem:[%s1215 + $0x20] sm:$0xf]
      %v1225 = vld [vmem:[%s1215 + $0x24] sm:$0xf]
      %v1226 = vld [vmem:[%s1215 + $0x28] sm:$0xf]
      %v1227 = vld [vmem:[%s1215 + $0x2c] sm:$0xf]
      %v1228 = vld [vmem:[%s1215 + $0x30] sm:$0xf]
      %v1229 = vld [vmem:[%s1215 + $0x34] sm:$0xf]
      %v1230 = vld [vmem:[%s1215 + $0x38] sm:$0xf]
      %v1231 = vld [vmem:[%s1215 + $0x3c] sm:$0xf]
      %v1232 = vunpack.c.l.b16 %v1214
      %v1233 = vpack.c.b16 %v1232, %v885
      %v1251 = vunpack.c.l.b16 %v1216
      %v1252 = vunpack.c.l.b16 %v1217
      %v1253 = vunpack.c.l.b16 %v1218
      %v1254 = vunpack.c.l.b16 %v1219
      %v1255 = vunpack.c.l.b16 %v1220
      %v1256 = vunpack.c.l.b16 %v1221
      %v1257 = vunpack.c.l.b16 %v1222
      %v1258 = vunpack.c.l.b16 %v1223
      %v1259 = vunpack.c.l.b16 %v1224
      %v1260 = vunpack.c.l.b16 %v1225
      %v1261 = vunpack.c.l.b16 %v1226
      %v1262 = vunpack.c.l.b16 %v1227
      %v1263 = vunpack.c.l.b16 %v1228
      %v1264 = vunpack.c.l.b16 %v1229
      %v1265 = vunpack.c.l.b16 %v1230
      %v1266 = vunpack.c.l.b16 %v1231
      %v1267 = vpack.c.b16 %v1252, %v1251
      %v1268 = vpack.c.b16 %v1254, %v1253
      %v1269 = vpack.c.b16 %v1256, %v1255
      %v1270 = vpack.c.b16 %v1258, %v1257
      %v1271 = vpack.c.b16 %v1260, %v1259
      %v1272 = vpack.c.b16 %v1262, %v1261
      %v1273 = vpack.c.b16 %v1264, %v1263
      %v1274 = vpack.c.b16 %v1266, %v1265
      %1283 = vmatpush.bf16.msra.mxu0 %v1274
      %1284 = vmatpush.bf16.msra.mxu0 %v1273
      %1285 = vmatpush.bf16.msra.mxu0 %v1272
      %1286 = vmatpush.bf16.msra.mxu0 %v1271
      %1287 = vmatpush.bf16.msra.mxu0 %v1270
      %1288 = vmatpush.bf16.msra.mxu0 %v1269
      %1289 = vmatpush.bf16.msra.mxu0 %v1268
      %1290 = vmatpush.bf16.msra.mxu0 %v1267
      %1291 = vmatmul.bf16.gmra.mxu0 %v396
      %v1292 = vpop.f32.mrf.mxu0
      %v1293 = vadd.f32 0.0, %v1292
      %v1294 = vpop.f32.mrf.mxu0
      %v1295 = vadd.f32 0.0, %v1294
      %1296 = vmatmul.bf16.gmra.mxu0 %v397
      %v1297 = vpop.f32.mrf.mxu0
      %v1298 = vadd.f32 0.0, %v1297
      %v1299 = vpop.f32.mrf.mxu0
      %v1300 = vadd.f32 0.0, %v1299
      %1301 = vmatmul.bf16.gmra.mxu0 %v398
      %v1302 = vpop.f32.mrf.mxu0
      %v1303 = vadd.f32 0.0, %v1302
      %v1304 = vpop.f32.mrf.mxu0
      %v1305 = vadd.f32 0.0, %v1304
      %1306 = vmatmul.bf16.gmra.mxu0 %v1233
      %v1307 = vpop.f32.mrf.mxu0
      %v1308 = vadd.f32 0.0, %v1307
      %v1309 = vpop.f32.mrf.mxu0
      %v1310 = vadd.f32 0.0, %v1309
      %1311 = vdwg.mxu0
      %v1312 = vadd.f32 %v1193, %v1293
      %v1313 = vadd.f32 %v1194, %v1295
      %v1314 = vadd.f32 %v1195, %v1298
      %v1315 = vadd.f32 %v1196, %v1300
      %v1316 = vadd.f32 %v1197, %v1303
      %v1317 = vadd.f32 %v1198, %v1305
      %v1318 = vadd.f32 %v1199, %v1308
      %v1319 = vadd.f32 %v1200, %v1310
      %v1321 = vrot.slane %v237, 5
      %v1322 = vrot.slane %v1321, 4
      %v1323 = vrot.slane %v238, 5
      %v1324 = vsel %vm591, %v1322, %v1323
      %s1325 = scalar_lea.vmem %s1, 512
      %v1326 = vld [vmem:[%s1325] sm:$0xf]
      %v1327 = vld [vmem:[%s1325 + $0x4] sm:$0xf]
      %v1328 = vld [vmem:[%s1325 + $0x8] sm:$0xf]
      %v1329 = vld [vmem:[%s1325 + $0xc] sm:$0xf]
      %v1330 = vld [vmem:[%s1325 + $0x10] sm:$0xf]
      %v1331 = vld [vmem:[%s1325 + $0x14] sm:$0xf]
      %v1332 = vld [vmem:[%s1325 + $0x18] sm:$0xf]
      %v1333 = vld [vmem:[%s1325 + $0x1c] sm:$0xf]
      %v1334 = vld [vmem:[%s1325 + $0x20] sm:$0xf]
      %v1335 = vld [vmem:[%s1325 + $0x24] sm:$0xf]
      %v1336 = vld [vmem:[%s1325 + $0x28] sm:$0xf]
      %v1337 = vld [vmem:[%s1325 + $0x2c] sm:$0xf]
      %v1338 = vld [vmem:[%s1325 + $0x30] sm:$0xf]
      %v1339 = vld [vmem:[%s1325 + $0x34] sm:$0xf]
      %v1340 = vld [vmem:[%s1325 + $0x38] sm:$0xf]
      %v1341 = vld [vmem:[%s1325 + $0x3c] sm:$0xf]
      %v1342 = vunpack.c.l.b16 %v1324
      %v1343 = vpack.c.b16 %v1342, %v1001
      %v1361 = vunpack.c.l.b16 %v1326
      %v1362 = vunpack.c.l.b16 %v1327
      %v1363 = vunpack.c.l.b16 %v1328
      %v1364 = vunpack.c.l.b16 %v1329
      %v1365 = vunpack.c.l.b16 %v1330
      %v1366 = vunpack.c.l.b16 %v1331
      %v1367 = vunpack.c.l.b16 %v1332
      %v1368 = vunpack.c.l.b16 %v1333
      %v1369 = vunpack.c.l.b16 %v1334
      %v1370 = vunpack.c.l.b16 %v1335
      %v1371 = vunpack.c.l.b16 %v1336
      %v1372 = vunpack.c.l.b16 %v1337
      %v1373 = vunpack.c.l.b16 %v1338
      %v1374 = vunpack.c.l.b16 %v1339
      %v1375 = vunpack.c.l.b16 %v1340
      %v1376 = vunpack.c.l.b16 %v1341
      %v1377 = vpack.c.b16 %v1362, %v1361
      %v1378 = vpack.c.b16 %v1364, %v1363
      %v1379 = vpack.c.b16 %v1366, %v1365
      %v1380 = vpack.c.b16 %v1368, %v1367
      %v1381 = vpack.c.b16 %v1370, %v1369
      %v1382 = vpack.c.b16 %v1372, %v1371
      %v1383 = vpack.c.b16 %v1374, %v1373
      %v1384 = vpack.c.b16 %v1376, %v1375
      %1393 = vmatpush.bf16.msra.mxu0 %v1384
      %1394 = vmatpush.bf16.msra.mxu0 %v1383
      %1395 = vmatpush.bf16.msra.mxu0 %v1382
      %1396 = vmatpush.bf16.msra.mxu0 %v1381
      %1397 = vmatpush.bf16.msra.mxu0 %v1380
      %1398 = vmatpush.bf16.msra.mxu0 %v1379
      %1399 = vmatpush.bf16.msra.mxu0 %v1378
      %1400 = vmatpush.bf16.msra.mxu0 %v1377
      %1401 = vmatmul.bf16.gmra.mxu0 %v650
      %v1402 = vpop.f32.mrf.mxu0
      %v1403 = vadd.f32 0.0, %v1402
      %v1404 = vpop.f32.mrf.mxu0
      %v1405 = vadd.f32 0.0, %v1404
      %1406 = vmatmul.bf16.gmra.mxu0 %v651
      %v1407 = vpop.f32.mrf.mxu0
      %v1408 = vadd.f32 0.0, %v1407
      %v1409 = vpop.f32.mrf.mxu0
      %v1410 = vadd.f32 0.0, %v1409
      %1411 = vmatmul.bf16.gmra.mxu0 %v652
      %v1412 = vpop.f32.mrf.mxu0
      %v1413 = vadd.f32 0.0, %v1412
      %v1414 = vpop.f32.mrf.mxu0
      %v1415 = vadd.f32 0.0, %v1414
      %1416 = vmatmul.bf16.gmra.mxu0 %v1343
      %v1417 = vpop.f32.mrf.mxu0
      %v1418 = vadd.f32 0.0, %v1417
      %v1419 = vpop.f32.mrf.mxu0
      %v1420 = vadd.f32 0.0, %v1419
      %1421 = vdwg.mxu0
      %v1422 = vadd.f32 %v1312, %v1403
      %v1423 = vadd.f32 %v1313, %v1405
      %v1424 = vadd.f32 %v1314, %v1408
      %v1425 = vadd.f32 %v1315, %v1410
      %v1426 = vadd.f32 %v1316, %v1413
      %v1427 = vadd.f32 %v1317, %v1415
      %v1428 = vadd.f32 %v1318, %v1418
      %v1429 = vadd.f32 %v1319, %v1420
      %v1430 = vpack.c.bf16 %v1422, %v1422
      %v1431 = vpack.c.bf16 %v1423, %v1423
      %v1432 = vpack.c.bf16 %v1424, %v1424
      %v1433 = vpack.c.bf16 %v1425, %v1425
      %v1434 = vpack.c.bf16 %v1426, %v1426
      %v1435 = vpack.c.bf16 %v1427, %v1427
      %v1436 = vpack.c.bf16 %v1428, %v1428
      %v1437 = vpack.c.bf16 %v1429, %v1429
      %1438 = vst [vmem:[%s210] sm:$0xf] %v1430
      %1439 = vst [vmem:[%s210 + $0x4] sm:$0xf] %v1431
      %1440 = vst [vmem:[%s210 + $0x8] sm:$0xf] %v1432
      %1441 = vst [vmem:[%s210 + $0xc] sm:$0xf] %v1433
      %1442 = vst [vmem:[%s210 + $0x10] sm:$0xf] %v1434
      %1443 = vst [vmem:[%s210 + $0x14] sm:$0xf] %v1435
      %1444 = vst [vmem:[%s210 + $0x18] sm:$0xf] %v1436
      %1445 = vst [vmem:[%s210 + $0x1c] sm:$0xf] %v1437
      %v1446 = vadd.f32 %v1422, %v1423
      %v1447 = vadd.f32 %v1446, %v1424
      %v1448 = vadd.f32 %v1447, %v1425
      %v1449 = vadd.f32 %v1448, %v1426
      %v1450 = vadd.f32 %v1449, %v1427
      %v1451 = vadd.f32 %v1450, %v1428
      %v1452 = vadd.f32 %v1451, %v1429
      %v1453 = vrot.slane %v1452, 4
      %v1454 = vadd.f32 %v1452, %v1453
      %v1455 = vrot.slane %v1454, 2
      %v1456 = vadd.f32 %v1454, %v1455
      %v1457 = vrot.slane %v1456, 1
      %v1458 = vadd.f32 %v1456, %v1457
      %v1459 = vmul.f32 %v1422, %v1422
      %v1460 = vmul.f32 %v1423, %v1423
      %v1461 = vmul.f32 %v1424, %v1424
      %v1462 = vmul.f32 %v1425, %v1425
      %v1463 = vmul.f32 %v1426, %v1426
      %v1464 = vmul.f32 %v1427, %v1427
      %v1465 = vmul.f32 %v1428, %v1428
      %v1466 = vmul.f32 %v1429, %v1429
      %v1467 = vadd.f32 %v1459, %v1460
      %v1468 = vadd.f32 %v1467, %v1461
      %v1469 = vadd.f32 %v1468, %v1462
      %v1470 = vadd.f32 %v1469, %v1463
      %v1471 = vadd.f32 %v1470, %v1464
      %v1472 = vadd.f32 %v1471, %v1465
      %v1473 = vadd.f32 %v1472, %v1466
      %v1474 = vrot.slane %v1473, 4
      %v1475 = vadd.f32 %v1473, %v1474
      %v1476 = vrot.slane %v1475, 2
      %v1477 = vadd.f32 %v1475, %v1476
      %v1478 = vrot.slane %v1477, 1
      %v1479 = vadd.f32 %v1477, %v1478
      %1480 = vst [vmem:[%s214] sm:$0xff] %v1458
      %1481 = vst [vmem:[%s218] sm:$0xff] %v1479
      %p1482 = scmp.lt.s32.totalorder %s16, 1
      %s1483 = scalar_select %p1482, %s16, 1
      %s1484 = smul.addr %s1483, 8
      %s1485 = smul.addr %s1484, 4
      %s1486 = scalar_lea.vmem %s2, %s1485
      %p1487 = scmp.lt.s32.totalorder %s16, 1
      %s1488 = scalar_select %p1487, %s16, 1
      %s1489 = smul.addr %s1488, 8
      %s1490 = scalar_lea.vmem %s3, %s1489
      %p1491 = scmp.lt.s32.totalorder %s16, 1
      %s1492 = scalar_select %p1491, %s16, 1
      %s1493 = smul.addr %s1492, 8
      %s1494 = scalar_lea.vmem %s4, %s1493
      // Predicated region
      $region29: #{basic_block_forward.6} parent=27 // pred_check
        %p1495 = pneg %p81
      $region30: #{basic_block_forward.6} parent=27 // pred_check_branch
        %1497 = sbr.rel (%p1495) target = $region32
      $region31: #{basic_block_forward.6} parent=27 // pred_region
        _
      $region32: #{basic_block_forward.6} parent=27 // pred_fallthru
        _
      // Predicated region
      $region33: #{basic_block_forward.6} parent=27 // pred_check
        %p1498 = pneg %p107
      $region34: #{basic_block_forward.6} parent=27 // pred_check_branch
        %1500 = sbr.rel (%p1498) target = $region36
      $region35: #{basic_block_forward.6} parent=27 // pred_region
        _
      $region36: #{basic_block_forward.6} parent=27 // pred_fallthru
        _
      // Predicated region
      $region37: #{basic_block_forward.6} parent=27 // pred_check
        %p1501 = pneg %p133
      $region38: #{basic_block_forward.6} parent=27 // pred_check_branch
        %1503 = sbr.rel (%p1501) target = $region40
      $region39: #{basic_block_forward.6} parent=27 // pred_region
        _
      $region40: #{basic_block_forward.6} parent=27 // pred_fallthru
        _
    $region28: #{basic_block_forward.6} parent=5 // pred_fallthru
      _
    %p1504 = scmp.le.s32.totalorder 2, %s11
    // Predicated region
    $region41: #{basic_block_forward.6} parent=5 // pred_check
      %p1505 = pneg %p1504
    $region42: #{basic_block_forward.6} parent=5 // pred_check_branch
      %1507 = sbr.rel (%p1505) target = $region44
    $region43: #{basic_block_forward.6} parent=5 // pred_region
      %s1508 = ssub.s32 %s11, 2
      // Predicated region
      $region45: #{basic_block_forward.6} parent=43 // pred_check
        %p1509 = pneg %p87
      $region46: #{basic_block_forward.6} parent=43 // pred_check_branch
        %1511 = sbr.rel (%p1509) target = $region48
      $region47: #{basic_block_forward.6} parent=43 // pred_region
        %p1512 = scmp.lt.s32.totalorder %s17, 1
        %s1513 = scalar_select %p1512, %s17, 1
        %s1514 = smul.addr %s1513, 8
        %s1515 = smul.addr %s1514, 4
        %s1516 = scalar_lea.vmem %s2, %s1515
      $region48: #{basic_block_forward.6} parent=43 // pred_fallthru
        _
      // Predicated region
      $region49: #{basic_block_forward.6} parent=43 // pred_check
        %p1517 = pneg %p113
      $region50: #{basic_block_forward.6} parent=43 // pred_check_branch
        %1519 = sbr.rel (%p1517) target = $region52
      $region51: #{basic_block_forward.6} parent=43 // pred_region
        %p1520 = scmp.lt.s32.totalorder %s17, 1
        %s1521 = scalar_select %p1520, %s17, 1
        %s1522 = smul.addr %s1521, 8
        %s1523 = scalar_lea.vmem %s3, %s1522
      $region52: #{basic_block_forward.6} parent=43 // pred_fallthru
        _
      // Predicated region
      $region53: #{basic_block_forward.6} parent=43 // pred_check
        %p1524 = pneg %p139
      $region54: #{basic_block_forward.6} parent=43 // pred_check_branch
        %1526 = sbr.rel (%p1524) target = $region56
      $region55: #{basic_block_forward.6} parent=43 // pred_region
        %p1527 = scmp.lt.s32.totalorder %s17, 1
        %s1528 = scalar_select %p1527, %s17, 1
        %s1529 = smul.addr %s1528, 8
        %s1530 = scalar_lea.vmem %s4, %s1529
      $region56: #{basic_block_forward.6} parent=43 // pred_fallthru
        _
    $region44: #{basic_block_forward.6} parent=5 // pred_fallthru
      _
  $region6: #{basic_block_forward.6} parent=0 // loop_footer
    %s15 = sadd.s32 1, %s11
  $region7: #{basic_block_forward.6} parent=0 // loop_footer_branch
    %10 = sbr.rel target = $region3
  $region8: #{basic_block_forward.6} parent=0 // loop_exit
    _

</llo_original>
